<compile_context>
chip_gen: v7x
topology: tpu7x:2x2x1
jax: 0.10.0
libtpu: 0.0.40
codegen_flags: <defaults>
</compile_context>

<pallas_src>
import functools

import jax
import jax.numpy as jnp
from jax.experimental import pallas as pl
from jax.experimental.pallas import tpu as pltpu

NEG_SLOPE = 0.2   # LeakyReLU(0.2)
BN_EPS = 1e-5     # nn.BatchNorm2d default eps
NSPLIT = 2        # parallel chunks for the BN-stats conv (v7x has 2 TCs)


# ------------------------------- small utils --------------------------------

def _rup(x, m):
    return ((x + m - 1) // m) * m


def _physical_vmem_bytes():
    try:
        return int(pltpu.get_tpu_info().vmem_capacity_bytes)
    except Exception:
        return 64 << 20   # conservative: v7x has the smallest per-TC VMEM


def _vmem_limit(*buffer_bytes):
    """Scoped-VMEM budget: double-buffered working set + headroom, <=80% phys."""
    cap = int(0.8 * _physical_vmem_bytes())
    est = 2 * sum(int(b) for b in buffer_bytes) + (8 << 20)
    return int(min(max(est, 16 << 20), cap))


def _tiling(m, num_splits=1, target=512):
    """Pick (m_pad, tm) with m_pad % (num_splits * tm) == 0 and tm % 8 == 0."""
    if m >= num_splits * target:
        tm = target
    else:
        tm = _rup(max(1, -(-m // num_splits)), 8)
    m_pad = _rup(m, num_splits * tm)
    return m_pad, tm


def _pad_rows(a, m_pad):
    m = a.shape[0]
    if m_pad == m:
        return a
    return jnp.pad(a, ((0, m_pad - m), (0, 0)))   # zero rows -> zero conv out


# ----------------------------- Pallas kernels ------------------------------

def _conv_kernel(x_ref, w_ref, o_ref, *, fuse_leaky):
    """(tm, K) bf16 @ (K, C) bf16 on the MXU, f32 accumulate, opt. LeakyReLU."""
    acc = jnp.dot(x_ref[...], w_ref[...], preferred_element_type=jnp.float32)
    if fuse_leaky:
        acc = jnp.where(acc >= 0.0, acc, NEG_SLOPE * acc)
    o_ref[...] = acc.astype(o_ref.dtype)


def _conv_bnstats_kernel(x_ref, w_ref, o_ref, stats_ref, acc_ref):
    """Conv matmul (bf16 out) + fused per-channel sum / sum-of-squares.

    Grid is (chunk, m_tile): the chunk axis is "parallel" (one chunk per
    TensorCore on v7x); the m axis is "arbitrary".  Partial stats accumulate
    in VMEM scratch and are stored once, into this chunk's (2, C) column slab
    of the (2, NSPLIT*C) stats output.
    """
    acc = jnp.dot(x_ref[...], w_ref[...], preferred_element_type=jnp.float32)
    o_ref[...] = acc.astype(o_ref.dtype)          # bf16 intermediate to HBM

    s = jnp.sum(acc, axis=0, keepdims=True)       # (1, C)  f32-exact
    q = jnp.sum(acc * acc, axis=0, keepdims=True)

    @pl.when(pl.program_id(1) == 0)
    def _():
        acc_ref[...] = jnp.zeros_like(acc_ref)

    acc_ref[0:1, :] += s
    acc_ref[1:2, :] += q

    @pl.when(pl.program_id(1) == pl.num_programs(1) - 1)
    def _():
        stats_ref[...] = acc_ref[...]             # single (2, C) store per chunk


def _bn_leaky_kernel(y_ref, stats_ref, gamma_ref, beta_ref, o_ref, *, inv_count):
    """Training-mode BatchNorm (batch stats, biased var) + LeakyReLU(0.2)."""
    y = y_ref[...].astype(jnp.float32)
    mean = stats_ref[0:1, :] * inv_count
    var = jnp.maximum(stats_ref[1:2, :] * inv_count - mean * mean, 0.0)
    scale = jax.lax.rsqrt(var + BN_EPS) * gamma_ref[...]
    shift = beta_ref[...] - mean * scale
    z = y * scale + shift
    o_ref[...] = jnp.where(z >= 0.0, z, NEG_SLOPE * z).astype(o_ref.dtype)


# ----------------------------- kernel wrappers ------------------------------

def pallas_conv(patches, w_mat, *, fuse_leaky, out_dtype):
    """patches: (M, K) bf16, w_mat: (K, C) bf16, C a multiple of 128."""
    M, K = patches.shape
    C = w_mat.shape[1]
    m_pad, tm = _tiling(M, num_splits=1, target=512)
    patches = _pad_rows(patches, m_pad)
    out_bytes = jnp.dtype(out_dtype).itemsize
    vmem = _vmem_limit(tm * K * 2, K * C * 2, tm * C * out_bytes)
    y = pl.pallas_call(
        functools.partial(_conv_kernel, fuse_leaky=fuse_leaky),
        out_shape=jax.ShapeDtypeStruct((m_pad, C), out_dtype),
        grid=(m_pad // tm,),
        in_specs=[
            pl.BlockSpec((tm, K), lambda i: (i, 0)),
            pl.BlockSpec((K, C), lambda i: (0, 0)),   # constant block
        ],
        out_specs=pl.BlockSpec((tm, C), lambda i: (i, 0)),
        compiler_params=pltpu.CompilerParams(
            dimension_semantics=("parallel",), vmem_limit_bytes=vmem),
    )(patches, w_mat)
    return y[:M] if m_pad != M else y


def pallas_conv_bnstats(patches, w_mat, num_splits=NSPLIT):
    """Conv matmul with fused BN statistics, split across `num_splits` chunks."""
    M, K = patches.shape
    C = w_mat.shape[1]
    m_pad, tm = _tiling(M, num_splits=num_splits, target=512)
    patches = _pad_rows(patches, m_pad)
    inner = m_pad // (num_splits * tm)
    vmem = _vmem_limit(tm * K * 2, K * C * 2, tm * C * 2,
                       2 * num_splits * C * 4, 2 * C * 4)
    y, stats = pl.pallas_call(
        _conv_bnstats_kernel,
        out_shape=(jax.ShapeDtypeStruct((m_pad, C), jnp.bfloat16),
                   jax.ShapeDtypeStruct((2, num_splits * C), jnp.float32)),
        grid=(num_splits, inner),
        in_specs=[
            pl.BlockSpec((tm, K), lambda c, i: (c * inner + i, 0)),
            pl.BlockSpec((K, C), lambda c, i: (0, 0)),
        ],
        out_specs=(
            pl.BlockSpec((tm, C), lambda c, i: (c * inner + i, 0)),
            pl.BlockSpec((2, C), lambda c, i: (0, c)),   # per-chunk stats slab
        ),
        scratch_shapes=[pltpu.VMEM((2, C), jnp.float32)],
        compiler_params=pltpu.CompilerParams(
            dimension_semantics=("parallel", "arbitrary"),
            vmem_limit_bytes=vmem),
    )(patches, w_mat)
    # Combine per-chunk partial sums (tiny (2, NSPLIT*C) op).
    stats = stats.reshape(2, num_splits, C).sum(axis=1)
    return y, stats


def pallas_bn_leaky(y, stats, gamma, beta, real_count, *, out_dtype=jnp.bfloat16):
    """Tiled normalize + LeakyReLU. y: (M, C) bf16 (M may include zero pad rows)."""
    M, C = y.shape
    m_pad, tm = _tiling(M, num_splits=1, target=512)
    y = _pad_rows(y, m_pad)
    inv_count = 1.0 / float(real_count)
    vmem = _vmem_limit(tm * C * 2, tm * C * 2, 4 * C * 4)
    return pl.pallas_call(
        functools.partial(_bn_leaky_kernel, inv_count=inv_count),
        out_shape=jax.ShapeDtypeStruct((m_pad, C), out_dtype),
        grid=(m_pad // tm,),
        in_specs=[
            pl.BlockSpec((tm, C), lambda i: (i, 0)),
            pl.BlockSpec((2, C), lambda i: (0, 0)),
            pl.BlockSpec((1, C), lambda i: (0, 0)),
            pl.BlockSpec((1, C), lambda i: (0, 0)),
        ],
        out_specs=pl.BlockSpec((tm, C), lambda i: (i, 0)),
        compiler_params=pltpu.CompilerParams(
            dimension_semantics=("parallel",), vmem_limit_bytes=vmem),
    )(y, stats, gamma, beta)


# ------------------------------- JAX glue -----------------------------------

def _im2col_nhwc(x, k, stride, pad):
    """x: (N, H, W, C) -> patches (N*Ho*Wo, k*k*C), feature order (kh, kw, c)."""
    N, H, W, C = x.shape
    xp = jnp.pad(x, ((0, 0), (pad, pad), (pad, pad), (0, 0)))
    Ho = (H + 2 * pad - k) // stride + 1
    Wo = (W + 2 * pad - k) // stride + 1
    cols = [xp[:, kh:kh + stride * Ho:stride, kw:kw + stride * Wo:stride, :]
            for kh in range(k) for kw in range(k)]       # each (N, Ho, Wo, C)
    patches = jnp.concatenate(cols, axis=-1)             # (N, Ho, Wo, k*k*C)
    return patches.reshape(N * Ho * Wo, k * k * C), Ho, Wo


def _prep_weight(w, cin_pad, cout_pad):
    """(Cout, Cin, kH, kW) -> (kH*kW*cin_pad, cout_pad) bf16, zero-padded."""
    cout, cin, kh, kw = w.shape
    w = jnp.pad(w, ((0, cout_pad - cout), (0, cin_pad - cin), (0, 0), (0, 0)))
    w = jnp.transpose(w, (2, 3, 1, 0)).reshape(kh * kw * cin_pad, cout_pad)
    return w.astype(jnp.bfloat16)


def _prep_vec(v, cpad):
    return jnp.pad(v, (0, cpad - v.shape[0])).reshape(1, cpad).astype(jnp.float32)


def prepare_params(raw):
    """Pad / reorder PyTorch-layout params into device-ready matmul operands."""
    w1, w2, w3, w4 = raw["w1"], raw["w2"], raw["w3"], raw["w4"]
    c0p = _rup(w1.shape[1], 8)      # image channels -> K = 16*c0p multiple of 128
    c1p = _rup(w1.shape[0], 128)
    c2p = _rup(w2.shape[0], 128)
    c3p = _rup(w3.shape[0], 128)
    c4p = _rup(w4.shape[0], 128)    # final Cout=1 padded; column 0 sliced later
    return {
        "w1": _prep_weight(w1, c0p, c1p),
        "w2": _prep_weight(w2, c1p, c2p),
        "w3": _prep_weight(w3, c2p, c3p),
        "w4": _prep_weight(w4, c3p, c4p),
        "g2": _prep_vec(raw["g2"], c2p), "b2": _prep_vec(raw["b2"], c2p),
        "g3": _prep_vec(raw["g3"], c3p), "b3": _prep_vec(raw["b3"], c3p),
    }


def dcgan_discriminator_forward(x_nchw, params):
    N, nc, H, W = x_nchw.shape
    ncp = params["w1"].shape[0] // 16    # padded input-channel count (static)

    # Single NHWC conversion of the small input image; pad channels, cast bf16.
    x = jnp.transpose(x_nchw, (0, 2, 3, 1))
    x = jnp.pad(x, ((0, 0), (0, 0), (0, 0), (0, ncp - nc))).astype(jnp.bfloat16)

    # L1: Conv(nc -> ndf, 4, 2, 1) + LeakyReLU (fused)
    pats, Ho, Wo = _im2col_nhwc(x, 4, 2, 1)
    y = pallas_conv(pats, params["w1"], fuse_leaky=True, out_dtype=jnp.bfloat16)
    x = y.reshape(N, Ho, Wo, -1)

    # L2: Conv(ndf -> 2ndf, 4, 2, 1) + BN(stats fused into conv) + LeakyReLU
    pats, Ho, Wo = _im2col_nhwc(x, 4, 2, 1)
    m_real = N * Ho * Wo
    y, stats = pallas_conv_bnstats(pats, params["w2"])
    y = pallas_bn_leaky(y, stats, params["g2"], params["b2"], m_real)
    x = y[:m_real].reshape(N, Ho, Wo, -1)

    # L3: Conv(2ndf -> 4ndf, 4, 2, 1) + BN + LeakyReLU
    pats, Ho, Wo = _im2col_nhwc(x, 4, 2, 1)
    m_real = N * Ho * Wo
    y, stats = pallas_conv_bnstats(pats, params["w3"])
    y = pallas_bn_leaky(y, stats, params["g3"], params["b3"], m_real)
    x = y[:m_real].reshape(N, Ho, Wo, -1)

    # L4: Conv(4ndf -> 1, 4, 1, 0)  (Cout padded to 128, slice column 0).
    # For the canonical 4x4 feature map, im2col is a pure row-major reshape
    # (feature order (kh, kw, c) == NHWC flattening) -> no slices/concat.
    if x.shape[1] == 4 and x.shape[2] == 4:
        pats = x.reshape(N, 16 * x.shape[-1])
    else:
        pats, _, _ = _im2col_nhwc(x, 4, 1, 0)
    y = pallas_conv(pats, params["w4"], fuse_leaky=False, out_dtype=jnp.float32)
    # output.view(-1, 1).squeeze(1)
    return y[:, 0]


def init_params(key, ndf, nc):
    ks = jax.random.split(key, 6)
    return {
        "w1": 0.02 * jax.random.normal(ks[0], (ndf, nc, 4, 4), jnp.float32),
        "w2": 0.02 * jax.random.normal(ks[1], (ndf * 2, ndf, 4, 4), jnp.float32),
        "w3": 0.02 * jax.random.normal(ks[2], (ndf * 4, ndf * 2, 4, 4), jnp.float32),
        "w4": 0.02 * jax.random.normal(ks[3], (1, ndf * 4, 4, 4), jnp.float32),
        "g2": 1.0 + 0.02 * jax.random.normal(ks[4], (ndf * 2,), jnp.float32),
        "b2": jnp.zeros((ndf * 2,), jnp.float32),
        "g3": 1.0 + 0.02 * jax.random.normal(ks[5], (ndf * 4,), jnp.float32),
        "b3": jnp.zeros((ndf * 4,), jnp.float32),
    }


if __name__ == "__main__":
    key = jax.random.PRNGKey(0)
    kx, kp = jax.random.split(key)

    ndf, nc = 8, 3
    batch, spatial = 2, 32  # 32x32 -> 16 -> 8 -> 4 -> 1 (matches the conv stack)
    x = jax.random.normal(kx, (batch, nc, spatial, spatial), jnp.float32)
    params = prepare_params(init_params(kp, ndf, nc))

    fwd = jax.jit(dcgan_discriminator_forward)
    out = jax.block_until_ready(fwd(x, params))
    assert out.shape == (batch,), out.shape
    assert bool(jnp.all(jnp.isfinite(out)))
    print("KERNEL_OK")
</pallas_src>

<mosaic_0001>
module attributes {stable_mosaic.version = 11 : i64} {
  func.func @_conv_kernel(%arg0: i32, %arg1: memref<512x128xbf16, #tpu.memory_space<vmem>>, %arg2: memref<128x128xbf16, #tpu.memory_space<vmem>>, %arg3: memref<512x128xbf16, #tpu.memory_space<vmem>>) attributes {dimension_semantics = [#tpu.dimension_semantics<parallel>], iteration_bounds = array<i64: 1>, scalar_prefetch = 0 : i64, scratch_operands = 0 : i64, tpu.core_type = #tpu.core_type<tc>, window_params = [{transform_indices = @transform_0, window_bounds = array<i64: 512, 128>}, {pipeline_mode = #tpu.pipeline_mode<synchronous>, transform_indices = @transform_1, window_bounds = array<i64: 128, 128>}, {transform_indices = @transform_2, window_bounds = array<i64: 512, 128>}]} {
    %c0 = arith.constant 0 : index
    %c0_0 = arith.constant 0 : index
    %0 = vector.load %arg1[%c0, %c0_0] : memref<512x128xbf16, #tpu.memory_space<vmem>>, vector<512x128xbf16>
    %c0_1 = arith.constant 0 : index
    %c0_2 = arith.constant 0 : index
    %1 = vector.load %arg2[%c0_1, %c0_2] : memref<128x128xbf16, #tpu.memory_space<vmem>>, vector<128x128xbf16>
    %cst = arith.constant dense<0.000000e+00> : vector<512x128xf32>
    %2 = tpu.matmul %0, %1, %cst {dimension_numbers = #tpu.dot_dimension_numbers<[1], [0], [0], [1], [0, 0, 1, 1], [], []>} : vector<512x128xbf16>, vector<128x128xbf16>, vector<512x128xf32> -> vector<512x128xf32>
    %cst_3 = arith.constant 0.000000e+00 : f32
    %3 = vector.broadcast %cst_3 : f32 to vector<512x128xf32>
    %4 = arith.cmpf oge, %2, %3 : vector<512x128xf32>
    %cst_4 = arith.constant 2.000000e-01 : f32
    %5 = vector.broadcast %cst_4 : f32 to vector<512x128xf32>
    %6 = arith.mulf %5, %2 : vector<512x128xf32>
    %7 = arith.select %4, %2, %6 : vector<512x128xi1>, vector<512x128xf32>
    %8 = arith.truncf %7 : vector<512x128xf32> to vector<512x128xbf16>
    %c0_5 = arith.constant 0 : index
    %c0_6 = arith.constant 0 : index
    %9 = vector.load %arg3[%c0_5, %c0_6] : memref<512x128xbf16, #tpu.memory_space<vmem>>, vector<512x128xbf16>
    tpu.vector_store %arg3[%c0_5, %c0_6], %8 {strides = array<i32>} : memref<512x128xbf16, #tpu.memory_space<vmem>>, vector<512x128xbf16>,
    return
  }
  func.func @transform_0(%arg0: i32) -> (i32, i32) {
    %c0_i32 = arith.constant 0 : i32
    %c0_i32_0 = arith.constant 0 : i32
    return %arg0, %c0_i32 : i32, i32
  }
  func.func @transform_1(%arg0: i32) -> (i32, i32) {
    %c0_i32 = arith.constant 0 : i32
    %c0_i32_0 = arith.constant 0 : i32
    %c0_i32_1 = arith.constant 0 : i32
    return %c0_i32, %c0_i32_0 : i32, i32
  }
  func.func @transform_2(%arg0: i32) -> (i32, i32) {
    %c0_i32 = arith.constant 0 : i32
    %c0_i32_0 = arith.constant 0 : i32
    return %arg0, %c0_i32 : i32, i32
  }
}

module attributes {stable_mosaic.version = 11 : i64} {
  func.func @_conv_bnstats_kernel(%arg0: i32, %arg1: i32, %arg2: memref<64x2048xbf16, #tpu.memory_space<vmem>>, %arg3: memref<2048x128xbf16, #tpu.memory_space<vmem>>, %arg4: memref<64x128xbf16, #tpu.memory_space<vmem>>, %arg5: memref<2x128xf32, #tpu.memory_space<vmem>>, %arg6: memref<2x128xf32, #tpu.memory_space<vmem>>) attributes {dimension_semantics = [#tpu.dimension_semantics<parallel>, #tpu.dimension_semantics<arbitrary>], iteration_bounds = array<i64: 2, 1>, scalar_prefetch = 0 : i64, scratch_operands = 1 : i64, tpu.core_type = #tpu.core_type<tc>, window_params = [{transform_indices = @transform_0, window_bounds = array<i64: 64, 2048>}, {pipeline_mode = #tpu.pipeline_mode<synchronous>, transform_indices = @transform_1, window_bounds = array<i64: 2048, 128>}, {transform_indices = @transform_2, window_bounds = array<i64: 64, 128>}, {transform_indices = @transform_3, window_bounds = array<i64: 2, 128>}]} {
    %c0 = arith.constant 0 : index
    %c0_0 = arith.constant 0 : index
    %0 = vector.load %arg2[%c0, %c0_0] : memref<64x2048xbf16, #tpu.memory_space<vmem>>, vector<64x2048xbf16>
    %c0_1 = arith.constant 0 : index
    %c0_2 = arith.constant 0 : index
    %1 = vector.load %arg3[%c0_1, %c0_2] : memref<2048x128xbf16, #tpu.memory_space<vmem>>, vector<2048x128xbf16>
    %cst = arith.constant dense<0.000000e+00> : vector<64x128xf32>
    %2 = tpu.matmul %0, %1, %cst {dimension_numbers = #tpu.dot_dimension_numbers<[1], [0], [0], [1], [0, 0, 1, 1], [], []>} : vector<64x2048xbf16>, vector<2048x128xbf16>, vector<64x128xf32> -> vector<64x128xf32>
    %3 = arith.truncf %2 : vector<64x128xf32> to vector<64x128xbf16>
    %c0_3 = arith.constant 0 : index
    %c0_4 = arith.constant 0 : index
    %4 = vector.load %arg4[%c0_3, %c0_4] : memref<64x128xbf16, #tpu.memory_space<vmem>>, vector<64x128xbf16>
    tpu.vector_store %arg4[%c0_3, %c0_4], %3 {strides = array<i32>} : memref<64x128xbf16, #tpu.memory_space<vmem>>, vector<64x128xbf16>,
    %cst_5 = arith.constant dense<0.000000e+00> : vector<128xf32>
    %5 = vector.multi_reduction <add>, %2, %cst_5 [0] : vector<64x128xf32> to vector<128xf32>
    %6 = vector.shape_cast %5 : vector<128xf32> to vector<1x128xf32>
    %7 = arith.mulf %2, %2 : vector<64x128xf32>
    %cst_6 = arith.constant dense<0.000000e+00> : vector<128xf32>
    %8 = vector.multi_reduction <add>, %7, %cst_6 [0] : vector<64x128xf32> to vector<128xf32>
    %9 = vector.shape_cast %8 : vector<128xf32> to vector<1x128xf32>
    %c0_i32 = arith.constant 0 : i32
    %10 = arith.cmpi eq, %arg1, %c0_i32 : i32
    %11 = arith.extui %10 : i1 to i32
    %c0_i32_7 = arith.constant 0 : i32
    %12 = arith.cmpi ne, %11, %c0_i32_7 : i32
    scf.if %12 {
      %cst_17 = arith.constant 0.000000e+00 : f32
      %22 = vector.broadcast %cst_17 : f32 to vector<2x128xf32>
      %c0_18 = arith.constant 0 : index
      %c0_19 = arith.constant 0 : index
      %23 = vector.load %arg6[%c0_18, %c0_19] : memref<2x128xf32, #tpu.memory_space<vmem>>, vector<2x128xf32>
      tpu.vector_store %arg6[%c0_18, %c0_19], %22 {strides = array<i32>} : memref<2x128xf32, #tpu.memory_space<vmem>>, vector<2x128xf32>,
    } else {
    }
    %c0_8 = arith.constant 0 : index
    %c0_9 = arith.constant 0 : index
    %13 = vector.load %arg6[%c0_8, %c0_9] : memref<2x128xf32, #tpu.memory_space<vmem>>, vector<1x128xf32>
    %14 = arith.addf %13, %6 : vector<1x128xf32>
    %c0_10 = arith.constant 0 : index
    %c0_11 = arith.constant 0 : index
    %15 = vector.load %arg6[%c0_10, %c0_11] : memref<2x128xf32, #tpu.memory_space<vmem>>, vector<1x128xf32>
    tpu.vector_store %arg6[%c0_10, %c0_11], %14 {strides = array<i32>} : memref<2x128xf32, #tpu.memory_space<vmem>>, vector<1x128xf32>,
    %c1 = arith.constant 1 : index
    %c0_12 = arith.constant 0 : index
    %16 = vector.load %arg6[%c1, %c0_12] : memref<2x128xf32, #tpu.memory_space<vmem>>, vector<1x128xf32>
    %17 = arith.addf %16, %9 : vector<1x128xf32>
    %c1_13 = arith.constant 1 : index
    %c0_14 = arith.constant 0 : index
    %18 = vector.load %arg6[%c1_13, %c0_14] : memref<2x128xf32, #tpu.memory_space<vmem>>, vector<1x128xf32>
    tpu.vector_store %arg6[%c1_13, %c0_14], %17 {strides = array<i32>} : memref<2x128xf32, #tpu.memory_space<vmem>>, vector<1x128xf32>,
    %c0_i32_15 = arith.constant 0 : i32
    %19 = arith.cmpi eq, %arg1, %c0_i32_15 : i32
    %20 = arith.extui %19 : i1 to i32
    %c0_i32_16 = arith.constant 0 : i32
    %21 = arith.cmpi ne, %20, %c0_i32_16 : i32
    scf.if %21 {
      %c0_17 = arith.constant 0 : index
      %c0_18 = arith.constant 0 : index
      %22 = vector.load %arg6[%c0_17, %c0_18] : memref<2x128xf32, #tpu.memory_space<vmem>>, vector<2x128xf32>
      %c0_19 = arith.constant 0 : index
      %c0_20 = arith.constant 0 : index
      %23 = vector.load %arg5[%c0_19, %c0_20] : memref<2x128xf32, #tpu.memory_space<vmem>>, vector<2x128xf32>
      tpu.vector_store %arg5[%c0_19, %c0_20], %22 {strides = array<i32>} : memref<2x128xf32, #tpu.memory_space<vmem>>, vector<2x128xf32>,
    } else {
    }
    return
  }
  func.func @transform_0(%arg0: i32, %arg1: i32) -> (i32, i32) {
    %c1_i32 = arith.constant 1 : i32
    %0 = arith.muli %arg0, %c1_i32 : i32
    %1 = arith.addi %0, %arg1 : i32
    %c0_i32 = arith.constant 0 : i32
    %c0_i32_0 = arith.constant 0 : i32
    return %1, %c0_i32 : i32, i32
  }
  func.func @transform_1(%arg0: i32, %arg1: i32) -> (i32, i32) {
    %c0_i32 = arith.constant 0 : i32
    %c0_i32_0 = arith.constant 0 : i32
    %c0_i32_1 = arith.constant 0 : i32
    return %c0_i32, %c0_i32_0 : i32, i32
  }
  func.func @transform_2(%arg0: i32, %arg1: i32) -> (i32, i32) {
    %c1_i32 = arith.constant 1 : i32
    %0 = arith.muli %arg0, %c1_i32 : i32
    %1 = arith.addi %0, %arg1 : i32
    %c0_i32 = arith.constant 0 : i32
    %c0_i32_0 = arith.constant 0 : i32
    return %1, %c0_i32 : i32, i32
  }
  func.func @transform_3(%arg0: i32, %arg1: i32) -> (i32, i32) {
    %c0_i32 = arith.constant 0 : i32
    %c0_i32_0 = arith.constant 0 : i32
    return %c0_i32, %arg0 : i32, i32
  }
}

module attributes {stable_mosaic.version = 11 : i64} {
  func.func @_bn_leaky_kernel(%arg0: i32, %arg1: memref<128x128xbf16, #tpu.memory_space<vmem>>, %arg2: memref<2x128xf32, #tpu.memory_space<vmem>>, %arg3: memref<1x128xf32, #tpu.memory_space<vmem>>, %arg4: memref<1x128xf32, #tpu.memory_space<vmem>>, %arg5: memref<128x128xbf16, #tpu.memory_space<vmem>>) attributes {dimension_semantics = [#tpu.dimension_semantics<parallel>], iteration_bounds = array<i64: 1>, scalar_prefetch = 0 : i64, scratch_operands = 0 : i64, tpu.core_type = #tpu.core_type<tc>, window_params = [{transform_indices = @transform_0, window_bounds = array<i64: 128, 128>}, {pipeline_mode = #tpu.pipeline_mode<synchronous>, transform_indices = @transform_1, window_bounds = array<i64: 2, 128>}, {pipeline_mode = #tpu.pipeline_mode<synchronous>, transform_indices = @transform_2, window_bounds = array<i64: 1, 128>}, {pipeline_mode = #tpu.pipeline_mode<synchronous>, transform_indices = @transform_3, window_bounds = array<i64: 1, 128>}, {transform_indices = @transform_4, window_bounds = array<i64: 128, 128>}]} {
    %c0 = arith.constant 0 : index
    %c0_0 = arith.constant 0 : index
    %0 = vector.load %arg1[%c0, %c0_0] : memref<128x128xbf16, #tpu.memory_space<vmem>>, vector<128x128xbf16>
    %1 = arith.extf %0 : vector<128x128xbf16> to vector<128x128xf32>
    %c0_1 = arith.constant 0 : index
    %c0_2 = arith.constant 0 : index
    %2 = vector.load %arg2[%c0_1, %c0_2] : memref<2x128xf32, #tpu.memory_space<vmem>>, vector<1x128xf32>
    %cst = arith.constant 7.812500e-03 : f32
    %3 = vector.broadcast %cst : f32 to vector<1x128xf32>
    %4 = arith.mulf %2, %3 : vector<1x128xf32>
    %c1 = arith.constant 1 : index
    %c0_3 = arith.constant 0 : index
    %5 = vector.load %arg2[%c1, %c0_3] : memref<2x128xf32, #tpu.memory_space<vmem>>, vector<1x128xf32>
    %cst_4 = arith.constant 7.812500e-03 : f32
    %6 = vector.broadcast %cst_4 : f32 to vector<1x128xf32>
    %7 = arith.mulf %5, %6 : vector<1x128xf32>
    %8 = arith.mulf %4, %4 : vector<1x128xf32>
    %9 = arith.subf %7, %8 : vector<1x128xf32>
    %cst_5 = arith.constant 0.000000e+00 : f32
    %10 = vector.broadcast %cst_5 : f32 to vector<1x128xf32>
    %11 = arith.maximumf %9, %10 : vector<1x128xf32>
    %cst_6 = arith.constant 9.99999974E-6 : f32
    %12 = vector.broadcast %cst_6 : f32 to vector<1x128xf32>
    %13 = arith.addf %11, %12 : vector<1x128xf32>
    %14 = math.rsqrt %13 : vector<1x128xf32>
    %c0_7 = arith.constant 0 : index
    %c0_8 = arith.constant 0 : index
    %15 = vector.load %arg3[%c0_7, %c0_8] : memref<1x128xf32, #tpu.memory_space<vmem>>, vector<1x128xf32>
    %16 = arith.mulf %14, %15 : vector<1x128xf32>
    %c0_9 = arith.constant 0 : index
    %c0_10 = arith.constant 0 : index
    %17 = vector.load %arg4[%c0_9, %c0_10] : memref<1x128xf32, #tpu.memory_space<vmem>>, vector<1x128xf32>
    %18 = arith.mulf %4, %16 : vector<1x128xf32>
    %19 = arith.subf %17, %18 : vector<1x128xf32>
    %20 = vector.broadcast %16 : vector<1x128xf32> to vector<128x128xf32>
    %21 = arith.mulf %1, %20 : vector<128x128xf32>
    %22 = vector.broadcast %19 : vector<1x128xf32> to vector<128x128xf32>
    %23 = arith.addf %21, %22 : vector<128x128xf32>
    %cst_11 = arith.constant 0.000000e+00 : f32
    %24 = vector.broadcast %cst_11 : f32 to vector<128x128xf32>
    %25 = arith.cmpf oge, %23, %24 : vector<128x128xf32>
    %cst_12 = arith.constant 2.000000e-01 : f32
    %26 = vector.broadcast %cst_12 : f32 to vector<128x128xf32>
    %27 = arith.mulf %26, %23 : vector<128x128xf32>
    %28 = arith.select %25, %23, %27 : vector<128x128xi1>, vector<128x128xf32>
    %29 = arith.truncf %28 : vector<128x128xf32> to vector<128x128xbf16>
    %c0_13 = arith.constant 0 : index
    %c0_14 = arith.constant 0 : index
    %30 = vector.load %arg5[%c0_13, %c0_14] : memref<128x128xbf16, #tpu.memory_space<vmem>>, vector<128x128xbf16>
    tpu.vector_store %arg5[%c0_13, %c0_14], %29 {strides = array<i32>} : memref<128x128xbf16, #tpu.memory_space<vmem>>, vector<128x128xbf16>,
    return
  }
  func.func @transform_0(%arg0: i32) -> (i32, i32) {
    %c0_i32 = arith.constant 0 : i32
    %c0_i32_0 = arith.constant 0 : i32
    return %arg0, %c0_i32 : i32, i32
  }
  func.func @transform_1(%arg0: i32) -> (i32, i32) {
    %c0_i32 = arith.constant 0 : i32
    %c0_i32_0 = arith.constant 0 : i32
    %c0_i32_1 = arith.constant 0 : i32
    return %c0_i32, %c0_i32_0 : i32, i32
  }
  func.func @transform_2(%arg0: i32) -> (i32, i32) {
    %c0_i32 = arith.constant 0 : i32
    %c0_i32_0 = arith.constant 0 : i32
    %c0_i32_1 = arith.constant 0 : i32
    return %c0_i32, %c0_i32_0 : i32, i32
  }
  func.func @transform_3(%arg0: i32) -> (i32, i32) {
    %c0_i32 = arith.constant 0 : i32
    %c0_i32_0 = arith.constant 0 : i32
    %c0_i32_1 = arith.constant 0 : i32
    return %c0_i32, %c0_i32_0 : i32, i32
  }
  func.func @transform_4(%arg0: i32) -> (i32, i32) {
    %c0_i32 = arith.constant 0 : i32
    %c0_i32_0 = arith.constant 0 : i32
    return %arg0, %c0_i32 : i32, i32
  }
}

module attributes {stable_mosaic.version = 11 : i64} {
  func.func @_bn_leaky_kernel(%arg0: i32, %arg1: memref<32x128xbf16, #tpu.memory_space<vmem>>, %arg2: memref<2x128xf32, #tpu.memory_space<vmem>>, %arg3: memref<1x128xf32, #tpu.memory_space<vmem>>, %arg4: memref<1x128xf32, #tpu.memory_space<vmem>>, %arg5: memref<32x128xbf16, #tpu.memory_space<vmem>>) attributes {dimension_semantics = [#tpu.dimension_semantics<parallel>], iteration_bounds = array<i64: 1>, scalar_prefetch = 0 : i64, scratch_operands = 0 : i64, tpu.core_type = #tpu.core_type<tc>, window_params = [{transform_indices = @transform_0, window_bounds = array<i64: 32, 128>}, {pipeline_mode = #tpu.pipeline_mode<synchronous>, transform_indices = @transform_1, window_bounds = array<i64: 2, 128>}, {pipeline_mode = #tpu.pipeline_mode<synchronous>, transform_indices = @transform_2, window_bounds = array<i64: 1, 128>}, {pipeline_mode = #tpu.pipeline_mode<synchronous>, transform_indices = @transform_3, window_bounds = array<i64: 1, 128>}, {transform_indices = @transform_4, window_bounds = array<i64: 32, 128>}]} {
    %c0 = arith.constant 0 : index
    %c0_0 = arith.constant 0 : index
    %0 = vector.load %arg1[%c0, %c0_0] : memref<32x128xbf16, #tpu.memory_space<vmem>>, vector<32x128xbf16>
    %1 = arith.extf %0 : vector<32x128xbf16> to vector<32x128xf32>
    %c0_1 = arith.constant 0 : index
    %c0_2 = arith.constant 0 : index
    %2 = vector.load %arg2[%c0_1, %c0_2] : memref<2x128xf32, #tpu.memory_space<vmem>>, vector<1x128xf32>
    %cst = arith.constant 3.125000e-02 : f32
    %3 = vector.broadcast %cst : f32 to vector<1x128xf32>
    %4 = arith.mulf %2, %3 : vector<1x128xf32>
    %c1 = arith.constant 1 : index
    %c0_3 = arith.constant 0 : index
    %5 = vector.load %arg2[%c1, %c0_3] : memref<2x128xf32, #tpu.memory_space<vmem>>, vector<1x128xf32>
    %cst_4 = arith.constant 3.125000e-02 : f32
    %6 = vector.broadcast %cst_4 : f32 to vector<1x128xf32>
    %7 = arith.mulf %5, %6 : vector<1x128xf32>
    %8 = arith.mulf %4, %4 : vector<1x128xf32>
    %9 = arith.subf %7, %8 : vector<1x128xf32>
    %cst_5 = arith.constant 0.000000e+00 : f32
    %10 = vector.broadcast %cst_5 : f32 to vector<1x128xf32>
    %11 = arith.maximumf %9, %10 : vector<1x128xf32>
    %cst_6 = arith.constant 9.99999974E-6 : f32
    %12 = vector.broadcast %cst_6 : f32 to vector<1x128xf32>
    %13 = arith.addf %11, %12 : vector<1x128xf32>
    %14 = math.rsqrt %13 : vector<1x128xf32>
    %c0_7 = arith.constant 0 : index
    %c0_8 = arith.constant 0 : index
    %15 = vector.load %arg3[%c0_7, %c0_8] : memref<1x128xf32, #tpu.memory_space<vmem>>, vector<1x128xf32>
    %16 = arith.mulf %14, %15 : vector<1x128xf32>
    %c0_9 = arith.constant 0 : index
    %c0_10 = arith.constant 0 : index
    %17 = vector.load %arg4[%c0_9, %c0_10] : memref<1x128xf32, #tpu.memory_space<vmem>>, vector<1x128xf32>
    %18 = arith.mulf %4, %16 : vector<1x128xf32>
    %19 = arith.subf %17, %18 : vector<1x128xf32>
    %20 = vector.broadcast %16 : vector<1x128xf32> to vector<32x128xf32>
    %21 = arith.mulf %1, %20 : vector<32x128xf32>
    %22 = vector.broadcast %19 : vector<1x128xf32> to vector<32x128xf32>
    %23 = arith.addf %21, %22 : vector<32x128xf32>
    %cst_11 = arith.constant 0.000000e+00 : f32
    %24 = vector.broadcast %cst_11 : f32 to vector<32x128xf32>
    %25 = arith.cmpf oge, %23, %24 : vector<32x128xf32>
    %cst_12 = arith.constant 2.000000e-01 : f32
    %26 = vector.broadcast %cst_12 : f32 to vector<32x128xf32>
    %27 = arith.mulf %26, %23 : vector<32x128xf32>
    %28 = arith.select %25, %23, %27 : vector<32x128xi1>, vector<32x128xf32>
    %29 = arith.truncf %28 : vector<32x128xf32> to vector<32x128xbf16>
    %c0_13 = arith.constant 0 : index
    %c0_14 = arith.constant 0 : index
    %30 = vector.load %arg5[%c0_13, %c0_14] : memref<32x128xbf16, #tpu.memory_space<vmem>>, vector<32x128xbf16>
    tpu.vector_store %arg5[%c0_13, %c0_14], %29 {strides = array<i32>} : memref<32x128xbf16, #tpu.memory_space<vmem>>, vector<32x128xbf16>,
    return
  }
  func.func @transform_0(%arg0: i32) -> (i32, i32) {
    %c0_i32 = arith.constant 0 : i32
    %c0_i32_0 = arith.constant 0 : i32
    return %arg0, %c0_i32 : i32, i32
  }
  func.func @transform_1(%arg0: i32) -> (i32, i32) {
    %c0_i32 = arith.constant 0 : i32
    %c0_i32_0 = arith.constant 0 : i32
    %c0_i32_1 = arith.constant 0 : i32
    return %c0_i32, %c0_i32_0 : i32, i32
  }
  func.func @transform_2(%arg0: i32) -> (i32, i32) {
    %c0_i32 = arith.constant 0 : i32
    %c0_i32_0 = arith.constant 0 : i32
    %c0_i32_1 = arith.constant 0 : i32
    return %c0_i32, %c0_i32_0 : i32, i32
  }
  func.func @transform_3(%arg0: i32) -> (i32, i32) {
    %c0_i32 = arith.constant 0 : i32
    %c0_i32_0 = arith.constant 0 : i32
    %c0_i32_1 = arith.constant 0 : i32
    return %c0_i32, %c0_i32_0 : i32, i32
  }
  func.func @transform_4(%arg0: i32) -> (i32, i32) {
    %c0_i32 = arith.constant 0 : i32
    %c0_i32_0 = arith.constant 0 : i32
    return %arg0, %c0_i32 : i32, i32
  }
}

module attributes {stable_mosaic.version = 11 : i64} {
  func.func @_conv_bnstats_kernel(%arg0: i32, %arg1: i32, %arg2: memref<16x2048xbf16, #tpu.memory_space<vmem>>, %arg3: memref<2048x128xbf16, #tpu.memory_space<vmem>>, %arg4: memref<16x128xbf16, #tpu.memory_space<vmem>>, %arg5: memref<2x128xf32, #tpu.memory_space<vmem>>, %arg6: memref<2x128xf32, #tpu.memory_space<vmem>>) attributes {dimension_semantics = [#tpu.dimension_semantics<parallel>, #tpu.dimension_semantics<arbitrary>], iteration_bounds = array<i64: 2, 1>, scalar_prefetch = 0 : i64, scratch_operands = 1 : i64, tpu.core_type = #tpu.core_type<tc>, window_params = [{transform_indices = @transform_0, window_bounds = array<i64: 16, 2048>}, {pipeline_mode = #tpu.pipeline_mode<synchronous>, transform_indices = @transform_1, window_bounds = array<i64: 2048, 128>}, {transform_indices = @transform_2, window_bounds = array<i64: 16, 128>}, {transform_indices = @transform_3, window_bounds = array<i64: 2, 128>}]} {
    %c0 = arith.constant 0 : index
    %c0_0 = arith.constant 0 : index
    %0 = vector.load %arg2[%c0, %c0_0] : memref<16x2048xbf16, #tpu.memory_space<vmem>>, vector<16x2048xbf16>
    %c0_1 = arith.constant 0 : index
    %c0_2 = arith.constant 0 : index
    %1 = vector.load %arg3[%c0_1, %c0_2] : memref<2048x128xbf16, #tpu.memory_space<vmem>>, vector<2048x128xbf16>
    %cst = arith.constant dense<0.000000e+00> : vector<16x128xf32>
    %2 = tpu.matmul %0, %1, %cst {dimension_numbers = #tpu.dot_dimension_numbers<[1], [0], [0], [1], [0, 0, 1, 1], [], []>} : vector<16x2048xbf16>, vector<2048x128xbf16>, vector<16x128xf32> -> vector<16x128xf32>
    %3 = arith.truncf %2 : vector<16x128xf32> to vector<16x128xbf16>
    %c0_3 = arith.constant 0 : index
    %c0_4 = arith.constant 0 : index
    %4 = vector.load %arg4[%c0_3, %c0_4] : memref<16x128xbf16, #tpu.memory_space<vmem>>, vector<16x128xbf16>
    tpu.vector_store %arg4[%c0_3, %c0_4], %3 {strides = array<i32>} : memref<16x128xbf16, #tpu.memory_space<vmem>>, vector<16x128xbf16>,
    %cst_5 = arith.constant dense<0.000000e+00> : vector<128xf32>
    %5 = vector.multi_reduction <add>, %2, %cst_5 [0] : vector<16x128xf32> to vector<128xf32>
    %6 = vector.shape_cast %5 : vector<128xf32> to vector<1x128xf32>
    %7 = arith.mulf %2, %2 : vector<16x128xf32>
    %cst_6 = arith.constant dense<0.000000e+00> : vector<128xf32>
    %8 = vector.multi_reduction <add>, %7, %cst_6 [0] : vector<16x128xf32> to vector<128xf32>
    %9 = vector.shape_cast %8 : vector<128xf32> to vector<1x128xf32>
    %c0_i32 = arith.constant 0 : i32
    %10 = arith.cmpi eq, %arg1, %c0_i32 : i32
    %11 = arith.extui %10 : i1 to i32
    %c0_i32_7 = arith.constant 0 : i32
    %12 = arith.cmpi ne, %11, %c0_i32_7 : i32
    scf.if %12 {
      %cst_17 = arith.constant 0.000000e+00 : f32
      %22 = vector.broadcast %cst_17 : f32 to vector<2x128xf32>
      %c0_18 = arith.constant 0 : index
      %c0_19 = arith.constant 0 : index
      %23 = vector.load %arg6[%c0_18, %c0_19] : memref<2x128xf32, #tpu.memory_space<vmem>>, vector<2x128xf32>
      tpu.vector_store %arg6[%c0_18, %c0_19], %22 {strides = array<i32>} : memref<2x128xf32, #tpu.memory_space<vmem>>, vector<2x128xf32>,
    } else {
    }
    %c0_8 = arith.constant 0 : index
    %c0_9 = arith.constant 0 : index
    %13 = vector.load %arg6[%c0_8, %c0_9] : memref<2x128xf32, #tpu.memory_space<vmem>>, vector<1x128xf32>
    %14 = arith.addf %13, %6 : vector<1x128xf32>
    %c0_10 = arith.constant 0 : index
    %c0_11 = arith.constant 0 : index
    %15 = vector.load %arg6[%c0_10, %c0_11] : memref<2x128xf32, #tpu.memory_space<vmem>>, vector<1x128xf32>
    tpu.vector_store %arg6[%c0_10, %c0_11], %14 {strides = array<i32>} : memref<2x128xf32, #tpu.memory_space<vmem>>, vector<1x128xf32>,
    %c1 = arith.constant 1 : index
    %c0_12 = arith.constant 0 : index
    %16 = vector.load %arg6[%c1, %c0_12] : memref<2x128xf32, #tpu.memory_space<vmem>>, vector<1x128xf32>
    %17 = arith.addf %16, %9 : vector<1x128xf32>
    %c1_13 = arith.constant 1 : index
    %c0_14 = arith.constant 0 : index
    %18 = vector.load %arg6[%c1_13, %c0_14] : memref<2x128xf32, #tpu.memory_space<vmem>>, vector<1x128xf32>
    tpu.vector_store %arg6[%c1_13, %c0_14], %17 {strides = array<i32>} : memref<2x128xf32, #tpu.memory_space<vmem>>, vector<1x128xf32>,
    %c0_i32_15 = arith.constant 0 : i32
    %19 = arith.cmpi eq, %arg1, %c0_i32_15 : i32
    %20 = arith.extui %19 : i1 to i32
    %c0_i32_16 = arith.constant 0 : i32
    %21 = arith.cmpi ne, %20, %c0_i32_16 : i32
    scf.if %21 {
      %c0_17 = arith.constant 0 : index
      %c0_18 = arith.constant 0 : index
      %22 = vector.load %arg6[%c0_17, %c0_18] : memref<2x128xf32, #tpu.memory_space<vmem>>, vector<2x128xf32>
      %c0_19 = arith.constant 0 : index
      %c0_20 = arith.constant 0 : index
      %23 = vector.load %arg5[%c0_19, %c0_20] : memref<2x128xf32, #tpu.memory_space<vmem>>, vector<2x128xf32>
      tpu.vector_store %arg5[%c0_19, %c0_20], %22 {strides = array<i32>} : memref<2x128xf32, #tpu.memory_space<vmem>>, vector<2x128xf32>,
    } else {
    }
    return
  }
  func.func @transform_0(%arg0: i32, %arg1: i32) -> (i32, i32) {
    %c1_i32 = arith.constant 1 : i32
    %0 = arith.muli %arg0, %c1_i32 : i32
    %1 = arith.addi %0, %arg1 : i32
    %c0_i32 = arith.constant 0 : i32
    %c0_i32_0 = arith.constant 0 : i32
    return %1, %c0_i32 : i32, i32
  }
  func.func @transform_1(%arg0: i32, %arg1: i32) -> (i32, i32) {
    %c0_i32 = arith.constant 0 : i32
    %c0_i32_0 = arith.constant 0 : i32
    %c0_i32_1 = arith.constant 0 : i32
    return %c0_i32, %c0_i32_0 : i32, i32
  }
  func.func @transform_2(%arg0: i32, %arg1: i32) -> (i32, i32) {
    %c1_i32 = arith.constant 1 : i32
    %0 = arith.muli %arg0, %c1_i32 : i32
    %1 = arith.addi %0, %arg1 : i32
    %c0_i32 = arith.constant 0 : i32
    %c0_i32_0 = arith.constant 0 : i32
    return %1, %c0_i32 : i32, i32
  }
  func.func @transform_3(%arg0: i32, %arg1: i32) -> (i32, i32) {
    %c0_i32 = arith.constant 0 : i32
    %c0_i32_0 = arith.constant 0 : i32
    return %c0_i32, %arg0 : i32, i32
  }
}

module attributes {stable_mosaic.version = 11 : i64} {
  func.func @_conv_kernel(%arg0: i32, %arg1: memref<8x2048xbf16, #tpu.memory_space<vmem>>, %arg2: memref<2048x128xbf16, #tpu.memory_space<vmem>>, %arg3: memref<8x128xf32, #tpu.memory_space<vmem>>) attributes {dimension_semantics = [#tpu.dimension_semantics<parallel>], iteration_bounds = array<i64: 1>, scalar_prefetch = 0 : i64, scratch_operands = 0 : i64, tpu.core_type = #tpu.core_type<tc>, window_params = [{transform_indices = @transform_0, window_bounds = array<i64: 8, 2048>}, {pipeline_mode = #tpu.pipeline_mode<synchronous>, transform_indices = @transform_1, window_bounds = array<i64: 2048, 128>}, {transform_indices = @transform_2, window_bounds = array<i64: 8, 128>}]} {
    %c0 = arith.constant 0 : index
    %c0_0 = arith.constant 0 : index
    %0 = vector.load %arg1[%c0, %c0_0] : memref<8x2048xbf16, #tpu.memory_space<vmem>>, vector<8x2048xbf16>
    %c0_1 = arith.constant 0 : index
    %c0_2 = arith.constant 0 : index
    %1 = vector.load %arg2[%c0_1, %c0_2] : memref<2048x128xbf16, #tpu.memory_space<vmem>>, vector<2048x128xbf16>
    %cst = arith.constant dense<0.000000e+00> : vector<8x128xf32>
    %2 = tpu.matmul %0, %1, %cst {dimension_numbers = #tpu.dot_dimension_numbers<[1], [0], [0], [1], [0, 0, 1, 1], [], []>} : vector<8x2048xbf16>, vector<2048x128xbf16>, vector<8x128xf32> -> vector<8x128xf32>
    %c0_3 = arith.constant 0 : index
    %c0_4 = arith.constant 0 : index
    %3 = vector.load %arg3[%c0_3, %c0_4] : memref<8x128xf32, #tpu.memory_space<vmem>>, vector<8x128xf32>
    tpu.vector_store %arg3[%c0_3, %c0_4], %2 {strides = array<i32>} : memref<8x128xf32, #tpu.memory_space<vmem>>, vector<8x128xf32>,
    return
  }
  func.func @transform_0(%arg0: i32) -> (i32, i32) {
    %c0_i32 = arith.constant 0 : i32
    %c0_i32_0 = arith.constant 0 : i32
    return %arg0, %c0_i32 : i32, i32
  }
  func.func @transform_1(%arg0: i32) -> (i32, i32) {
    %c0_i32 = arith.constant 0 : i32
    %c0_i32_0 = arith.constant 0 : i32
    %c0_i32_1 = arith.constant 0 : i32
    return %c0_i32, %c0_i32_0 : i32, i32
  }
  func.func @transform_2(%arg0: i32) -> (i32, i32) {
    %c0_i32 = arith.constant 0 : i32
    %c0_i32_0 = arith.constant 0 : i32
    return %arg0, %c0_i32 : i32, i32
  }
}

</mosaic_0001>

<llo_original>
// kernel: dcgan_discriminator_forward.6
$region0: #{dcgan_discriminator_forward.6}
  #allocation0 [shape = 'u32[]', space=smem, size = 0x4, offset = 0x4, fixed_abs, tag = 'smem constant byte address 0x4 - core index']
  #allocation1 [shape = 'u32[144,128]{1,0:T(1,128)}', space=vmem, size = 0x12000, scoped, tag = 'internal scratch']
  %s0 = inlined_call_operand.vmem [shape: bf16[512,128], index: 0, kind: input, shape index: {}]
  %s1 = inlined_call_operand.vmem [shape: bf16[128,128], index: 1, kind: input, shape index: {}]
  %s2 = inlined_call_operand.vmem [shape: bf16[512,128], index: 2, kind: output, shape index: {}]
  %s3 = sld [smem:[#allocation0]]
  $region18: #{dcgan_discriminator_forward.6} parent=0
    _
  %s5 = ssub.s32 1, %s3
  %s6 = scalar_select 0, %s5, %s3
  // Predicated region
  $region2: #{dcgan_discriminator_forward.6} parent=0 // pred_check
    _
  $region3: #{dcgan_discriminator_forward.6} parent=0 // pred_check_branch
    %8 = sbr.rel (0) target = $region5
  $region4: #{dcgan_discriminator_forward.6} parent=0 // pred_region
    _
  $region5: #{dcgan_discriminator_forward.6} parent=0 // pred_fallthru
    _
  // Predicated region
  $region6: #{dcgan_discriminator_forward.6} parent=0 // pred_check
    _
  $region7: #{dcgan_discriminator_forward.6} parent=0 // pred_check_branch
    %10 = sbr.rel (0) target = $region9
  $region8: #{dcgan_discriminator_forward.6} parent=0 // pred_region
    _
  $region9: #{dcgan_discriminator_forward.6} parent=0 // pred_fallthru
    _
  %v12 = vld [vmem:[%s0] sm:$0xf]
  %v13 = vld [vmem:[%s0 + $0x4] sm:$0xf]
  %v14 = vld [vmem:[%s0 + $0x8] sm:$0xf]
  %v15 = vld [vmem:[%s0 + $0xc] sm:$0xf]
  %v16 = vld [vmem:[%s0 + $0x10] sm:$0xf]
  %v17 = vld [vmem:[%s0 + $0x14] sm:$0xf]
  %v18 = vld [vmem:[%s0 + $0x18] sm:$0xf]
  %v19 = vld [vmem:[%s0 + $0x1c] sm:$0xf]
  %v20 = vld [vmem:[%s0 + $0x20] sm:$0xf]
  %v21 = vld [vmem:[%s0 + $0x24] sm:$0xf]
  %v22 = vld [vmem:[%s0 + $0x28] sm:$0xf]
  %v23 = vld [vmem:[%s0 + $0x2c] sm:$0xf]
  %v24 = vld [vmem:[%s0 + $0x30] sm:$0xf]
  %v25 = vld [vmem:[%s0 + $0x34] sm:$0xf]
  %v26 = vld [vmem:[%s0 + $0x38] sm:$0xf]
  %v27 = vld [vmem:[%s0 + $0x3c] sm:$0xf]
  %v28 = vld [vmem:[%s0 + $0x40] sm:$0xf]
  %v29 = vld [vmem:[%s0 + $0x44] sm:$0xf]
  %v30 = vld [vmem:[%s0 + $0x48] sm:$0xf]
  %v31 = vld [vmem:[%s0 + $0x4c] sm:$0xf]
  %v32 = vld [vmem:[%s0 + $0x50] sm:$0xf]
  %v33 = vld [vmem:[%s0 + $0x54] sm:$0xf]
  %v34 = vld [vmem:[%s0 + $0x58] sm:$0xf]
  %v35 = vld [vmem:[%s0 + $0x5c] sm:$0xf]
  %v36 = vld [vmem:[%s0 + $0x60] sm:$0xf]
  %v37 = vld [vmem:[%s0 + $0x64] sm:$0xf]
  %v38 = vld [vmem:[%s0 + $0x68] sm:$0xf]
  %v39 = vld [vmem:[%s0 + $0x6c] sm:$0xf]
  %v40 = vld [vmem:[%s0 + $0x70] sm:$0xf]
  %v41 = vld [vmem:[%s0 + $0x74] sm:$0xf]
  %v42 = vld [vmem:[%s0 + $0x78] sm:$0xf]
  %v43 = vld [vmem:[%s0 + $0x7c] sm:$0xf]
  %v44 = vld [vmem:[%s0 + $0x80] sm:$0xf]
  %v45 = vld [vmem:[%s0 + $0x84] sm:$0xf]
  %v46 = vld [vmem:[%s0 + $0x88] sm:$0xf]
  %v47 = vld [vmem:[%s0 + $0x8c] sm:$0xf]
  %v48 = vld [vmem:[%s0 + $0x90] sm:$0xf]
  %v49 = vld [vmem:[%s0 + $0x94] sm:$0xf]
  %v50 = vld [vmem:[%s0 + $0x98] sm:$0xf]
  %v51 = vld [vmem:[%s0 + $0x9c] sm:$0xf]
  %v52 = vld [vmem:[%s0 + $0xa0] sm:$0xf]
  %v53 = vld [vmem:[%s0 + $0xa4] sm:$0xf]
  %v54 = vld [vmem:[%s0 + $0xa8] sm:$0xf]
  %v55 = vld [vmem:[%s0 + $0xac] sm:$0xf]
  %v56 = vld [vmem:[%s0 + $0xb0] sm:$0xf]
  %v57 = vld [vmem:[%s0 + $0xb4] sm:$0xf]
  %v58 = vld [vmem:[%s0 + $0xb8] sm:$0xf]
  %v59 = vld [vmem:[%s0 + $0xbc] sm:$0xf]
  %v60 = vld [vmem:[%s0 + $0xc0] sm:$0xf]
  %v61 = vld [vmem:[%s0 + $0xc4] sm:$0xf]
  %v62 = vld [vmem:[%s0 + $0xc8] sm:$0xf]
  %v63 = vld [vmem:[%s0 + $0xcc] sm:$0xf]
  %v64 = vld [vmem:[%s0 + $0xd0] sm:$0xf]
  %v65 = vld [vmem:[%s0 + $0xd4] sm:$0xf]
  %v66 = vld [vmem:[%s0 + $0xd8] sm:$0xf]
  %v67 = vld [vmem:[%s0 + $0xdc] sm:$0xf]
  %v68 = vld [vmem:[%s0 + $0xe0] sm:$0xf]
  %v69 = vld [vmem:[%s0 + $0xe4] sm:$0xf]
  %v70 = vld [vmem:[%s0 + $0xe8] sm:$0xf]
  %v71 = vld [vmem:[%s0 + $0xec] sm:$0xf]
  %v72 = vld [vmem:[%s0 + $0xf0] sm:$0xf]
  %v73 = vld [vmem:[%s0 + $0xf4] sm:$0xf]
  %v74 = vld [vmem:[%s0 + $0xf8] sm:$0xf]
  %v75 = vld [vmem:[%s0 + $0xfc] sm:$0xf]
  %v76 = vld [vmem:[%s1] sm:$0xf]
  %v77 = vld [vmem:[%s1 + $0x4] sm:$0xf]
  %v78 = vld [vmem:[%s1 + $0x8] sm:$0xf]
  %v79 = vld [vmem:[%s1 + $0xc] sm:$0xf]
  %v80 = vld [vmem:[%s1 + $0x10] sm:$0xf]
  %v81 = vld [vmem:[%s1 + $0x14] sm:$0xf]
  %v82 = vld [vmem:[%s1 + $0x18] sm:$0xf]
  %v83 = vld [vmem:[%s1 + $0x1c] sm:$0xf]
  %v84 = vld [vmem:[%s1 + $0x20] sm:$0xf]
  %v85 = vld [vmem:[%s1 + $0x24] sm:$0xf]
  %v86 = vld [vmem:[%s1 + $0x28] sm:$0xf]
  %v87 = vld [vmem:[%s1 + $0x2c] sm:$0xf]
  %v88 = vld [vmem:[%s1 + $0x30] sm:$0xf]
  %v89 = vld [vmem:[%s1 + $0x34] sm:$0xf]
  %v90 = vld [vmem:[%s1 + $0x38] sm:$0xf]
  %v91 = vld [vmem:[%s1 + $0x3c] sm:$0xf]
  %v156 = vunpack.c.l.b16 %v12
  %v157 = vunpack.c.l.b16 %v13
  %v158 = vunpack.c.l.b16 %v14
  %v159 = vunpack.c.l.b16 %v15
  %v160 = vunpack.c.l.b16 %v16
  %v161 = vunpack.c.l.b16 %v17
  %v162 = vunpack.c.l.b16 %v18
  %v163 = vunpack.c.l.b16 %v19
  %v164 = vunpack.c.l.b16 %v20
  %v165 = vunpack.c.l.b16 %v21
  %v166 = vunpack.c.l.b16 %v22
  %v167 = vunpack.c.l.b16 %v23
  %v168 = vunpack.c.l.b16 %v24
  %v169 = vunpack.c.l.b16 %v25
  %v170 = vunpack.c.l.b16 %v26
  %v171 = vunpack.c.l.b16 %v27
  %v172 = vunpack.c.l.b16 %v28
  %v173 = vunpack.c.l.b16 %v29
  %v174 = vunpack.c.l.b16 %v30
  %v175 = vunpack.c.l.b16 %v31
  %v176 = vunpack.c.l.b16 %v32
  %v177 = vunpack.c.l.b16 %v33
  %v178 = vunpack.c.l.b16 %v34
  %v179 = vunpack.c.l.b16 %v35
  %v180 = vunpack.c.l.b16 %v36
  %v181 = vunpack.c.l.b16 %v37
  %v182 = vunpack.c.l.b16 %v38
  %v183 = vunpack.c.l.b16 %v39
  %v184 = vunpack.c.l.b16 %v40
  %v185 = vunpack.c.l.b16 %v41
  %v186 = vunpack.c.l.b16 %v42
  %v187 = vunpack.c.l.b16 %v43
  %v188 = vunpack.c.l.b16 %v44
  %v189 = vunpack.c.l.b16 %v45
  %v190 = vunpack.c.l.b16 %v46
  %v191 = vunpack.c.l.b16 %v47
  %v192 = vunpack.c.l.b16 %v48
  %v193 = vunpack.c.l.b16 %v49
  %v194 = vunpack.c.l.b16 %v50
  %v195 = vunpack.c.l.b16 %v51
  %v196 = vunpack.c.l.b16 %v52
  %v197 = vunpack.c.l.b16 %v53
  %v198 = vunpack.c.l.b16 %v54
  %v199 = vunpack.c.l.b16 %v55
  %v200 = vunpack.c.l.b16 %v56
  %v201 = vunpack.c.l.b16 %v57
  %v202 = vunpack.c.l.b16 %v58
  %v203 = vunpack.c.l.b16 %v59
  %v204 = vunpack.c.l.b16 %v60
  %v205 = vunpack.c.l.b16 %v61
  %v206 = vunpack.c.l.b16 %v62
  %v207 = vunpack.c.l.b16 %v63
  %v208 = vunpack.c.l.b16 %v64
  %v209 = vunpack.c.l.b16 %v65
  %v210 = vunpack.c.l.b16 %v66
  %v211 = vunpack.c.l.b16 %v67
  %v212 = vunpack.c.l.b16 %v68
  %v213 = vunpack.c.l.b16 %v69
  %v214 = vunpack.c.l.b16 %v70
  %v215 = vunpack.c.l.b16 %v71
  %v216 = vunpack.c.l.b16 %v72
  %v217 = vunpack.c.l.b16 %v73
  %v218 = vunpack.c.l.b16 %v74
  %v219 = vunpack.c.l.b16 %v75
  %v220 = vpack.c.b16 %v157, %v156
  %v221 = vpack.c.b16 %v159, %v158
  %v222 = vpack.c.b16 %v161, %v160
  %v223 = vpack.c.b16 %v163, %v162
  %v224 = vpack.c.b16 %v165, %v164
  %v225 = vpack.c.b16 %v167, %v166
  %v226 = vpack.c.b16 %v169, %v168
  %v227 = vpack.c.b16 %v171, %v170
  %v228 = vpack.c.b16 %v173, %v172
  %v229 = vpack.c.b16 %v175, %v174
  %v230 = vpack.c.b16 %v177, %v176
  %v231 = vpack.c.b16 %v179, %v178
  %v232 = vpack.c.b16 %v181, %v180
  %v233 = vpack.c.b16 %v183, %v182
  %v234 = vpack.c.b16 %v185, %v184
  %v235 = vpack.c.b16 %v187, %v186
  %v236 = vpack.c.b16 %v189, %v188
  %v237 = vpack.c.b16 %v191, %v190
  %v238 = vpack.c.b16 %v193, %v192
  %v239 = vpack.c.b16 %v195, %v194
  %v240 = vpack.c.b16 %v197, %v196
  %v241 = vpack.c.b16 %v199, %v198
  %v242 = vpack.c.b16 %v201, %v200
  %v243 = vpack.c.b16 %v203, %v202
  %v244 = vpack.c.b16 %v205, %v204
  %v245 = vpack.c.b16 %v207, %v206
  %v246 = vpack.c.b16 %v209, %v208
  %v247 = vpack.c.b16 %v211, %v210
  %v248 = vpack.c.b16 %v213, %v212
  %v249 = vpack.c.b16 %v215, %v214
  %v250 = vpack.c.b16 %v217, %v216
  %v251 = vpack.c.b16 %v219, %v218
  %v300 = vunpack.c.l.b16 %v76
  %v301 = vunpack.c.l.b16 %v77
  %v302 = vunpack.c.l.b16 %v78
  %v303 = vunpack.c.l.b16 %v79
  %v304 = vunpack.c.l.b16 %v80
  %v305 = vunpack.c.l.b16 %v81
  %v306 = vunpack.c.l.b16 %v82
  %v307 = vunpack.c.l.b16 %v83
  %v308 = vunpack.c.l.b16 %v84
  %v309 = vunpack.c.l.b16 %v85
  %v310 = vunpack.c.l.b16 %v86
  %v311 = vunpack.c.l.b16 %v87
  %v312 = vunpack.c.l.b16 %v88
  %v313 = vunpack.c.l.b16 %v89
  %v314 = vunpack.c.l.b16 %v90
  %v315 = vunpack.c.l.b16 %v91
  %v316 = vpack.c.b16 %v301, %v300
  %v317 = vpack.c.b16 %v303, %v302
  %v318 = vpack.c.b16 %v305, %v304
  %v319 = vpack.c.b16 %v307, %v306
  %v320 = vpack.c.b16 %v309, %v308
  %v321 = vpack.c.b16 %v311, %v310
  %v322 = vpack.c.b16 %v313, %v312
  %v323 = vpack.c.b16 %v315, %v314
  %332 = vmatprep.subr.bf16.mxu0 0
  %333 = vmatpush1.bf16.msra.mxu0 %v316
  %334 = vmatprep.subr.bf16.mxu0 0
  %335 = vmatpush1.bf16.msra.mxu0 %v317
  %336 = vmatprep.subr.bf16.mxu0 0
  %337 = vmatpush1.bf16.msra.mxu0 %v318
  %338 = vmatprep.subr.bf16.mxu0 0
  %339 = vmatpush1.bf16.msra.mxu0 %v319
  %340 = vmatprep.subr.bf16.mxu0 0
  %341 = vmatpush1.bf16.msra.mxu0 %v320
  %342 = vmatprep.subr.bf16.mxu0 0
  %343 = vmatpush1.bf16.msra.mxu0 %v321
  %344 = vmatprep.subr.bf16.mxu0 0
  %345 = vmatpush1.bf16.msra.mxu0 %v322
  %346 = vmatprep.subr.bf16.mxu0 0
  %347 = vmatpush1.bf16.msra.mxu0 %v323
  %348 = vmatprep.subr.bf16.mxu0 0
  %349 = vmatpush1.bf16.msra.mxu0 0
  %350 = vmatprep.subr.bf16.mxu0 0
  %351 = vmatpush1.bf16.msra.mxu0 0
  %352 = vmatprep.subr.bf16.mxu0 0
  %353 = vmatpush1.bf16.msra.mxu0 0
  %354 = vmatprep.subr.bf16.mxu0 0
  %355 = vmatpush1.bf16.msra.mxu0 0
  %356 = vmatprep.subr.bf16.mxu0 0
  %357 = vmatpush1.bf16.msra.mxu0 0
  %358 = vmatprep.subr.bf16.mxu0 0
  %359 = vmatpush1.bf16.msra.mxu0 0
  %360 = vmatprep.subr.bf16.mxu0 0
  %361 = vmatpush1.bf16.msra.mxu0 0
  %362 = vmatprep.subr.bf16.mxu0 0
  %363 = vmatpush1.bf16.msra.mxu0 0
  %364 = vmatprep.mubr.bf16.mxu0 0
  %365 = vmatmul.mubr.bf16.gmra.mrb[0].mxu0 %v220
  %v366 = vpop.f32.mrb[0].mxu0
  %v367 = vadd.f32 0.0, %v366
  %v368 = vpop.f32.mrb[0].mxu0
  %v369 = vpop.f32.mrb[0].mxu0
  %v370 = vadd.f32 0.0, %v369
  %v371 = vpop.f32.mrb[0].mxu0
  %372 = vmatprep.mubr.bf16.mxu0 0
  %373 = vmatmul.mubr.bf16.gmra.mrb[0].mxu0 %v221
  %v374 = vpop.f32.mrb[0].mxu0
  %v375 = vadd.f32 0.0, %v374
  %v376 = vpop.f32.mrb[0].mxu0
  %v377 = vpop.f32.mrb[0].mxu0
  %v378 = vadd.f32 0.0, %v377
  %v379 = vpop.f32.mrb[0].mxu0
  %380 = vmatprep.mubr.bf16.mxu0 0
  %381 = vmatmul.mubr.bf16.gmra.mrb[0].mxu0 %v222
  %v382 = vpop.f32.mrb[0].mxu0
  %v383 = vadd.f32 0.0, %v382
  %v384 = vpop.f32.mrb[0].mxu0
  %v385 = vpop.f32.mrb[0].mxu0
  %v386 = vadd.f32 0.0, %v385
  %v387 = vpop.f32.mrb[0].mxu0
  %388 = vmatprep.mubr.bf16.mxu0 0
  %389 = vmatmul.mubr.bf16.gmra.mrb[0].mxu0 %v223
  %v390 = vpop.f32.mrb[0].mxu0
  %v391 = vadd.f32 0.0, %v390
  %v392 = vpop.f32.mrb[0].mxu0
  %v393 = vpop.f32.mrb[0].mxu0
  %v394 = vadd.f32 0.0, %v393
  %v395 = vpop.f32.mrb[0].mxu0
  %396 = vmatprep.mubr.bf16.mxu0 0
  %397 = vmatmul.mubr.bf16.gmra.mrb[0].mxu0 %v224
  %v398 = vpop.f32.mrb[0].mxu0
  %v399 = vadd.f32 0.0, %v398
  %v400 = vpop.f32.mrb[0].mxu0
  %v401 = vpop.f32.mrb[0].mxu0
  %v402 = vadd.f32 0.0, %v401
  %v403 = vpop.f32.mrb[0].mxu0
  %404 = vmatprep.mubr.bf16.mxu0 0
  %405 = vmatmul.mubr.bf16.gmra.mrb[0].mxu0 %v225
  %v406 = vpop.f32.mrb[0].mxu0
  %v407 = vadd.f32 0.0, %v406
  %v408 = vpop.f32.mrb[0].mxu0
  %v409 = vpop.f32.mrb[0].mxu0
  %v410 = vadd.f32 0.0, %v409
  %v411 = vpop.f32.mrb[0].mxu0
  %412 = vmatprep.mubr.bf16.mxu0 0
  %413 = vmatmul.mubr.bf16.gmra.mrb[0].mxu0 %v226
  %v414 = vpop.f32.mrb[0].mxu0
  %v415 = vadd.f32 0.0, %v414
  %v416 = vpop.f32.mrb[0].mxu0
  %v417 = vpop.f32.mrb[0].mxu0
  %v418 = vadd.f32 0.0, %v417
  %v419 = vpop.f32.mrb[0].mxu0
  %420 = vmatprep.mubr.bf16.mxu0 0
  %421 = vmatmul.mubr.bf16.gmra.mrb[0].mxu0 %v227
  %v422 = vpop.f32.mrb[0].mxu0
  %v423 = vadd.f32 0.0, %v422
  %v424 = vpop.f32.mrb[0].mxu0
  %v425 = vpop.f32.mrb[0].mxu0
  %v426 = vadd.f32 0.0, %v425
  %v427 = vpop.f32.mrb[0].mxu0
  %428 = vmatprep.mubr.bf16.mxu0 0
  %429 = vmatmul.mubr.bf16.gmra.mrb[0].mxu0 %v228
  %v430 = vpop.f32.mrb[0].mxu0
  %v431 = vadd.f32 0.0, %v430
  %v432 = vpop.f32.mrb[0].mxu0
  %v433 = vpop.f32.mrb[0].mxu0
  %v434 = vadd.f32 0.0, %v433
  %v435 = vpop.f32.mrb[0].mxu0
  %436 = vmatprep.mubr.bf16.mxu0 0
  %437 = vmatmul.mubr.bf16.gmra.mrb[0].mxu0 %v229
  %v438 = vpop.f32.mrb[0].mxu0
  %v439 = vadd.f32 0.0, %v438
  %v440 = vpop.f32.mrb[0].mxu0
  %v441 = vpop.f32.mrb[0].mxu0
  %v442 = vadd.f32 0.0, %v441
  %v443 = vpop.f32.mrb[0].mxu0
  %444 = vmatprep.mubr.bf16.mxu0 0
  %445 = vmatmul.mubr.bf16.gmra.mrb[0].mxu0 %v230
  %v446 = vpop.f32.mrb[0].mxu0
  %v447 = vadd.f32 0.0, %v446
  %v448 = vpop.f32.mrb[0].mxu0
  %v449 = vpop.f32.mrb[0].mxu0
  %v450 = vadd.f32 0.0, %v449
  %v451 = vpop.f32.mrb[0].mxu0
  %452 = vmatprep.mubr.bf16.mxu0 0
  %453 = vmatmul.mubr.bf16.gmra.mrb[0].mxu0 %v231
  %v454 = vpop.f32.mrb[0].mxu0
  %v455 = vadd.f32 0.0, %v454
  %v456 = vpop.f32.mrb[0].mxu0
  %v457 = vpop.f32.mrb[0].mxu0
  %v458 = vadd.f32 0.0, %v457
  %v459 = vpop.f32.mrb[0].mxu0
  %460 = vmatprep.mubr.bf16.mxu0 0
  %461 = vmatmul.mubr.bf16.gmra.mrb[0].mxu0 %v232
  %v462 = vpop.f32.mrb[0].mxu0
  %v463 = vadd.f32 0.0, %v462
  %v464 = vpop.f32.mrb[0].mxu0
  %v465 = vpop.f32.mrb[0].mxu0
  %v466 = vadd.f32 0.0, %v465
  %v467 = vpop.f32.mrb[0].mxu0
  %468 = vmatprep.mubr.bf16.mxu0 0
  %469 = vmatmul.mubr.bf16.gmra.mrb[0].mxu0 %v233
  %v470 = vpop.f32.mrb[0].mxu0
  %v471 = vadd.f32 0.0, %v470
  %v472 = vpop.f32.mrb[0].mxu0
  %v473 = vpop.f32.mrb[0].mxu0
  %v474 = vadd.f32 0.0, %v473
  %v475 = vpop.f32.mrb[0].mxu0
  %476 = vmatprep.mubr.bf16.mxu0 0
  %477 = vmatmul.mubr.bf16.gmra.mrb[0].mxu0 %v234
  %v478 = vpop.f32.mrb[0].mxu0
  %v479 = vadd.f32 0.0, %v478
  %v480 = vpop.f32.mrb[0].mxu0
  %v481 = vpop.f32.mrb[0].mxu0
  %v482 = vadd.f32 0.0, %v481
  %v483 = vpop.f32.mrb[0].mxu0
  %484 = vmatprep.mubr.bf16.mxu0 0
  %485 = vmatmul.mubr.bf16.gmra.mrb[0].mxu0 %v235
  %v486 = vpop.f32.mrb[0].mxu0
  %v487 = vadd.f32 0.0, %v486
  %v488 = vpop.f32.mrb[0].mxu0
  %v489 = vpop.f32.mrb[0].mxu0
  %v490 = vadd.f32 0.0, %v489
  %v491 = vpop.f32.mrb[0].mxu0
  %492 = vmatprep.mubr.bf16.mxu0 0
  %493 = vmatmul.mubr.bf16.gmra.mrb[0].mxu0 %v236
  %v494 = vpop.f32.mrb[0].mxu0
  %v495 = vadd.f32 0.0, %v494
  %v496 = vpop.f32.mrb[0].mxu0
  %v497 = vpop.f32.mrb[0].mxu0
  %v498 = vadd.f32 0.0, %v497
  %v499 = vpop.f32.mrb[0].mxu0
  %500 = vmatprep.mubr.bf16.mxu0 0
  %501 = vmatmul.mubr.bf16.gmra.mrb[0].mxu0 %v237
  %v502 = vpop.f32.mrb[0].mxu0
  %v503 = vadd.f32 0.0, %v502
  %v504 = vpop.f32.mrb[0].mxu0
  %v505 = vpop.f32.mrb[0].mxu0
  %v506 = vadd.f32 0.0, %v505
  %v507 = vpop.f32.mrb[0].mxu0
  %508 = vmatprep.mubr.bf16.mxu0 0
  %509 = vmatmul.mubr.bf16.gmra.mrb[0].mxu0 %v238
  %v510 = vpop.f32.mrb[0].mxu0
  %v511 = vadd.f32 0.0, %v510
  %v512 = vpop.f32.mrb[0].mxu0
  %v513 = vpop.f32.mrb[0].mxu0
  %v514 = vadd.f32 0.0, %v513
  %v515 = vpop.f32.mrb[0].mxu0
  %516 = vmatprep.mubr.bf16.mxu0 0
  %517 = vmatmul.mubr.bf16.gmra.mrb[0].mxu0 %v239
  %v518 = vpop.f32.mrb[0].mxu0
  %v519 = vadd.f32 0.0, %v518
  %v520 = vpop.f32.mrb[0].mxu0
  %v521 = vpop.f32.mrb[0].mxu0
  %v522 = vadd.f32 0.0, %v521
  %v523 = vpop.f32.mrb[0].mxu0
  %524 = vmatprep.mubr.bf16.mxu0 0
  %525 = vmatmul.mubr.bf16.gmra.mrb[0].mxu0 %v240
  %v526 = vpop.f32.mrb[0].mxu0
  %v527 = vadd.f32 0.0, %v526
  %v528 = vpop.f32.mrb[0].mxu0
  %v529 = vpop.f32.mrb[0].mxu0
  %v530 = vadd.f32 0.0, %v529
  %v531 = vpop.f32.mrb[0].mxu0
  %532 = vmatprep.mubr.bf16.mxu0 0
  %533 = vmatmul.mubr.bf16.gmra.mrb[0].mxu0 %v241
  %v534 = vpop.f32.mrb[0].mxu0
  %v535 = vadd.f32 0.0, %v534
  %v536 = vpop.f32.mrb[0].mxu0
  %v537 = vpop.f32.mrb[0].mxu0
  %v538 = vadd.f32 0.0, %v537
  %v539 = vpop.f32.mrb[0].mxu0
  %540 = vmatprep.mubr.bf16.mxu0 0
  %541 = vmatmul.mubr.bf16.gmra.mrb[0].mxu0 %v242
  %v542 = vpop.f32.mrb[0].mxu0
  %v543 = vadd.f32 0.0, %v542
  %v544 = vpop.f32.mrb[0].mxu0
  %v545 = vpop.f32.mrb[0].mxu0
  %v546 = vadd.f32 0.0, %v545
  %v547 = vpop.f32.mrb[0].mxu0
  %548 = vmatprep.mubr.bf16.mxu0 0
  %549 = vmatmul.mubr.bf16.gmra.mrb[0].mxu0 %v243
  %v550 = vpop.f32.mrb[0].mxu0
  %v551 = vadd.f32 0.0, %v550
  %v552 = vpop.f32.mrb[0].mxu0
  %v553 = vpop.f32.mrb[0].mxu0
  %v554 = vadd.f32 0.0, %v553
  %v555 = vpop.f32.mrb[0].mxu0
  %556 = vmatprep.mubr.bf16.mxu0 0
  %557 = vmatmul.mubr.bf16.gmra.mrb[0].mxu0 %v244
  %v558 = vpop.f32.mrb[0].mxu0
  %v559 = vadd.f32 0.0, %v558
  %v560 = vpop.f32.mrb[0].mxu0
  %v561 = vpop.f32.mrb[0].mxu0
  %v562 = vadd.f32 0.0, %v561
  %v563 = vpop.f32.mrb[0].mxu0
  %564 = vmatprep.mubr.bf16.mxu0 0
  %565 = vmatmul.mubr.bf16.gmra.mrb[0].mxu0 %v245
  %v566 = vpop.f32.mrb[0].mxu0
  %v567 = vadd.f32 0.0, %v566
  %v568 = vpop.f32.mrb[0].mxu0
  %v569 = vpop.f32.mrb[0].mxu0
  %v570 = vadd.f32 0.0, %v569
  %v571 = vpop.f32.mrb[0].mxu0
  %572 = vmatprep.mubr.bf16.mxu0 0
  %573 = vmatmul.mubr.bf16.gmra.mrb[0].mxu0 %v246
  %v574 = vpop.f32.mrb[0].mxu0
  %v575 = vadd.f32 0.0, %v574
  %v576 = vpop.f32.mrb[0].mxu0
  %v577 = vpop.f32.mrb[0].mxu0
  %v578 = vadd.f32 0.0, %v577
  %v579 = vpop.f32.mrb[0].mxu0
  %580 = vmatprep.mubr.bf16.mxu0 0
  %581 = vmatmul.mubr.bf16.gmra.mrb[0].mxu0 %v247
  %v582 = vpop.f32.mrb[0].mxu0
  %v583 = vadd.f32 0.0, %v582
  %v584 = vpop.f32.mrb[0].mxu0
  %v585 = vpop.f32.mrb[0].mxu0
  %v586 = vadd.f32 0.0, %v585
  %v587 = vpop.f32.mrb[0].mxu0
  %588 = vmatprep.mubr.bf16.mxu0 0
  %589 = vmatmul.mubr.bf16.gmra.mrb[0].mxu0 %v248
  %v590 = vpop.f32.mrb[0].mxu0
  %v591 = vadd.f32 0.0, %v590
  %v592 = vpop.f32.mrb[0].mxu0
  %v593 = vpop.f32.mrb[0].mxu0
  %v594 = vadd.f32 0.0, %v593
  %v595 = vpop.f32.mrb[0].mxu0
  %596 = vmatprep.mubr.bf16.mxu0 0
  %597 = vmatmul.mubr.bf16.gmra.mrb[0].mxu0 %v249
  %v598 = vpop.f32.mrb[0].mxu0
  %v599 = vadd.f32 0.0, %v598
  %v600 = vpop.f32.mrb[0].mxu0
  %v601 = vpop.f32.mrb[0].mxu0
  %v602 = vadd.f32 0.0, %v601
  %v603 = vpop.f32.mrb[0].mxu0
  %604 = vmatprep.mubr.bf16.mxu0 0
  %605 = vmatmul.mubr.bf16.gmra.mrb[0].mxu0 %v250
  %v606 = vpop.f32.mrb[0].mxu0
  %v607 = vadd.f32 0.0, %v606
  %v608 = vpop.f32.mrb[0].mxu0
  %v609 = vpop.f32.mrb[0].mxu0
  %v610 = vadd.f32 0.0, %v609
  %v611 = vpop.f32.mrb[0].mxu0
  %612 = vmatprep.mubr.bf16.mxu0 0
  %613 = vmatmul.mubr.bf16.gmra.mrb[0].mxu0 %v251
  %v614 = vpop.f32.mrb[0].mxu0
  %v615 = vadd.f32 0.0, %v614
  %v616 = vpop.f32.mrb[0].mxu0
  %v617 = vpop.f32.mrb[0].mxu0
  %v618 = vadd.f32 0.0, %v617
  %v619 = vpop.f32.mrb[0].mxu0
  %620 = vdwg.mxu0
  %vm621 = vcmp.ge.f32.partialorder %v367, 0.0
  %vm622 = vcmp.ge.f32.partialorder %v370, 0.0
  %vm623 = vcmp.ge.f32.partialorder %v375, 0.0
  %vm624 = vcmp.ge.f32.partialorder %v378, 0.0
  %vm625 = vcmp.ge.f32.partialorder %v383, 0.0
  %vm626 = vcmp.ge.f32.partialorder %v386, 0.0
  %vm627 = vcmp.ge.f32.partialorder %v391, 0.0
  %vm628 = vcmp.ge.f32.partialorder %v394, 0.0
  %vm629 = vcmp.ge.f32.partialorder %v399, 0.0
  %vm630 = vcmp.ge.f32.partialorder %v402, 0.0
  %vm631 = vcmp.ge.f32.partialorder %v407, 0.0
  %vm632 = vcmp.ge.f32.partialorder %v410, 0.0
  %vm633 = vcmp.ge.f32.partialorder %v415, 0.0
  %vm634 = vcmp.ge.f32.partialorder %v418, 0.0
  %vm635 = vcmp.ge.f32.partialorder %v423, 0.0
  %vm636 = vcmp.ge.f32.partialorder %v426, 0.0
  %vm637 = vcmp.ge.f32.partialorder %v431, 0.0
  %vm638 = vcmp.ge.f32.partialorder %v434, 0.0
  %vm639 = vcmp.ge.f32.partialorder %v439, 0.0
  %vm640 = vcmp.ge.f32.partialorder %v442, 0.0
  %vm641 = vcmp.ge.f32.partialorder %v447, 0.0
  %vm642 = vcmp.ge.f32.partialorder %v450, 0.0
  %vm643 = vcmp.ge.f32.partialorder %v455, 0.0
  %vm644 = vcmp.ge.f32.partialorder %v458, 0.0
  %vm645 = vcmp.ge.f32.partialorder %v463, 0.0
  %vm646 = vcmp.ge.f32.partialorder %v466, 0.0
  %vm647 = vcmp.ge.f32.partialorder %v471, 0.0
  %vm648 = vcmp.ge.f32.partialorder %v474, 0.0
  %vm649 = vcmp.ge.f32.partialorder %v479, 0.0
  %vm650 = vcmp.ge.f32.partialorder %v482, 0.0
  %vm651 = vcmp.ge.f32.partialorder %v487, 0.0
  %vm652 = vcmp.ge.f32.partialorder %v490, 0.0
  %vm653 = vcmp.ge.f32.partialorder %v495, 0.0
  %vm654 = vcmp.ge.f32.partialorder %v498, 0.0
  %vm655 = vcmp.ge.f32.partialorder %v503, 0.0
  %vm656 = vcmp.ge.f32.partialorder %v506, 0.0
  %vm657 = vcmp.ge.f32.partialorder %v511, 0.0
  %vm658 = vcmp.ge.f32.partialorder %v514, 0.0
  %vm659 = vcmp.ge.f32.partialorder %v519, 0.0
  %vm660 = vcmp.ge.f32.partialorder %v522, 0.0
  %vm661 = vcmp.ge.f32.partialorder %v527, 0.0
  %vm662 = vcmp.ge.f32.partialorder %v530, 0.0
  %vm663 = vcmp.ge.f32.partialorder %v535, 0.0
  %vm664 = vcmp.ge.f32.partialorder %v538, 0.0
  %vm665 = vcmp.ge.f32.partialorder %v543, 0.0
  %vm666 = vcmp.ge.f32.partialorder %v546, 0.0
  %vm667 = vcmp.ge.f32.partialorder %v551, 0.0
  %vm668 = vcmp.ge.f32.partialorder %v554, 0.0
  %vm669 = vcmp.ge.f32.partialorder %v559, 0.0
  %vm670 = vcmp.ge.f32.partialorder %v562, 0.0
  %vm671 = vcmp.ge.f32.partialorder %v567, 0.0
  %vm672 = vcmp.ge.f32.partialorder %v570, 0.0
  %vm673 = vcmp.ge.f32.partialorder %v575, 0.0
  %vm674 = vcmp.ge.f32.partialorder %v578, 0.0
  %vm675 = vcmp.ge.f32.partialorder %v583, 0.0
  %vm676 = vcmp.ge.f32.partialorder %v586, 0.0
  %vm677 = vcmp.ge.f32.partialorder %v591, 0.0
  %vm678 = vcmp.ge.f32.partialorder %v594, 0.0
  %vm679 = vcmp.ge.f32.partialorder %v599, 0.0
  %vm680 = vcmp.ge.f32.partialorder %v602, 0.0
  %vm681 = vcmp.ge.f32.partialorder %v607, 0.0
  %vm682 = vcmp.ge.f32.partialorder %v610, 0.0
  %vm683 = vcmp.ge.f32.partialorder %v615, 0.0
  %vm684 = vcmp.ge.f32.partialorder %v618, 0.0
  %v685 = vmul.f32 %v367, 0.2
  %v686 = vmul.f32 %v370, 0.2
  %v687 = vmul.f32 %v375, 0.2
  %v688 = vmul.f32 %v378, 0.2
  %v689 = vmul.f32 %v383, 0.2
  %v690 = vmul.f32 %v386, 0.2
  %v691 = vmul.f32 %v391, 0.2
  %v692 = vmul.f32 %v394, 0.2
  %v693 = vmul.f32 %v399, 0.2
  %v694 = vmul.f32 %v402, 0.2
  %v695 = vmul.f32 %v407, 0.2
  %v696 = vmul.f32 %v410, 0.2
  %v697 = vmul.f32 %v415, 0.2
  %v698 = vmul.f32 %v418, 0.2
  %v699 = vmul.f32 %v423, 0.2
  %v700 = vmul.f32 %v426, 0.2
  %v701 = vmul.f32 %v431, 0.2
  %v702 = vmul.f32 %v434, 0.2
  %v703 = vmul.f32 %v439, 0.2
  %v704 = vmul.f32 %v442, 0.2
  %v705 = vmul.f32 %v447, 0.2
  %v706 = vmul.f32 %v450, 0.2
  %v707 = vmul.f32 %v455, 0.2
  %v708 = vmul.f32 %v458, 0.2
  %v709 = vmul.f32 %v463, 0.2
  %v710 = vmul.f32 %v466, 0.2
  %v711 = vmul.f32 %v471, 0.2
  %v712 = vmul.f32 %v474, 0.2
  %v713 = vmul.f32 %v479, 0.2
  %v714 = vmul.f32 %v482, 0.2
  %v715 = vmul.f32 %v487, 0.2
  %v716 = vmul.f32 %v490, 0.2
  %v717 = vmul.f32 %v495, 0.2
  %v718 = vmul.f32 %v498, 0.2
  %v719 = vmul.f32 %v503, 0.2
  %v720 = vmul.f32 %v506, 0.2
  %v721 = vmul.f32 %v511, 0.2
  %v722 = vmul.f32 %v514, 0.2
  %v723 = vmul.f32 %v519, 0.2
  %v724 = vmul.f32 %v522, 0.2
  %v725 = vmul.f32 %v527, 0.2
  %v726 = vmul.f32 %v530, 0.2
  %v727 = vmul.f32 %v535, 0.2
  %v728 = vmul.f32 %v538, 0.2
  %v729 = vmul.f32 %v543, 0.2
  %v730 = vmul.f32 %v546, 0.2
  %v731 = vmul.f32 %v551, 0.2
  %v732 = vmul.f32 %v554, 0.2
  %v733 = vmul.f32 %v559, 0.2
  %v734 = vmul.f32 %v562, 0.2
  %v735 = vmul.f32 %v567, 0.2
  %v736 = vmul.f32 %v570, 0.2
  %v737 = vmul.f32 %v575, 0.2
  %v738 = vmul.f32 %v578, 0.2
  %v739 = vmul.f32 %v583, 0.2
  %v740 = vmul.f32 %v586, 0.2
  %v741 = vmul.f32 %v591, 0.2
  %v742 = vmul.f32 %v594, 0.2
  %v743 = vmul.f32 %v599, 0.2
  %v744 = vmul.f32 %v602, 0.2
  %v745 = vmul.f32 %v607, 0.2
  %v746 = vmul.f32 %v610, 0.2
  %v747 = vmul.f32 %v615, 0.2
  %v748 = vmul.f32 %v618, 0.2
  %v749 = vsel %vm621, %v367, %v685
  %v750 = vsel %vm622, %v370, %v686
  %v751 = vsel %vm623, %v375, %v687
  %v752 = vsel %vm624, %v378, %v688
  %v753 = vsel %vm625, %v383, %v689
  %v754 = vsel %vm626, %v386, %v690
  %v755 = vsel %vm627, %v391, %v691
  %v756 = vsel %vm628, %v394, %v692
  %v757 = vsel %vm629, %v399, %v693
  %v758 = vsel %vm630, %v402, %v694
  %v759 = vsel %vm631, %v407, %v695
  %v760 = vsel %vm632, %v410, %v696
  %v761 = vsel %vm633, %v415, %v697
  %v762 = vsel %vm634, %v418, %v698
  %v763 = vsel %vm635, %v423, %v699
  %v764 = vsel %vm636, %v426, %v700
  %v765 = vsel %vm637, %v431, %v701
  %v766 = vsel %vm638, %v434, %v702
  %v767 = vsel %vm639, %v439, %v703
  %v768 = vsel %vm640, %v442, %v704
  %v769 = vsel %vm641, %v447, %v705
  %v770 = vsel %vm642, %v450, %v706
  %v771 = vsel %vm643, %v455, %v707
  %v772 = vsel %vm644, %v458, %v708
  %v773 = vsel %vm645, %v463, %v709
  %v774 = vsel %vm646, %v466, %v710
  %v775 = vsel %vm647, %v471, %v711
  %v776 = vsel %vm648, %v474, %v712
  %v777 = vsel %vm649, %v479, %v713
  %v778 = vsel %vm650, %v482, %v714
  %v779 = vsel %vm651, %v487, %v715
  %v780 = vsel %vm652, %v490, %v716
  %v781 = vsel %vm653, %v495, %v717
  %v782 = vsel %vm654, %v498, %v718
  %v783 = vsel %vm655, %v503, %v719
  %v784 = vsel %vm656, %v506, %v720
  %v785 = vsel %vm657, %v511, %v721
  %v786 = vsel %vm658, %v514, %v722
  %v787 = vsel %vm659, %v519, %v723
  %v788 = vsel %vm660, %v522, %v724
  %v789 = vsel %vm661, %v527, %v725
  %v790 = vsel %vm662, %v530, %v726
  %v791 = vsel %vm663, %v535, %v727
  %v792 = vsel %vm664, %v538, %v728
  %v793 = vsel %vm665, %v543, %v729
  %v794 = vsel %vm666, %v546, %v730
  %v795 = vsel %vm667, %v551, %v731
  %v796 = vsel %vm668, %v554, %v732
  %v797 = vsel %vm669, %v559, %v733
  %v798 = vsel %vm670, %v562, %v734
  %v799 = vsel %vm671, %v567, %v735
  %v800 = vsel %vm672, %v570, %v736
  %v801 = vsel %vm673, %v575, %v737
  %v802 = vsel %vm674, %v578, %v738
  %v803 = vsel %vm675, %v583, %v739
  %v804 = vsel %vm676, %v586, %v740
  %v805 = vsel %vm677, %v591, %v741
  %v806 = vsel %vm678, %v594, %v742
  %v807 = vsel %vm679, %v599, %v743
  %v808 = vsel %vm680, %v602, %v744
  %v809 = vsel %vm681, %v607, %v745
  %v810 = vsel %vm682, %v610, %v746
  %v811 = vsel %vm683, %v615, %v747
  %v812 = vsel %vm684, %v618, %v748
  %v813 = vpack.c.bf16 %v750, %v749
  %v814 = vpack.c.bf16 %v752, %v751
  %v815 = vpack.c.bf16 %v754, %v753
  %v816 = vpack.c.bf16 %v756, %v755
  %v817 = vpack.c.bf16 %v758, %v757
  %v818 = vpack.c.bf16 %v760, %v759
  %v819 = vpack.c.bf16 %v762, %v761
  %v820 = vpack.c.bf16 %v764, %v763
  %v821 = vpack.c.bf16 %v766, %v765
  %v822 = vpack.c.bf16 %v768, %v767
  %v823 = vpack.c.bf16 %v770, %v769
  %v824 = vpack.c.bf16 %v772, %v771
  %v825 = vpack.c.bf16 %v774, %v773
  %v826 = vpack.c.bf16 %v776, %v775
  %v827 = vpack.c.bf16 %v778, %v777
  %v828 = vpack.c.bf16 %v780, %v779
  %v829 = vpack.c.bf16 %v782, %v781
  %v830 = vpack.c.bf16 %v784, %v783
  %v831 = vpack.c.bf16 %v786, %v785
  %v832 = vpack.c.bf16 %v788, %v787
  %v833 = vpack.c.bf16 %v790, %v789
  %v834 = vpack.c.bf16 %v792, %v791
  %v835 = vpack.c.bf16 %v794, %v793
  %v836 = vpack.c.bf16 %v796, %v795
  %v837 = vpack.c.bf16 %v798, %v797
  %v838 = vpack.c.bf16 %v800, %v799
  %v839 = vpack.c.bf16 %v802, %v801
  %v840 = vpack.c.bf16 %v804, %v803
  %v841 = vpack.c.bf16 %v806, %v805
  %v842 = vpack.c.bf16 %v808, %v807
  %v843 = vpack.c.bf16 %v810, %v809
  %v844 = vpack.c.bf16 %v812, %v811
  %v877 = vunpack.c.l.b16 %v813
  %v878 = vunpack.c.h.b16 %v813
  %v879 = vunpack.c.l.b16 %v814
  %v880 = vunpack.c.h.b16 %v814
  %v881 = vunpack.c.l.b16 %v815
  %v882 = vunpack.c.h.b16 %v815
  %v883 = vunpack.c.l.b16 %v816
  %v884 = vunpack.c.h.b16 %v816
  %v885 = vunpack.c.l.b16 %v817
  %v886 = vunpack.c.h.b16 %v817
  %v887 = vunpack.c.l.b16 %v818
  %v888 = vunpack.c.h.b16 %v818
  %v889 = vunpack.c.l.b16 %v819
  %v890 = vunpack.c.h.b16 %v819
  %v891 = vunpack.c.l.b16 %v820
  %v892 = vunpack.c.h.b16 %v820
  %v893 = vunpack.c.l.b16 %v821
  %v894 = vunpack.c.h.b16 %v821
  %v895 = vunpack.c.l.b16 %v822
  %v896 = vunpack.c.h.b16 %v822
  %v897 = vunpack.c.l.b16 %v823
  %v898 = vunpack.c.h.b16 %v823
  %v899 = vunpack.c.l.b16 %v824
  %v900 = vunpack.c.h.b16 %v824
  %v901 = vunpack.c.l.b16 %v825
  %v902 = vunpack.c.h.b16 %v825
  %v903 = vunpack.c.l.b16 %v826
  %v904 = vunpack.c.h.b16 %v826
  %v905 = vunpack.c.l.b16 %v827
  %v906 = vunpack.c.h.b16 %v827
  %v907 = vunpack.c.l.b16 %v828
  %v908 = vunpack.c.h.b16 %v828
  %v909 = vunpack.c.l.b16 %v829
  %v910 = vunpack.c.h.b16 %v829
  %v911 = vunpack.c.l.b16 %v830
  %v912 = vunpack.c.h.b16 %v830
  %v913 = vunpack.c.l.b16 %v831
  %v914 = vunpack.c.h.b16 %v831
  %v915 = vunpack.c.l.b16 %v832
  %v916 = vunpack.c.h.b16 %v832
  %v917 = vunpack.c.l.b16 %v833
  %v918 = vunpack.c.h.b16 %v833
  %v919 = vunpack.c.l.b16 %v834
  %v920 = vunpack.c.h.b16 %v834
  %v921 = vunpack.c.l.b16 %v835
  %v922 = vunpack.c.h.b16 %v835
  %v923 = vunpack.c.l.b16 %v836
  %v924 = vunpack.c.h.b16 %v836
  %v925 = vunpack.c.l.b16 %v837
  %v926 = vunpack.c.h.b16 %v837
  %v927 = vunpack.c.l.b16 %v838
  %v928 = vunpack.c.h.b16 %v838
  %v929 = vunpack.c.l.b16 %v839
  %v930 = vunpack.c.h.b16 %v839
  %v931 = vunpack.c.l.b16 %v840
  %v932 = vunpack.c.h.b16 %v840
  %v933 = vunpack.c.l.b16 %v841
  %v934 = vunpack.c.h.b16 %v841
  %v935 = vunpack.c.l.b16 %v842
  %v936 = vunpack.c.h.b16 %v842
  %v937 = vunpack.c.l.b16 %v843
  %v938 = vunpack.c.h.b16 %v843
  %v939 = vunpack.c.l.b16 %v844
  %v940 = vunpack.c.h.b16 %v844
  %v941 = vpack.c.b16 %v877, %v877
  %v942 = vpack.c.b16 %v878, %v878
  %v943 = vpack.c.b16 %v879, %v879
  %v944 = vpack.c.b16 %v880, %v880
  %v945 = vpack.c.b16 %v881, %v881
  %v946 = vpack.c.b16 %v882, %v882
  %v947 = vpack.c.b16 %v883, %v883
  %v948 = vpack.c.b16 %v884, %v884
  %v949 = vpack.c.b16 %v885, %v885
  %v950 = vpack.c.b16 %v886, %v886
  %v951 = vpack.c.b16 %v887, %v887
  %v952 = vpack.c.b16 %v888, %v888
  %v953 = vpack.c.b16 %v889, %v889
  %v954 = vpack.c.b16 %v890, %v890
  %v955 = vpack.c.b16 %v891, %v891
  %v956 = vpack.c.b16 %v892, %v892
  %v957 = vpack.c.b16 %v893, %v893
  %v958 = vpack.c.b16 %v894, %v894
  %v959 = vpack.c.b16 %v895, %v895
  %v960 = vpack.c.b16 %v896, %v896
  %v961 = vpack.c.b16 %v897, %v897
  %v962 = vpack.c.b16 %v898, %v898
  %v963 = vpack.c.b16 %v899, %v899
  %v964 = vpack.c.b16 %v900, %v900
  %v965 = vpack.c.b16 %v901, %v901
  %v966 = vpack.c.b16 %v902, %v902
  %v967 = vpack.c.b16 %v903, %v903
  %v968 = vpack.c.b16 %v904, %v904
  %v969 = vpack.c.b16 %v905, %v905
  %v970 = vpack.c.b16 %v906, %v906
  %v971 = vpack.c.b16 %v907, %v907
  %v972 = vpack.c.b16 %v908, %v908
  %v973 = vpack.c.b16 %v909, %v909
  %v974 = vpack.c.b16 %v910, %v910
  %v975 = vpack.c.b16 %v911, %v911
  %v976 = vpack.c.b16 %v912, %v912
  %v977 = vpack.c.b16 %v913, %v913
  %v978 = vpack.c.b16 %v914, %v914
  %v979 = vpack.c.b16 %v915, %v915
  %v980 = vpack.c.b16 %v916, %v916
  %v981 = vpack.c.b16 %v917, %v917
  %v982 = vpack.c.b16 %v918, %v918
  %v983 = vpack.c.b16 %v919, %v919
  %v984 = vpack.c.b16 %v920, %v920
  %v985 = vpack.c.b16 %v921, %v921
  %v986 = vpack.c.b16 %v922, %v922
  %v987 = vpack.c.b16 %v923, %v923
  %v988 = vpack.c.b16 %v924, %v924
  %v989 = vpack.c.b16 %v925, %v925
  %v990 = vpack.c.b16 %v926, %v926
  %v991 = vpack.c.b16 %v927, %v927
  %v992 = vpack.c.b16 %v928, %v928
  %v993 = vpack.c.b16 %v929, %v929
  %v994 = vpack.c.b16 %v930, %v930
  %v995 = vpack.c.b16 %v931, %v931
  %v996 = vpack.c.b16 %v932, %v932
  %v997 = vpack.c.b16 %v933, %v933
  %v998 = vpack.c.b16 %v934, %v934
  %v999 = vpack.c.b16 %v935, %v935
  %v1000 = vpack.c.b16 %v936, %v936
  %v1001 = vpack.c.b16 %v937, %v937
  %v1002 = vpack.c.b16 %v938, %v938
  %v1003 = vpack.c.b16 %v939, %v939
  %v1004 = vpack.c.b16 %v940, %v940
  %1069 = vst [vmem:[%s2] sm:$0xf] %v941
  %1070 = vst [vmem:[%s2 + $0x4] sm:$0xf] %v942
  %1071 = vst [vmem:[%s2 + $0x8] sm:$0xf] %v943
  %1072 = vst [vmem:[%s2 + $0xc] sm:$0xf] %v944
  %1073 = vst [vmem:[%s2 + $0x10] sm:$0xf] %v945
  %1074 = vst [vmem:[%s2 + $0x14] sm:$0xf] %v946
  %1075 = vst [vmem:[%s2 + $0x18] sm:$0xf] %v947
  %1076 = vst [vmem:[%s2 + $0x1c] sm:$0xf] %v948
  %1077 = vst [vmem:[%s2 + $0x20] sm:$0xf] %v949
  %1078 = vst [vmem:[%s2 + $0x24] sm:$0xf] %v950
  %1079 = vst [vmem:[%s2 + $0x28] sm:$0xf] %v951
  %1080 = vst [vmem:[%s2 + $0x2c] sm:$0xf] %v952
  %1081 = vst [vmem:[%s2 + $0x30] sm:$0xf] %v953
  %1082 = vst [vmem:[%s2 + $0x34] sm:$0xf] %v954
  %1083 = vst [vmem:[%s2 + $0x38] sm:$0xf] %v955
  %1084 = vst [vmem:[%s2 + $0x3c] sm:$0xf] %v956
  %1085 = vst [vmem:[%s2 + $0x40] sm:$0xf] %v957
  %1086 = vst [vmem:[%s2 + $0x44] sm:$0xf] %v958
  %1087 = vst [vmem:[%s2 + $0x48] sm:$0xf] %v959
  %1088 = vst [vmem:[%s2 + $0x4c] sm:$0xf] %v960
  %1089 = vst [vmem:[%s2 + $0x50] sm:$0xf] %v961
  %1090 = vst [vmem:[%s2 + $0x54] sm:$0xf] %v962
  %1091 = vst [vmem:[%s2 + $0x58] sm:$0xf] %v963
  %1092 = vst [vmem:[%s2 + $0x5c] sm:$0xf] %v964
  %1093 = vst [vmem:[%s2 + $0x60] sm:$0xf] %v965
  %1094 = vst [vmem:[%s2 + $0x64] sm:$0xf] %v966
  %1095 = vst [vmem:[%s2 + $0x68] sm:$0xf] %v967
  %1096 = vst [vmem:[%s2 + $0x6c] sm:$0xf] %v968
  %1097 = vst [vmem:[%s2 + $0x70] sm:$0xf] %v969
  %1098 = vst [vmem:[%s2 + $0x74] sm:$0xf] %v970
  %1099 = vst [vmem:[%s2 + $0x78] sm:$0xf] %v971
  %1100 = vst [vmem:[%s2 + $0x7c] sm:$0xf] %v972
  %1101 = vst [vmem:[%s2 + $0x80] sm:$0xf] %v973
  %1102 = vst [vmem:[%s2 + $0x84] sm:$0xf] %v974
  %1103 = vst [vmem:[%s2 + $0x88] sm:$0xf] %v975
  %1104 = vst [vmem:[%s2 + $0x8c] sm:$0xf] %v976
  %1105 = vst [vmem:[%s2 + $0x90] sm:$0xf] %v977
  %1106 = vst [vmem:[%s2 + $0x94] sm:$0xf] %v978
  %1107 = vst [vmem:[%s2 + $0x98] sm:$0xf] %v979
  %1108 = vst [vmem:[%s2 + $0x9c] sm:$0xf] %v980
  %1109 = vst [vmem:[%s2 + $0xa0] sm:$0xf] %v981
  %1110 = vst [vmem:[%s2 + $0xa4] sm:$0xf] %v982
  %1111 = vst [vmem:[%s2 + $0xa8] sm:$0xf] %v983
  %1112 = vst [vmem:[%s2 + $0xac] sm:$0xf] %v984
  %1113 = vst [vmem:[%s2 + $0xb0] sm:$0xf] %v985
  %1114 = vst [vmem:[%s2 + $0xb4] sm:$0xf] %v986
  %1115 = vst [vmem:[%s2 + $0xb8] sm:$0xf] %v987
  %1116 = vst [vmem:[%s2 + $0xbc] sm:$0xf] %v988
  %1117 = vst [vmem:[%s2 + $0xc0] sm:$0xf] %v989
  %1118 = vst [vmem:[%s2 + $0xc4] sm:$0xf] %v990
  %1119 = vst [vmem:[%s2 + $0xc8] sm:$0xf] %v991
  %1120 = vst [vmem:[%s2 + $0xcc] sm:$0xf] %v992
  %1121 = vst [vmem:[%s2 + $0xd0] sm:$0xf] %v993
  %1122 = vst [vmem:[%s2 + $0xd4] sm:$0xf] %v994
  %1123 = vst [vmem:[%s2 + $0xd8] sm:$0xf] %v995
  %1124 = vst [vmem:[%s2 + $0xdc] sm:$0xf] %v996
  %1125 = vst [vmem:[%s2 + $0xe0] sm:$0xf] %v997
  %1126 = vst [vmem:[%s2 + $0xe4] sm:$0xf] %v998
  %1127 = vst [vmem:[%s2 + $0xe8] sm:$0xf] %v999
  %1128 = vst [vmem:[%s2 + $0xec] sm:$0xf] %v1000
  %1129 = vst [vmem:[%s2 + $0xf0] sm:$0xf] %v1001
  %1130 = vst [vmem:[%s2 + $0xf4] sm:$0xf] %v1002
  %1131 = vst [vmem:[%s2 + $0xf8] sm:$0xf] %v1003
  %1132 = vst [vmem:[%s2 + $0xfc] sm:$0xf] %v1004
  // Predicated region
  $region10: #{dcgan_discriminator_forward.6} parent=0 // pred_check
    _
  $region11: #{dcgan_discriminator_forward.6} parent=0 // pred_check_branch
    %1134 = sbr.rel (0) target = $region13
  $region12: #{dcgan_discriminator_forward.6} parent=0 // pred_region
    _
  $region13: #{dcgan_discriminator_forward.6} parent=0 // pred_fallthru
    _
  // Predicated region
  $region14: #{dcgan_discriminator_forward.6} parent=0 // pred_check
    _
  $region15: #{dcgan_discriminator_forward.6} parent=0 // pred_check_branch
    %1136 = sbr.rel (0) target = $region17
  $region16: #{dcgan_discriminator_forward.6} parent=0 // pred_region
    _
  $region17: #{dcgan_discriminator_forward.6} parent=0 // pred_fallthru
    _

// kernel: dcgan_discriminator_forward.8
$region0: #{dcgan_discriminator_forward.8}
  #allocation0 [shape = 'u32[]', space=smem, size = 0x4, offset = 0x4, fixed_abs, tag = 'smem constant byte address 0x4 - core index']
  #allocation1 [shape = 'u32[144,128]{1,0:T(1,128)}', space=vmem, size = 0x12000, scoped, tag = 'internal scratch']
  %s0 = inlined_call_operand.vmem [shape: bf16[128,128], index: 0, kind: input, shape index: {}]
  %s1 = inlined_call_operand.vmem [shape: f32[2,128], index: 1, kind: input, shape index: {}]
  %s2 = inlined_call_operand.vmem [shape: f32[1,128], index: 2, kind: input, shape index: {}]
  %s3 = inlined_call_operand.vmem [shape: f32[1,128], index: 3, kind: input, shape index: {}]
  %s4 = inlined_call_operand.vmem [shape: bf16[128,128], index: 4, kind: output, shape index: {}]
  %s5 = sld [smem:[#allocation0]]
  $region26: #{dcgan_discriminator_forward.8} parent=0
    _
  %s7 = ssub.s32 1, %s5
  %s8 = scalar_select 0, %s7, %s5
  // Predicated region
  $region2: #{dcgan_discriminator_forward.8} parent=0 // pred_check
    _
  $region3: #{dcgan_discriminator_forward.8} parent=0 // pred_check_branch
    %10 = sbr.rel (0) target = $region5
  $region4: #{dcgan_discriminator_forward.8} parent=0 // pred_region
    _
  $region5: #{dcgan_discriminator_forward.8} parent=0 // pred_fallthru
    _
  // Predicated region
  $region6: #{dcgan_discriminator_forward.8} parent=0 // pred_check
    _
  $region7: #{dcgan_discriminator_forward.8} parent=0 // pred_check_branch
    %12 = sbr.rel (0) target = $region9
  $region8: #{dcgan_discriminator_forward.8} parent=0 // pred_region
    _
  $region9: #{dcgan_discriminator_forward.8} parent=0 // pred_fallthru
    _
  // Predicated region
  $region10: #{dcgan_discriminator_forward.8} parent=0 // pred_check
    _
  $region11: #{dcgan_discriminator_forward.8} parent=0 // pred_check_branch
    %14 = sbr.rel (0) target = $region13
  $region12: #{dcgan_discriminator_forward.8} parent=0 // pred_region
    _
  $region13: #{dcgan_discriminator_forward.8} parent=0 // pred_fallthru
    _
  // Predicated region
  $region14: #{dcgan_discriminator_forward.8} parent=0 // pred_check
    _
  $region15: #{dcgan_discriminator_forward.8} parent=0 // pred_check_branch
    %16 = sbr.rel (0) target = $region17
  $region16: #{dcgan_discriminator_forward.8} parent=0 // pred_region
    _
  $region17: #{dcgan_discriminator_forward.8} parent=0 // pred_fallthru
    _
  %v17 = vld [vmem:[%s0] sm:$0xf]
  %v18 = vld [vmem:[%s0 + $0x4] sm:$0xf]
  %v19 = vld [vmem:[%s0 + $0x8] sm:$0xf]
  %v20 = vld [vmem:[%s0 + $0xc] sm:$0xf]
  %v21 = vld [vmem:[%s0 + $0x10] sm:$0xf]
  %v22 = vld [vmem:[%s0 + $0x14] sm:$0xf]
  %v23 = vld [vmem:[%s0 + $0x18] sm:$0xf]
  %v24 = vld [vmem:[%s0 + $0x1c] sm:$0xf]
  %v25 = vld [vmem:[%s0 + $0x20] sm:$0xf]
  %v26 = vld [vmem:[%s0 + $0x24] sm:$0xf]
  %v27 = vld [vmem:[%s0 + $0x28] sm:$0xf]
  %v28 = vld [vmem:[%s0 + $0x2c] sm:$0xf]
  %v29 = vld [vmem:[%s0 + $0x30] sm:$0xf]
  %v30 = vld [vmem:[%s0 + $0x34] sm:$0xf]
  %v31 = vld [vmem:[%s0 + $0x38] sm:$0xf]
  %v32 = vld [vmem:[%s0 + $0x3c] sm:$0xf]
  %v33 = vunpack.c.l.bf16 %v17
  %v34 = vunpack.c.l.bf16 %v18
  %v35 = vunpack.c.l.bf16 %v19
  %v36 = vunpack.c.l.bf16 %v20
  %v37 = vunpack.c.l.bf16 %v21
  %v38 = vunpack.c.l.bf16 %v22
  %v39 = vunpack.c.l.bf16 %v23
  %v40 = vunpack.c.l.bf16 %v24
  %v41 = vunpack.c.l.bf16 %v25
  %v42 = vunpack.c.l.bf16 %v26
  %v43 = vunpack.c.l.bf16 %v27
  %v44 = vunpack.c.l.bf16 %v28
  %v45 = vunpack.c.l.bf16 %v29
  %v46 = vunpack.c.l.bf16 %v30
  %v47 = vunpack.c.l.bf16 %v31
  %v48 = vunpack.c.l.bf16 %v32
  %v49 = vld [vmem:[%s1] sm:$0x1]
  %v50 = vmul.f32 %v49, 0.0078125
  %v51 = vld [vmem:[%s1 + $0x1] sm:$0x1]
  %v52 = vmul.f32 %v51, 0.0078125
  %v53 = vmul.f32 %v50, %v50
  %v54 = vsub.f32 %v52, %v53
  %v55 = vmax.f32 %v54, 0.0
  %v56 = vadd.f32 %v55, 1e-05
  %v57 = vrsqrt.pop %v56
  %v58 = vld [vmem:[%s2] sm:$0x1]
  %v59 = vmul.f32 %v57, %v58
  %v60 = vld [vmem:[%s3] sm:$0x1]
  %v61 = vmul.f32 %v50, %v59
  %v62 = vsub.f32 %v60, %v61
  %v63 = vlaneseq
  %v64 = vshrl.u32 %v63, 7
  %v65 = vsub.s32 0, %v64
  %v66 = vrot.slane %v59, %v65
  %v67 = vmul.f32 %v33, %v66
  %v68 = vmul.f32 %v34, %v66
  %v69 = vmul.f32 %v35, %v66
  %v70 = vmul.f32 %v36, %v66
  %v71 = vmul.f32 %v37, %v66
  %v72 = vmul.f32 %v38, %v66
  %v73 = vmul.f32 %v39, %v66
  %v74 = vmul.f32 %v40, %v66
  %v75 = vmul.f32 %v41, %v66
  %v76 = vmul.f32 %v42, %v66
  %v77 = vmul.f32 %v43, %v66
  %v78 = vmul.f32 %v44, %v66
  %v79 = vmul.f32 %v45, %v66
  %v80 = vmul.f32 %v46, %v66
  %v81 = vmul.f32 %v47, %v66
  %v82 = vmul.f32 %v48, %v66
  %v84 = vlaneseq
  %v85 = vshrl.u32 %v84, 7
  %v86 = vsub.s32 0, %v85
  %v87 = vrot.slane %v62, %v86
  %v89 = vadd.f32 %v67, %v87
  %v90 = vadd.f32 %v68, %v87
  %v91 = vadd.f32 %v69, %v87
  %v92 = vadd.f32 %v70, %v87
  %v93 = vadd.f32 %v71, %v87
  %v94 = vadd.f32 %v72, %v87
  %v95 = vadd.f32 %v73, %v87
  %v96 = vadd.f32 %v74, %v87
  %v97 = vadd.f32 %v75, %v87
  %v98 = vadd.f32 %v76, %v87
  %v99 = vadd.f32 %v77, %v87
  %v100 = vadd.f32 %v78, %v87
  %v101 = vadd.f32 %v79, %v87
  %v102 = vadd.f32 %v80, %v87
  %v103 = vadd.f32 %v81, %v87
  %v104 = vadd.f32 %v82, %v87
  %vm105 = vcmp.ge.f32.partialorder %v89, 0.0
  %vm106 = vcmp.ge.f32.partialorder %v90, 0.0
  %vm107 = vcmp.ge.f32.partialorder %v91, 0.0
  %vm108 = vcmp.ge.f32.partialorder %v92, 0.0
  %vm109 = vcmp.ge.f32.partialorder %v93, 0.0
  %vm110 = vcmp.ge.f32.partialorder %v94, 0.0
  %vm111 = vcmp.ge.f32.partialorder %v95, 0.0
  %vm112 = vcmp.ge.f32.partialorder %v96, 0.0
  %vm113 = vcmp.ge.f32.partialorder %v97, 0.0
  %vm114 = vcmp.ge.f32.partialorder %v98, 0.0
  %vm115 = vcmp.ge.f32.partialorder %v99, 0.0
  %vm116 = vcmp.ge.f32.partialorder %v100, 0.0
  %vm117 = vcmp.ge.f32.partialorder %v101, 0.0
  %vm118 = vcmp.ge.f32.partialorder %v102, 0.0
  %vm119 = vcmp.ge.f32.partialorder %v103, 0.0
  %vm120 = vcmp.ge.f32.partialorder %v104, 0.0
  %v121 = vmul.f32 %v89, 0.2
  %v122 = vmul.f32 %v90, 0.2
  %v123 = vmul.f32 %v91, 0.2
  %v124 = vmul.f32 %v92, 0.2
  %v125 = vmul.f32 %v93, 0.2
  %v126 = vmul.f32 %v94, 0.2
  %v127 = vmul.f32 %v95, 0.2
  %v128 = vmul.f32 %v96, 0.2
  %v129 = vmul.f32 %v97, 0.2
  %v130 = vmul.f32 %v98, 0.2
  %v131 = vmul.f32 %v99, 0.2
  %v132 = vmul.f32 %v100, 0.2
  %v133 = vmul.f32 %v101, 0.2
  %v134 = vmul.f32 %v102, 0.2
  %v135 = vmul.f32 %v103, 0.2
  %v136 = vmul.f32 %v104, 0.2
  %v137 = vsel %vm105, %v89, %v121
  %v138 = vsel %vm106, %v90, %v122
  %v139 = vsel %vm107, %v91, %v123
  %v140 = vsel %vm108, %v92, %v124
  %v141 = vsel %vm109, %v93, %v125
  %v142 = vsel %vm110, %v94, %v126
  %v143 = vsel %vm111, %v95, %v127
  %v144 = vsel %vm112, %v96, %v128
  %v145 = vsel %vm113, %v97, %v129
  %v146 = vsel %vm114, %v98, %v130
  %v147 = vsel %vm115, %v99, %v131
  %v148 = vsel %vm116, %v100, %v132
  %v149 = vsel %vm117, %v101, %v133
  %v150 = vsel %vm118, %v102, %v134
  %v151 = vsel %vm119, %v103, %v135
  %v152 = vsel %vm120, %v104, %v136
  %v153 = vpack.c.bf16 %v138, %v137
  %v154 = vpack.c.bf16 %v140, %v139
  %v155 = vpack.c.bf16 %v142, %v141
  %v156 = vpack.c.bf16 %v144, %v143
  %v157 = vpack.c.bf16 %v146, %v145
  %v158 = vpack.c.bf16 %v148, %v147
  %v159 = vpack.c.bf16 %v150, %v149
  %v160 = vpack.c.bf16 %v152, %v151
  %v169 = vunpack.c.l.b16 %v153
  %v170 = vunpack.c.h.b16 %v153
  %v171 = vunpack.c.l.b16 %v154
  %v172 = vunpack.c.h.b16 %v154
  %v173 = vunpack.c.l.b16 %v155
  %v174 = vunpack.c.h.b16 %v155
  %v175 = vunpack.c.l.b16 %v156
  %v176 = vunpack.c.h.b16 %v156
  %v177 = vunpack.c.l.b16 %v157
  %v178 = vunpack.c.h.b16 %v157
  %v179 = vunpack.c.l.b16 %v158
  %v180 = vunpack.c.h.b16 %v158
  %v181 = vunpack.c.l.b16 %v159
  %v182 = vunpack.c.h.b16 %v159
  %v183 = vunpack.c.l.b16 %v160
  %v184 = vunpack.c.h.b16 %v160
  %v185 = vpack.c.b16 %v169, %v169
  %v186 = vpack.c.b16 %v170, %v170
  %v187 = vpack.c.b16 %v171, %v171
  %v188 = vpack.c.b16 %v172, %v172
  %v189 = vpack.c.b16 %v173, %v173
  %v190 = vpack.c.b16 %v174, %v174
  %v191 = vpack.c.b16 %v175, %v175
  %v192 = vpack.c.b16 %v176, %v176
  %v193 = vpack.c.b16 %v177, %v177
  %v194 = vpack.c.b16 %v178, %v178
  %v195 = vpack.c.b16 %v179, %v179
  %v196 = vpack.c.b16 %v180, %v180
  %v197 = vpack.c.b16 %v181, %v181
  %v198 = vpack.c.b16 %v182, %v182
  %v199 = vpack.c.b16 %v183, %v183
  %v200 = vpack.c.b16 %v184, %v184
  %217 = vst [vmem:[%s4] sm:$0xf] %v185
  %218 = vst [vmem:[%s4 + $0x4] sm:$0xf] %v186
  %219 = vst [vmem:[%s4 + $0x8] sm:$0xf] %v187
  %220 = vst [vmem:[%s4 + $0xc] sm:$0xf] %v188
  %221 = vst [vmem:[%s4 + $0x10] sm:$0xf] %v189
  %222 = vst [vmem:[%s4 + $0x14] sm:$0xf] %v190
  %223 = vst [vmem:[%s4 + $0x18] sm:$0xf] %v191
  %224 = vst [vmem:[%s4 + $0x1c] sm:$0xf] %v192
  %225 = vst [vmem:[%s4 + $0x20] sm:$0xf] %v193
  %226 = vst [vmem:[%s4 + $0x24] sm:$0xf] %v194
  %227 = vst [vmem:[%s4 + $0x28] sm:$0xf] %v195
  %228 = vst [vmem:[%s4 + $0x2c] sm:$0xf] %v196
  %229 = vst [vmem:[%s4 + $0x30] sm:$0xf] %v197
  %230 = vst [vmem:[%s4 + $0x34] sm:$0xf] %v198
  %231 = vst [vmem:[%s4 + $0x38] sm:$0xf] %v199
  %232 = vst [vmem:[%s4 + $0x3c] sm:$0xf] %v200
  // Predicated region
  $region18: #{dcgan_discriminator_forward.8} parent=0 // pred_check
    _
  $region19: #{dcgan_discriminator_forward.8} parent=0 // pred_check_branch
    %234 = sbr.rel (0) target = $region21
  $region20: #{dcgan_discriminator_forward.8} parent=0 // pred_region
    _
  $region21: #{dcgan_discriminator_forward.8} parent=0 // pred_fallthru
    _
  // Predicated region
  $region22: #{dcgan_discriminator_forward.8} parent=0 // pred_check
    _
  $region23: #{dcgan_discriminator_forward.8} parent=0 // pred_check_branch
    %236 = sbr.rel (0) target = $region25
  $region24: #{dcgan_discriminator_forward.8} parent=0 // pred_region
    _
  $region25: #{dcgan_discriminator_forward.8} parent=0 // pred_fallthru
    _

// kernel: dcgan_discriminator_forward.7
$region0: #{dcgan_discriminator_forward.7}
  #allocation0 [shape = 'u32[]', space=smem, size = 0x4, offset = 0x4, fixed_abs, tag = 'smem constant byte address 0x4 - core index']
  #allocation1 [shape = 'u32[144,128]{1,0:T(1,128)}', space=vmem, size = 0x12000, scoped, tag = 'internal scratch']
  #allocation2 [shape = 'f32[2,128]{1,0:T(2,128)}', space=vmem, size = 0x400, scoped, tag = 'scratch operand']
  %s0 = inlined_call_operand.vmem [shape: bf16[128,2048], index: 0, kind: input, shape index: {}]
  %s1 = inlined_call_operand.vmem [shape: bf16[2048,128], index: 1, kind: input, shape index: {}]
  %s2 = inlined_call_operand.vmem [shape: bf16[128,128], index: 2, kind: output, shape index: {0}]
  %s3 = inlined_call_operand.vmem [shape: f32[2,256], index: 3, kind: output, shape index: {1}]
  %4 = xla_tuple %s2, %s3
  %s5 = sld [smem:[#allocation0]]
  $region57: #{dcgan_discriminator_forward.7} parent=0
    _
  %s7 = ssub.s32 1, %s5
  %s8 = scalar_select 0, %s7, %s5
  loop: start=0, step=1, limit=4
  $region2: #{dcgan_discriminator_forward.7} parent=0 // loop_pre_header
    _
  $region3: #{dcgan_discriminator_forward.7} parent=0 // loop_header
    %s10 = sphi 0, %s14
    %p11 = scmp.ge.s32.totalorder %s10, 4
    %s17 = sphi 0, %s29
    %s18 = sphi 0, %s25
    %s19 = sphi 0, %s17
    %s20 = sphi 0, %s18
    %s21 = sphi 0, %s19
    %s22 = sphi 0, %s20
    %s34 = sphi 0, %s36
    %s37 = sphi 0, %s34
    %s38 = sphi 0, %s37
    %s54 = sphi 0, %s38
    %s58 = sphi 0, %s58
    %s60 = sphi 0, %s58
    %s61 = sphi 0, %s60
    %s75 = sphi 0, %s61
    %s83 = sphi 0, %s85
    %s86 = sphi 0, %s83
    %s87 = sphi 0, %s86
    %s103 = sphi 0, %s87
    %s109 = sphi 0, %s111
    %s112 = sphi 0, %s109
    %s113 = sphi 0, %s112
    %s129 = sphi 0, %s113
  $region4: #{dcgan_discriminator_forward.7} parent=0 // loop_header_branch
    %13 = sbr.rel (%p11) target = $region8
  $region5: #{dcgan_discriminator_forward.7} parent=0 // loop_body
    %s15 = ssub.s32 %s10, 1
    %s16 = ssub.s32 %s10, 2
    %s23 = sadd.s32 1, %s18
    %p24 = scmp.ge.s32.totalorder %s23, 1
    %s25 = scalar_select %p24, 0, %s23
    %s26 = sadd.s32 1, %s17
    %s27 = scalar_select %p24, %s26, %s17
    %p28 = scmp.ge.s32.totalorder %s27, 2
    %s29 = scalar_select %p28, 0, %s27
    %s30 = sadd.s32 %s17, %s18
    %s31 = sadd.s32 %s29, %s25
    %s32 = ssub.s32 %s30, %s31
    %p33 = scmp.eq.s32.totalorder %s32, 0
    %s35 = sadd.s32 %s34, 1
    %s36 = scalar_select %p33, %s34, %s35
    %p39 = pneg %p33
    %p40 = scmp.eq.s32.totalorder %s10, 1
    %p41 = por %p39, %p40
    %p42 = scmp.ne.s32.totalorder %s34, %s37
    %p43 = scmp.eq.s32.totalorder %s10, 0
    %p44 = por %p42, %p43
    %p45 = scmp.ne.s32.totalorder %s34, %s37
    %p46 = scmp.eq.s32.totalorder %s15, 1
    %p47 = por %p45, %p46
    %p48 = scmp.ne.s32.totalorder %s37, %s38
    %p49 = scmp.eq.s32.totalorder %s15, 0
    %p50 = por %p48, %p49
    %p51 = scmp.ne.s32.totalorder %s37, %s38
    %p52 = scmp.eq.s32.totalorder %s16, 1
    %p53 = por %p51, %p52
    %p55 = scmp.ne.s32.totalorder %s38, %s54
    %p56 = scmp.eq.s32.totalorder %s16, 0
    %p57 = por %p55, %p56
    %s59 = sadd.s32 %s58, 1
    %p62 = scmp.eq.s32.totalorder %s10, 1
    %p63 = scmp.ne.s32.totalorder %s58, %s60
    %p64 = scmp.eq.s32.totalorder %s10, 0
    %p65 = por %p63, %p64
    %p66 = scmp.ne.s32.totalorder %s58, %s60
    %p67 = scmp.eq.s32.totalorder %s15, 1
    %p68 = por %p66, %p67
    %p69 = scmp.ne.s32.totalorder %s60, %s61
    %p70 = scmp.eq.s32.totalorder %s15, 0
    %p71 = por %p69, %p70
    %p72 = scmp.ne.s32.totalorder %s60, %s61
    %p73 = scmp.eq.s32.totalorder %s16, 1
    %p74 = por %p72, %p73
    %p76 = scmp.ne.s32.totalorder %s61, %s75
    %p77 = scmp.eq.s32.totalorder %s16, 0
    %p78 = por %p76, %p77
    %s79 = sadd.s32 %s17, %s18
    %s80 = sadd.s32 %s29, %s25
    %s81 = ssub.s32 %s79, %s80
    %p82 = scmp.eq.s32.totalorder %s81, 0
    %s84 = sadd.s32 %s83, 1
    %s85 = scalar_select %p82, %s83, %s84
    %p88 = pneg %p82
    %p89 = scmp.eq.s32.totalorder %s10, 1
    %p90 = por %p88, %p89
    %p91 = scmp.ne.s32.totalorder %s83, %s86
    %p92 = scmp.eq.s32.totalorder %s10, 0
    %p93 = por %p91, %p92
    %p94 = scmp.ne.s32.totalorder %s83, %s86
    %p95 = scmp.eq.s32.totalorder %s15, 1
    %p96 = por %p94, %p95
    %p97 = scmp.ne.s32.totalorder %s86, %s87
    %p98 = scmp.eq.s32.totalorder %s15, 0
    %p99 = por %p97, %p98
    %p100 = scmp.ne.s32.totalorder %s86, %s87
    %p101 = scmp.eq.s32.totalorder %s16, 1
    %p102 = por %p100, %p101
    %p104 = scmp.ne.s32.totalorder %s87, %s103
    %p105 = scmp.eq.s32.totalorder %s16, 0
    %p106 = por %p104, %p105
    %s107 = ssub.s32 %s17, %s29
    %p108 = scmp.eq.s32.totalorder %s107, 0
    %s110 = sadd.s32 %s109, 1
    %s111 = scalar_select %p108, %s109, %s110
    %p114 = pneg %p108
    %p115 = scmp.eq.s32.totalorder %s10, 1
    %p116 = por %p114, %p115
    %p117 = scmp.ne.s32.totalorder %s109, %s112
    %p118 = scmp.eq.s32.totalorder %s10, 0
    %p119 = por %p117, %p118
    %p120 = scmp.ne.s32.totalorder %s109, %s112
    %p121 = scmp.eq.s32.totalorder %s15, 1
    %p122 = por %p120, %p121
    %p123 = scmp.ne.s32.totalorder %s112, %s113
    %p124 = scmp.eq.s32.totalorder %s15, 0
    %p125 = por %p123, %p124
    %p126 = scmp.ne.s32.totalorder %s112, %s113
    %p127 = scmp.eq.s32.totalorder %s16, 1
    %p128 = por %p126, %p127
    %p130 = scmp.ne.s32.totalorder %s113, %s129
    %p131 = scmp.eq.s32.totalorder %s16, 0
    %p132 = por %p130, %p131
    %p133 = scmp.le.s32.totalorder 1, %s10
    %p134 = scmp.lt.s32.totalorder %s10, 3
    %p135 = pnand %p133, %p134
    %p136 = pneg %p135
    // Predicated region
    $region9: #{dcgan_discriminator_forward.7} parent=5 // pred_check
      _
    $region10: #{dcgan_discriminator_forward.7} parent=5 // pred_check_branch
      %138 = sbr.rel (%p135) target = $region12
    $region11: #{dcgan_discriminator_forward.7} parent=5 // pred_region
      %s139 = ssub.s32 %s10, 1
      // Predicated region
      $region13: #{dcgan_discriminator_forward.7} parent=11 // pred_check
        %p140 = pneg %p71
      $region14: #{dcgan_discriminator_forward.7} parent=11 // pred_check_branch
        %142 = sbr.rel (%p140) target = $region16
      $region15: #{dcgan_discriminator_forward.7} parent=11 // pred_region
        _
      $region16: #{dcgan_discriminator_forward.7} parent=11 // pred_fallthru
        _
    $region12: #{dcgan_discriminator_forward.7} parent=5 // pred_fallthru
      _
    %p143 = scmp.lt.s32.totalorder %s10, 2
    // Predicated region
    $region17: #{dcgan_discriminator_forward.7} parent=5 // pred_check
      %p144 = pneg %p143
    $region18: #{dcgan_discriminator_forward.7} parent=5 // pred_check_branch
      %146 = sbr.rel (%p144) target = $region20
    $region19: #{dcgan_discriminator_forward.7} parent=5 // pred_region
      // Predicated region
      $region21: #{dcgan_discriminator_forward.7} parent=19 // pred_check
        %p147 = pneg %p44
      $region22: #{dcgan_discriminator_forward.7} parent=19 // pred_check_branch
        %149 = sbr.rel (%p147) target = $region24
      $region23: #{dcgan_discriminator_forward.7} parent=19 // pred_region
        %s150 = sadd.s32 %s17, %s18
        %s151 = smul.u32 8, %s150
        %p152 = scmp.lt.s32.totalorder %s151, 15
        %s153 = scalar_select %p152, %s151, 15
        %s154 = smul.addr %s153, 16
        %s155 = smul.addr %s154, 4
        %s156 = scalar_lea.vmem %s0, %s155
        %s157 = sadd.s32 %s17, %s18
        %s158 = smul.u32 8, %s157
      $region24: #{dcgan_discriminator_forward.7} parent=19 // pred_fallthru
        _
    $region20: #{dcgan_discriminator_forward.7} parent=5 // pred_fallthru
      _
    %p159 = scmp.le.s32.totalorder 1, %s10
    %p160 = scmp.lt.s32.totalorder %s10, 3
    %p161 = pnand %p159, %p160
    %p162 = pneg %p161
    // Predicated region
    $region25: #{dcgan_discriminator_forward.7} parent=5 // pred_check
      _
    $region26: #{dcgan_discriminator_forward.7} parent=5 // pred_check_branch
      %164 = sbr.rel (%p161) target = $region28
    $region27: #{dcgan_discriminator_forward.7} parent=5 // pred_region
      %s165 = ssub.s32 %s10, 1
      %s166 = sadd.s32 %s19, %s20
      %s167 = smul.u32 8, %s166
      %p168 = scmp.lt.s32.totalorder %s167, 15
      %s169 = scalar_select %p168, %s167, 15
      %s170 = smul.addr %s169, 16
      %s171 = smul.addr %s170, 4
      %s172 = scalar_lea.vmem %s0, %s171
      %p173 = pneg %p50
      %p174 = pneg %p47
      %p175 = pneg %p71
      %p176 = pneg %p68
      %p177 = pneg %p99
      %p178 = pneg %p96
      %s179 = sadd.s32 %s19, %s20
      %s180 = smul.u32 8, %s179
      %p181 = scmp.lt.s32.totalorder %s180, 15
      %s182 = scalar_select %p181, %s180, 15
      %s183 = smul.addr %s182, 4
      %s184 = scalar_lea.vmem %s2, %s183
      %p185 = pneg %p125
      %p186 = pneg %p122
      %p187 = scmp.lt.s32.totalorder %s19, 1
      %s188 = scalar_select %p187, %s19, 1
      %s189 = smul.addr %s188, 2
      %s190 = scalar_lea.vmem %s3, %s189
      %s191 = sadd.s32 %s19, %s20
      %s192 = smul.u32 8, %s191
      %p193 = scmp.lt.s32.totalorder %s192, 15
      %s194 = scalar_select %p193, %s192, 15
      %s195 = smul.addr %s194, 16
      %s196 = smul.addr %s195, 4
      %s197 = scalar_lea.vmem %s0, %s196
      %s198 = sadd.s32 %s19, %s20
      %s199 = smul.u32 8, %s198
      %s200 = sadd.s32 %s19, %s20
      %s201 = smul.u32 8, %s200
      %p202 = scmp.lt.s32.totalorder %s201, 15
      %s203 = scalar_select %p202, %s201, 15
      %s204 = smul.addr %s203, 4
      %s205 = scalar_lea.vmem %s2, %s204
      %s206 = sadd.s32 %s19, %s20
      %s207 = smul.u32 8, %s206
      %p208 = scmp.lt.s32.totalorder %s19, 1
      %s209 = scalar_select %p208, %s19, 1
      %s210 = smul.addr %s209, 2
      %s211 = scalar_lea.vmem %s3, %s210
      %v213 = vld [vmem:[%s197] sm:$0xff]
      %v214 = vld [vmem:[%s197 + $0x8] sm:$0xff]
      %v215 = vld [vmem:[%s197 + $0x10] sm:$0xff]
      %v216 = vld [vmem:[%s197 + $0x18] sm:$0xff]
      %v217 = vld [vmem:[%s197 + $0x20] sm:$0xff]
      %v218 = vld [vmem:[%s197 + $0x28] sm:$0xff]
      %v219 = vld [vmem:[%s197 + $0x30] sm:$0xff]
      %v220 = vld [vmem:[%s197 + $0x38] sm:$0xff]
      %v221 = vld [vmem:[%s197 + $0x40] sm:$0xff]
      %v222 = vld [vmem:[%s197 + $0x48] sm:$0xff]
      %v223 = vld [vmem:[%s197 + $0x50] sm:$0xff]
      %v224 = vld [vmem:[%s197 + $0x58] sm:$0xff]
      %v225 = vld [vmem:[%s197 + $0x60] sm:$0xff]
      %v226 = vld [vmem:[%s197 + $0x68] sm:$0xff]
      %v227 = vld [vmem:[%s197 + $0x70] sm:$0xff]
      %v228 = vld [vmem:[%s197 + $0x78] sm:$0xff]
      %v229 = vld [vmem:[%s197 + $0x80] sm:$0xff]
      %v230 = vld [vmem:[%s197 + $0x88] sm:$0xff]
      %v231 = vld [vmem:[%s197 + $0x90] sm:$0xff]
      %v232 = vld [vmem:[%s197 + $0x98] sm:$0xff]
      %v233 = vld [vmem:[%s197 + $0xa0] sm:$0xff]
      %v234 = vld [vmem:[%s197 + $0xa8] sm:$0xff]
      %v235 = vld [vmem:[%s197 + $0xb0] sm:$0xff]
      %v236 = vld [vmem:[%s197 + $0xb8] sm:$0xff]
      %v237 = vld [vmem:[%s197 + $0xc0] sm:$0xff]
      %v238 = vld [vmem:[%s197 + $0xc8] sm:$0xff]
      %v239 = vld [vmem:[%s197 + $0xd0] sm:$0xff]
      %v240 = vld [vmem:[%s197 + $0xd8] sm:$0xff]
      %v241 = vld [vmem:[%s197 + $0xe0] sm:$0xff]
      %v242 = vld [vmem:[%s197 + $0xe8] sm:$0xff]
      %v243 = vld [vmem:[%s197 + $0xf0] sm:$0xff]
      %v244 = vld [vmem:[%s197 + $0xf8] sm:$0xff]
      %v245 = vld [vmem:[%s197 + $0x100] sm:$0xff]
      %v246 = vld [vmem:[%s197 + $0x108] sm:$0xff]
      %v247 = vld [vmem:[%s197 + $0x110] sm:$0xff]
      %v248 = vld [vmem:[%s197 + $0x118] sm:$0xff]
      %v249 = vld [vmem:[%s197 + $0x120] sm:$0xff]
      %v250 = vld [vmem:[%s197 + $0x128] sm:$0xff]
      %v251 = vld [vmem:[%s197 + $0x130] sm:$0xff]
      %v252 = vld [vmem:[%s197 + $0x138] sm:$0xff]
      %v253 = vld [vmem:[%s197 + $0x140] sm:$0xff]
      %v254 = vld [vmem:[%s197 + $0x148] sm:$0xff]
      %v255 = vld [vmem:[%s197 + $0x150] sm:$0xff]
      %v256 = vld [vmem:[%s197 + $0x158] sm:$0xff]
      %v257 = vld [vmem:[%s197 + $0x160] sm:$0xff]
      %v258 = vld [vmem:[%s197 + $0x168] sm:$0xff]
      %v259 = vld [vmem:[%s197 + $0x170] sm:$0xff]
      %v260 = vld [vmem:[%s197 + $0x178] sm:$0xff]
      %v261 = vld [vmem:[%s197 + $0x180] sm:$0xff]
      %v262 = vld [vmem:[%s197 + $0x188] sm:$0xff]
      %v263 = vld [vmem:[%s197 + $0x190] sm:$0xff]
      %v264 = vld [vmem:[%s197 + $0x198] sm:$0xff]
      %v265 = vld [vmem:[%s197 + $0x1a0] sm:$0xff]
      %v266 = vld [vmem:[%s197 + $0x1a8] sm:$0xff]
      %v267 = vld [vmem:[%s197 + $0x1b0] sm:$0xff]
      %v268 = vld [vmem:[%s197 + $0x1b8] sm:$0xff]
      %v269 = vld [vmem:[%s197 + $0x1c0] sm:$0xff]
      %v270 = vld [vmem:[%s197 + $0x1c8] sm:$0xff]
      %v271 = vld [vmem:[%s197 + $0x1d0] sm:$0xff]
      %v272 = vld [vmem:[%s197 + $0x1d8] sm:$0xff]
      %v273 = vld [vmem:[%s197 + $0x1e0] sm:$0xff]
      %v274 = vld [vmem:[%s197 + $0x1e8] sm:$0xff]
      %v275 = vld [vmem:[%s197 + $0x1f0] sm:$0xff]
      %v276 = vld [vmem:[%s197 + $0x1f8] sm:$0xff]
      %v277 = vld [vmem:[%s1] sm:$0xf]
      %v278 = vld [vmem:[%s1 + $0x4] sm:$0xf]
      %v279 = vld [vmem:[%s1 + $0x8] sm:$0xf]
      %v280 = vld [vmem:[%s1 + $0xc] sm:$0xf]
      %v281 = vld [vmem:[%s1 + $0x10] sm:$0xf]
      %v282 = vld [vmem:[%s1 + $0x14] sm:$0xf]
      %v283 = vld [vmem:[%s1 + $0x18] sm:$0xf]
      %v284 = vld [vmem:[%s1 + $0x1c] sm:$0xf]
      %v285 = vld [vmem:[%s1 + $0x20] sm:$0xf]
      %v286 = vld [vmem:[%s1 + $0x24] sm:$0xf]
      %v287 = vld [vmem:[%s1 + $0x28] sm:$0xf]
      %v288 = vld [vmem:[%s1 + $0x2c] sm:$0xf]
      %v289 = vld [vmem:[%s1 + $0x30] sm:$0xf]
      %v290 = vld [vmem:[%s1 + $0x34] sm:$0xf]
      %v291 = vld [vmem:[%s1 + $0x38] sm:$0xf]
      %v292 = vld [vmem:[%s1 + $0x3c] sm:$0xf]
      %v293 = vld [vmem:[%s1 + $0x40] sm:$0xf]
      %v294 = vld [vmem:[%s1 + $0x44] sm:$0xf]
      %v295 = vld [vmem:[%s1 + $0x48] sm:$0xf]
      %v296 = vld [vmem:[%s1 + $0x4c] sm:$0xf]
      %v297 = vld [vmem:[%s1 + $0x50] sm:$0xf]
      %v298 = vld [vmem:[%s1 + $0x54] sm:$0xf]
      %v299 = vld [vmem:[%s1 + $0x58] sm:$0xf]
      %v300 = vld [vmem:[%s1 + $0x5c] sm:$0xf]
      %v301 = vld [vmem:[%s1 + $0x60] sm:$0xf]
      %v302 = vld [vmem:[%s1 + $0x64] sm:$0xf]
      %v303 = vld [vmem:[%s1 + $0x68] sm:$0xf]
      %v304 = vld [vmem:[%s1 + $0x6c] sm:$0xf]
      %v305 = vld [vmem:[%s1 + $0x70] sm:$0xf]
      %v306 = vld [vmem:[%s1 + $0x74] sm:$0xf]
      %v307 = vld [vmem:[%s1 + $0x78] sm:$0xf]
      %v308 = vld [vmem:[%s1 + $0x7c] sm:$0xf]
      %v309 = vld [vmem:[%s1 + $0x80] sm:$0xf]
      %v310 = vld [vmem:[%s1 + $0x84] sm:$0xf]
      %v311 = vld [vmem:[%s1 + $0x88] sm:$0xf]
      %v312 = vld [vmem:[%s1 + $0x8c] sm:$0xf]
      %v313 = vld [vmem:[%s1 + $0x90] sm:$0xf]
      %v314 = vld [vmem:[%s1 + $0x94] sm:$0xf]
      %v315 = vld [vmem:[%s1 + $0x98] sm:$0xf]
      %v316 = vld [vmem:[%s1 + $0x9c] sm:$0xf]
      %v317 = vld [vmem:[%s1 + $0xa0] sm:$0xf]
      %v318 = vld [vmem:[%s1 + $0xa4] sm:$0xf]
      %v319 = vld [vmem:[%s1 + $0xa8] sm:$0xf]
      %v320 = vld [vmem:[%s1 + $0xac] sm:$0xf]
      %v321 = vld [vmem:[%s1 + $0xb0] sm:$0xf]
      %v322 = vld [vmem:[%s1 + $0xb4] sm:$0xf]
      %v323 = vld [vmem:[%s1 + $0xb8] sm:$0xf]
      %v324 = vld [vmem:[%s1 + $0xbc] sm:$0xf]
      %v325 = vld [vmem:[%s1 + $0xc0] sm:$0xf]
      %v326 = vld [vmem:[%s1 + $0xc4] sm:$0xf]
      %v327 = vld [vmem:[%s1 + $0xc8] sm:$0xf]
      %v328 = vld [vmem:[%s1 + $0xcc] sm:$0xf]
      %v329 = vld [vmem:[%s1 + $0xd0] sm:$0xf]
      %v330 = vld [vmem:[%s1 + $0xd4] sm:$0xf]
      %v331 = vld [vmem:[%s1 + $0xd8] sm:$0xf]
      %v332 = vld [vmem:[%s1 + $0xdc] sm:$0xf]
      %v333 = vld [vmem:[%s1 + $0xe0] sm:$0xf]
      %v334 = vld [vmem:[%s1 + $0xe4] sm:$0xf]
      %v335 = vld [vmem:[%s1 + $0xe8] sm:$0xf]
      %v336 = vld [vmem:[%s1 + $0xec] sm:$0xf]
      %v337 = vld [vmem:[%s1 + $0xf0] sm:$0xf]
      %v338 = vld [vmem:[%s1 + $0xf4] sm:$0xf]
      %v339 = vld [vmem:[%s1 + $0xf8] sm:$0xf]
      %v340 = vld [vmem:[%s1 + $0xfc] sm:$0xf]
      %v341 = vld [vmem:[%s1 + $0x100] sm:$0xf]
      %v342 = vld [vmem:[%s1 + $0x104] sm:$0xf]
      %v343 = vld [vmem:[%s1 + $0x108] sm:$0xf]
      %v344 = vld [vmem:[%s1 + $0x10c] sm:$0xf]
      %v345 = vld [vmem:[%s1 + $0x110] sm:$0xf]
      %v346 = vld [vmem:[%s1 + $0x114] sm:$0xf]
      %v347 = vld [vmem:[%s1 + $0x118] sm:$0xf]
      %v348 = vld [vmem:[%s1 + $0x11c] sm:$0xf]
      %v349 = vld [vmem:[%s1 + $0x120] sm:$0xf]
      %v350 = vld [vmem:[%s1 + $0x124] sm:$0xf]
      %v351 = vld [vmem:[%s1 + $0x128] sm:$0xf]
      %v352 = vld [vmem:[%s1 + $0x12c] sm:$0xf]
      %v353 = vld [vmem:[%s1 + $0x130] sm:$0xf]
      %v354 = vld [vmem:[%s1 + $0x134] sm:$0xf]
      %v355 = vld [vmem:[%s1 + $0x138] sm:$0xf]
      %v356 = vld [vmem:[%s1 + $0x13c] sm:$0xf]
      %v357 = vld [vmem:[%s1 + $0x140] sm:$0xf]
      %v358 = vld [vmem:[%s1 + $0x144] sm:$0xf]
      %v359 = vld [vmem:[%s1 + $0x148] sm:$0xf]
      %v360 = vld [vmem:[%s1 + $0x14c] sm:$0xf]
      %v361 = vld [vmem:[%s1 + $0x150] sm:$0xf]
      %v362 = vld [vmem:[%s1 + $0x154] sm:$0xf]
      %v363 = vld [vmem:[%s1 + $0x158] sm:$0xf]
      %v364 = vld [vmem:[%s1 + $0x15c] sm:$0xf]
      %v365 = vld [vmem:[%s1 + $0x160] sm:$0xf]
      %v366 = vld [vmem:[%s1 + $0x164] sm:$0xf]
      %v367 = vld [vmem:[%s1 + $0x168] sm:$0xf]
      %v368 = vld [vmem:[%s1 + $0x16c] sm:$0xf]
      %v369 = vld [vmem:[%s1 + $0x170] sm:$0xf]
      %v370 = vld [vmem:[%s1 + $0x174] sm:$0xf]
      %v371 = vld [vmem:[%s1 + $0x178] sm:$0xf]
      %v372 = vld [vmem:[%s1 + $0x17c] sm:$0xf]
      %v373 = vld [vmem:[%s1 + $0x180] sm:$0xf]
      %v374 = vld [vmem:[%s1 + $0x184] sm:$0xf]
      %v375 = vld [vmem:[%s1 + $0x188] sm:$0xf]
      %v376 = vld [vmem:[%s1 + $0x18c] sm:$0xf]
      %v377 = vld [vmem:[%s1 + $0x190] sm:$0xf]
      %v378 = vld [vmem:[%s1 + $0x194] sm:$0xf]
      %v379 = vld [vmem:[%s1 + $0x198] sm:$0xf]
      %v380 = vld [vmem:[%s1 + $0x19c] sm:$0xf]
      %v381 = vld [vmem:[%s1 + $0x1a0] sm:$0xf]
      %v382 = vld [vmem:[%s1 + $0x1a4] sm:$0xf]
      %v383 = vld [vmem:[%s1 + $0x1a8] sm:$0xf]
      %v384 = vld [vmem:[%s1 + $0x1ac] sm:$0xf]
      %v385 = vld [vmem:[%s1 + $0x1b0] sm:$0xf]
      %v386 = vld [vmem:[%s1 + $0x1b4] sm:$0xf]
      %v387 = vld [vmem:[%s1 + $0x1b8] sm:$0xf]
      %v388 = vld [vmem:[%s1 + $0x1bc] sm:$0xf]
      %v389 = vld [vmem:[%s1 + $0x1c0] sm:$0xf]
      %v390 = vld [vmem:[%s1 + $0x1c4] sm:$0xf]
      %v391 = vld [vmem:[%s1 + $0x1c8] sm:$0xf]
      %v392 = vld [vmem:[%s1 + $0x1cc] sm:$0xf]
      %v393 = vld [vmem:[%s1 + $0x1d0] sm:$0xf]
      %v394 = vld [vmem:[%s1 + $0x1d4] sm:$0xf]
      %v395 = vld [vmem:[%s1 + $0x1d8] sm:$0xf]
      %v396 = vld [vmem:[%s1 + $0x1dc] sm:$0xf]
      %v397 = vld [vmem:[%s1 + $0x1e0] sm:$0xf]
      %v398 = vld [vmem:[%s1 + $0x1e4] sm:$0xf]
      %v399 = vld [vmem:[%s1 + $0x1e8] sm:$0xf]
      %v400 = vld [vmem:[%s1 + $0x1ec] sm:$0xf]
      %v401 = vld [vmem:[%s1 + $0x1f0] sm:$0xf]
      %v402 = vld [vmem:[%s1 + $0x1f4] sm:$0xf]
      %v403 = vld [vmem:[%s1 + $0x1f8] sm:$0xf]
      %v404 = vld [vmem:[%s1 + $0x1fc] sm:$0xf]
      %v405 = vld [vmem:[%s1 + $0x200] sm:$0xf]
      %v406 = vld [vmem:[%s1 + $0x204] sm:$0xf]
      %v407 = vld [vmem:[%s1 + $0x208] sm:$0xf]
      %v408 = vld [vmem:[%s1 + $0x20c] sm:$0xf]
      %v409 = vld [vmem:[%s1 + $0x210] sm:$0xf]
      %v410 = vld [vmem:[%s1 + $0x214] sm:$0xf]
      %v411 = vld [vmem:[%s1 + $0x218] sm:$0xf]
      %v412 = vld [vmem:[%s1 + $0x21c] sm:$0xf]
      %v413 = vld [vmem:[%s1 + $0x220] sm:$0xf]
      %v414 = vld [vmem:[%s1 + $0x224] sm:$0xf]
      %v415 = vld [vmem:[%s1 + $0x228] sm:$0xf]
      %v416 = vld [vmem:[%s1 + $0x22c] sm:$0xf]
      %v417 = vld [vmem:[%s1 + $0x230] sm:$0xf]
      %v418 = vld [vmem:[%s1 + $0x234] sm:$0xf]
      %v419 = vld [vmem:[%s1 + $0x238] sm:$0xf]
      %v420 = vld [vmem:[%s1 + $0x23c] sm:$0xf]
      %v421 = vld [vmem:[%s1 + $0x240] sm:$0xf]
      %v422 = vld [vmem:[%s1 + $0x244] sm:$0xf]
      %v423 = vld [vmem:[%s1 + $0x248] sm:$0xf]
      %v424 = vld [vmem:[%s1 + $0x24c] sm:$0xf]
      %v425 = vld [vmem:[%s1 + $0x250] sm:$0xf]
      %v426 = vld [vmem:[%s1 + $0x254] sm:$0xf]
      %v427 = vld [vmem:[%s1 + $0x258] sm:$0xf]
      %v428 = vld [vmem:[%s1 + $0x25c] sm:$0xf]
      %v429 = vld [vmem:[%s1 + $0x260] sm:$0xf]
      %v430 = vld [vmem:[%s1 + $0x264] sm:$0xf]
      %v431 = vld [vmem:[%s1 + $0x268] sm:$0xf]
      %v432 = vld [vmem:[%s1 + $0x26c] sm:$0xf]
      %v433 = vld [vmem:[%s1 + $0x270] sm:$0xf]
      %v434 = vld [vmem:[%s1 + $0x274] sm:$0xf]
      %v435 = vld [vmem:[%s1 + $0x278] sm:$0xf]
      %v436 = vld [vmem:[%s1 + $0x27c] sm:$0xf]
      %v437 = vld [vmem:[%s1 + $0x280] sm:$0xf]
      %v438 = vld [vmem:[%s1 + $0x284] sm:$0xf]
      %v439 = vld [vmem:[%s1 + $0x288] sm:$0xf]
      %v440 = vld [vmem:[%s1 + $0x28c] sm:$0xf]
      %v441 = vld [vmem:[%s1 + $0x290] sm:$0xf]
      %v442 = vld [vmem:[%s1 + $0x294] sm:$0xf]
      %v443 = vld [vmem:[%s1 + $0x298] sm:$0xf]
      %v444 = vld [vmem:[%s1 + $0x29c] sm:$0xf]
      %v445 = vld [vmem:[%s1 + $0x2a0] sm:$0xf]
      %v446 = vld [vmem:[%s1 + $0x2a4] sm:$0xf]
      %v447 = vld [vmem:[%s1 + $0x2a8] sm:$0xf]
      %v448 = vld [vmem:[%s1 + $0x2ac] sm:$0xf]
      %v449 = vld [vmem:[%s1 + $0x2b0] sm:$0xf]
      %v450 = vld [vmem:[%s1 + $0x2b4] sm:$0xf]
      %v451 = vld [vmem:[%s1 + $0x2b8] sm:$0xf]
      %v452 = vld [vmem:[%s1 + $0x2bc] sm:$0xf]
      %v453 = vld [vmem:[%s1 + $0x2c0] sm:$0xf]
      %v454 = vld [vmem:[%s1 + $0x2c4] sm:$0xf]
      %v455 = vld [vmem:[%s1 + $0x2c8] sm:$0xf]
      %v456 = vld [vmem:[%s1 + $0x2cc] sm:$0xf]
      %v457 = vld [vmem:[%s1 + $0x2d0] sm:$0xf]
      %v458 = vld [vmem:[%s1 + $0x2d4] sm:$0xf]
      %v459 = vld [vmem:[%s1 + $0x2d8] sm:$0xf]
      %v460 = vld [vmem:[%s1 + $0x2dc] sm:$0xf]
      %v461 = vld [vmem:[%s1 + $0x2e0] sm:$0xf]
      %v462 = vld [vmem:[%s1 + $0x2e4] sm:$0xf]
      %v463 = vld [vmem:[%s1 + $0x2e8] sm:$0xf]
      %v464 = vld [vmem:[%s1 + $0x2ec] sm:$0xf]
      %v465 = vld [vmem:[%s1 + $0x2f0] sm:$0xf]
      %v466 = vld [vmem:[%s1 + $0x2f4] sm:$0xf]
      %v467 = vld [vmem:[%s1 + $0x2f8] sm:$0xf]
      %v468 = vld [vmem:[%s1 + $0x2fc] sm:$0xf]
      %v469 = vld [vmem:[%s1 + $0x300] sm:$0xf]
      %v470 = vld [vmem:[%s1 + $0x304] sm:$0xf]
      %v471 = vld [vmem:[%s1 + $0x308] sm:$0xf]
      %v472 = vld [vmem:[%s1 + $0x30c] sm:$0xf]
      %v473 = vld [vmem:[%s1 + $0x310] sm:$0xf]
      %v474 = vld [vmem:[%s1 + $0x314] sm:$0xf]
      %v475 = vld [vmem:[%s1 + $0x318] sm:$0xf]
      %v476 = vld [vmem:[%s1 + $0x31c] sm:$0xf]
      %v477 = vld [vmem:[%s1 + $0x320] sm:$0xf]
      %v478 = vld [vmem:[%s1 + $0x324] sm:$0xf]
      %v479 = vld [vmem:[%s1 + $0x328] sm:$0xf]
      %v480 = vld [vmem:[%s1 + $0x32c] sm:$0xf]
      %v481 = vld [vmem:[%s1 + $0x330] sm:$0xf]
      %v482 = vld [vmem:[%s1 + $0x334] sm:$0xf]
      %v483 = vld [vmem:[%s1 + $0x338] sm:$0xf]
      %v484 = vld [vmem:[%s1 + $0x33c] sm:$0xf]
      %v485 = vld [vmem:[%s1 + $0x340] sm:$0xf]
      %v486 = vld [vmem:[%s1 + $0x344] sm:$0xf]
      %v487 = vld [vmem:[%s1 + $0x348] sm:$0xf]
      %v488 = vld [vmem:[%s1 + $0x34c] sm:$0xf]
      %v489 = vld [vmem:[%s1 + $0x350] sm:$0xf]
      %v490 = vld [vmem:[%s1 + $0x354] sm:$0xf]
      %v491 = vld [vmem:[%s1 + $0x358] sm:$0xf]
      %v492 = vld [vmem:[%s1 + $0x35c] sm:$0xf]
      %v493 = vld [vmem:[%s1 + $0x360] sm:$0xf]
      %v494 = vld [vmem:[%s1 + $0x364] sm:$0xf]
      %v495 = vld [vmem:[%s1 + $0x368] sm:$0xf]
      %v496 = vld [vmem:[%s1 + $0x36c] sm:$0xf]
      %v497 = vld [vmem:[%s1 + $0x370] sm:$0xf]
      %v498 = vld [vmem:[%s1 + $0x374] sm:$0xf]
      %v499 = vld [vmem:[%s1 + $0x378] sm:$0xf]
      %v500 = vld [vmem:[%s1 + $0x37c] sm:$0xf]
      %v501 = vld [vmem:[%s1 + $0x380] sm:$0xf]
      %v502 = vld [vmem:[%s1 + $0x384] sm:$0xf]
      %v503 = vld [vmem:[%s1 + $0x388] sm:$0xf]
      %v504 = vld [vmem:[%s1 + $0x38c] sm:$0xf]
      %v505 = vld [vmem:[%s1 + $0x390] sm:$0xf]
      %v506 = vld [vmem:[%s1 + $0x394] sm:$0xf]
      %v507 = vld [vmem:[%s1 + $0x398] sm:$0xf]
      %v508 = vld [vmem:[%s1 + $0x39c] sm:$0xf]
      %v509 = vld [vmem:[%s1 + $0x3a0] sm:$0xf]
      %v510 = vld [vmem:[%s1 + $0x3a4] sm:$0xf]
      %v511 = vld [vmem:[%s1 + $0x3a8] sm:$0xf]
      %v512 = vld [vmem:[%s1 + $0x3ac] sm:$0xf]
      %v513 = vld [vmem:[%s1 + $0x3b0] sm:$0xf]
      %v514 = vld [vmem:[%s1 + $0x3b4] sm:$0xf]
      %v515 = vld [vmem:[%s1 + $0x3b8] sm:$0xf]
      %v516 = vld [vmem:[%s1 + $0x3bc] sm:$0xf]
      %v517 = vld [vmem:[%s1 + $0x3c0] sm:$0xf]
      %v518 = vld [vmem:[%s1 + $0x3c4] sm:$0xf]
      %v519 = vld [vmem:[%s1 + $0x3c8] sm:$0xf]
      %v520 = vld [vmem:[%s1 + $0x3cc] sm:$0xf]
      %v521 = vld [vmem:[%s1 + $0x3d0] sm:$0xf]
      %v522 = vld [vmem:[%s1 + $0x3d4] sm:$0xf]
      %v523 = vld [vmem:[%s1 + $0x3d8] sm:$0xf]
      %v524 = vld [vmem:[%s1 + $0x3dc] sm:$0xf]
      %v525 = vld [vmem:[%s1 + $0x3e0] sm:$0xf]
      %v526 = vld [vmem:[%s1 + $0x3e4] sm:$0xf]
      %v527 = vld [vmem:[%s1 + $0x3e8] sm:$0xf]
      %v528 = vld [vmem:[%s1 + $0x3ec] sm:$0xf]
      %v529 = vld [vmem:[%s1 + $0x3f0] sm:$0xf]
      %v530 = vld [vmem:[%s1 + $0x3f4] sm:$0xf]
      %v531 = vld [vmem:[%s1 + $0x3f8] sm:$0xf]
      %v532 = vld [vmem:[%s1 + $0x3fc] sm:$0xf]
      %v597 = vunpack.c.l.b16 %v213
      %v598 = vunpack.c.h.b16 %v213
      %v599 = vunpack.c.l.b16 %v214
      %v600 = vunpack.c.h.b16 %v214
      %v601 = vunpack.c.l.b16 %v215
      %v602 = vunpack.c.h.b16 %v215
      %v603 = vunpack.c.l.b16 %v216
      %v604 = vunpack.c.h.b16 %v216
      %v605 = vunpack.c.l.b16 %v217
      %v606 = vunpack.c.h.b16 %v217
      %v607 = vunpack.c.l.b16 %v218
      %v608 = vunpack.c.h.b16 %v218
      %v609 = vunpack.c.l.b16 %v219
      %v610 = vunpack.c.h.b16 %v219
      %v611 = vunpack.c.l.b16 %v220
      %v612 = vunpack.c.h.b16 %v220
      %v613 = vunpack.c.l.b16 %v221
      %v614 = vunpack.c.h.b16 %v221
      %v615 = vunpack.c.l.b16 %v222
      %v616 = vunpack.c.h.b16 %v222
      %v617 = vunpack.c.l.b16 %v223
      %v618 = vunpack.c.h.b16 %v223
      %v619 = vunpack.c.l.b16 %v224
      %v620 = vunpack.c.h.b16 %v224
      %v621 = vunpack.c.l.b16 %v225
      %v622 = vunpack.c.h.b16 %v225
      %v623 = vunpack.c.l.b16 %v226
      %v624 = vunpack.c.h.b16 %v226
      %v625 = vunpack.c.l.b16 %v227
      %v626 = vunpack.c.h.b16 %v227
      %v627 = vunpack.c.l.b16 %v228
      %v628 = vunpack.c.h.b16 %v228
      %v629 = vunpack.c.l.b16 %v229
      %v630 = vunpack.c.h.b16 %v229
      %v631 = vunpack.c.l.b16 %v230
      %v632 = vunpack.c.h.b16 %v230
      %v633 = vunpack.c.l.b16 %v231
      %v634 = vunpack.c.h.b16 %v231
      %v635 = vunpack.c.l.b16 %v232
      %v636 = vunpack.c.h.b16 %v232
      %v637 = vunpack.c.l.b16 %v233
      %v638 = vunpack.c.h.b16 %v233
      %v639 = vunpack.c.l.b16 %v234
      %v640 = vunpack.c.h.b16 %v234
      %v641 = vunpack.c.l.b16 %v235
      %v642 = vunpack.c.h.b16 %v235
      %v643 = vunpack.c.l.b16 %v236
      %v644 = vunpack.c.h.b16 %v236
      %v645 = vunpack.c.l.b16 %v237
      %v646 = vunpack.c.h.b16 %v237
      %v647 = vunpack.c.l.b16 %v238
      %v648 = vunpack.c.h.b16 %v238
      %v649 = vunpack.c.l.b16 %v239
      %v650 = vunpack.c.h.b16 %v239
      %v651 = vunpack.c.l.b16 %v240
      %v652 = vunpack.c.h.b16 %v240
      %v653 = vunpack.c.l.b16 %v241
      %v654 = vunpack.c.h.b16 %v241
      %v655 = vunpack.c.l.b16 %v242
      %v656 = vunpack.c.h.b16 %v242
      %v657 = vunpack.c.l.b16 %v243
      %v658 = vunpack.c.h.b16 %v243
      %v659 = vunpack.c.l.b16 %v244
      %v660 = vunpack.c.h.b16 %v244
      %v661 = vunpack.c.l.b16 %v245
      %v662 = vunpack.c.h.b16 %v245
      %v663 = vunpack.c.l.b16 %v246
      %v664 = vunpack.c.h.b16 %v246
      %v665 = vunpack.c.l.b16 %v247
      %v666 = vunpack.c.h.b16 %v247
      %v667 = vunpack.c.l.b16 %v248
      %v668 = vunpack.c.h.b16 %v248
      %v669 = vunpack.c.l.b16 %v249
      %v670 = vunpack.c.h.b16 %v249
      %v671 = vunpack.c.l.b16 %v250
      %v672 = vunpack.c.h.b16 %v250
      %v673 = vunpack.c.l.b16 %v251
      %v674 = vunpack.c.h.b16 %v251
      %v675 = vunpack.c.l.b16 %v252
      %v676 = vunpack.c.h.b16 %v252
      %v677 = vunpack.c.l.b16 %v253
      %v678 = vunpack.c.h.b16 %v253
      %v679 = vunpack.c.l.b16 %v254
      %v680 = vunpack.c.h.b16 %v254
      %v681 = vunpack.c.l.b16 %v255
      %v682 = vunpack.c.h.b16 %v255
      %v683 = vunpack.c.l.b16 %v256
      %v684 = vunpack.c.h.b16 %v256
      %v685 = vunpack.c.l.b16 %v257
      %v686 = vunpack.c.h.b16 %v257
      %v687 = vunpack.c.l.b16 %v258
      %v688 = vunpack.c.h.b16 %v258
      %v689 = vunpack.c.l.b16 %v259
      %v690 = vunpack.c.h.b16 %v259
      %v691 = vunpack.c.l.b16 %v260
      %v692 = vunpack.c.h.b16 %v260
      %v693 = vunpack.c.l.b16 %v261
      %v694 = vunpack.c.h.b16 %v261
      %v695 = vunpack.c.l.b16 %v262
      %v696 = vunpack.c.h.b16 %v262
      %v697 = vunpack.c.l.b16 %v263
      %v698 = vunpack.c.h.b16 %v263
      %v699 = vunpack.c.l.b16 %v264
      %v700 = vunpack.c.h.b16 %v264
      %v701 = vunpack.c.l.b16 %v265
      %v702 = vunpack.c.h.b16 %v265
      %v703 = vunpack.c.l.b16 %v266
      %v704 = vunpack.c.h.b16 %v266
      %v705 = vunpack.c.l.b16 %v267
      %v706 = vunpack.c.h.b16 %v267
      %v707 = vunpack.c.l.b16 %v268
      %v708 = vunpack.c.h.b16 %v268
      %v709 = vunpack.c.l.b16 %v269
      %v710 = vunpack.c.h.b16 %v269
      %v711 = vunpack.c.l.b16 %v270
      %v712 = vunpack.c.h.b16 %v270
      %v713 = vunpack.c.l.b16 %v271
      %v714 = vunpack.c.h.b16 %v271
      %v715 = vunpack.c.l.b16 %v272
      %v716 = vunpack.c.h.b16 %v272
      %v717 = vunpack.c.l.b16 %v273
      %v718 = vunpack.c.h.b16 %v273
      %v719 = vunpack.c.l.b16 %v274
      %v720 = vunpack.c.h.b16 %v274
      %v721 = vunpack.c.l.b16 %v275
      %v722 = vunpack.c.h.b16 %v275
      %v723 = vunpack.c.l.b16 %v276
      %v724 = vunpack.c.h.b16 %v276
      %v725 = vpack.c.b16 %v613, %v597
      %v726 = vpack.c.b16 %v614, %v598
      %v727 = vpack.c.b16 %v615, %v599
      %v728 = vpack.c.b16 %v616, %v600
      %v729 = vpack.c.b16 %v617, %v601
      %v730 = vpack.c.b16 %v618, %v602
      %v731 = vpack.c.b16 %v619, %v603
      %v732 = vpack.c.b16 %v620, %v604
      %v733 = vpack.c.b16 %v621, %v605
      %v734 = vpack.c.b16 %v622, %v606
      %v735 = vpack.c.b16 %v623, %v607
      %v736 = vpack.c.b16 %v624, %v608
      %v737 = vpack.c.b16 %v625, %v609
      %v738 = vpack.c.b16 %v626, %v610
      %v739 = vpack.c.b16 %v627, %v611
      %v740 = vpack.c.b16 %v628, %v612
      %v741 = vpack.c.b16 %v645, %v629
      %v742 = vpack.c.b16 %v646, %v630
      %v743 = vpack.c.b16 %v647, %v631
      %v744 = vpack.c.b16 %v648, %v632
      %v745 = vpack.c.b16 %v649, %v633
      %v746 = vpack.c.b16 %v650, %v634
      %v747 = vpack.c.b16 %v651, %v635
      %v748 = vpack.c.b16 %v652, %v636
      %v749 = vpack.c.b16 %v653, %v637
      %v750 = vpack.c.b16 %v654, %v638
      %v751 = vpack.c.b16 %v655, %v639
      %v752 = vpack.c.b16 %v656, %v640
      %v753 = vpack.c.b16 %v657, %v641
      %v754 = vpack.c.b16 %v658, %v642
      %v755 = vpack.c.b16 %v659, %v643
      %v756 = vpack.c.b16 %v660, %v644
      %v757 = vpack.c.b16 %v677, %v661
      %v758 = vpack.c.b16 %v678, %v662
      %v759 = vpack.c.b16 %v679, %v663
      %v760 = vpack.c.b16 %v680, %v664
      %v761 = vpack.c.b16 %v681, %v665
      %v762 = vpack.c.b16 %v682, %v666
      %v763 = vpack.c.b16 %v683, %v667
      %v764 = vpack.c.b16 %v684, %v668
      %v765 = vpack.c.b16 %v685, %v669
      %v766 = vpack.c.b16 %v686, %v670
      %v767 = vpack.c.b16 %v687, %v671
      %v768 = vpack.c.b16 %v688, %v672
      %v769 = vpack.c.b16 %v689, %v673
      %v770 = vpack.c.b16 %v690, %v674
      %v771 = vpack.c.b16 %v691, %v675
      %v772 = vpack.c.b16 %v692, %v676
      %v773 = vpack.c.b16 %v709, %v693
      %v774 = vpack.c.b16 %v710, %v694
      %v775 = vpack.c.b16 %v711, %v695
      %v776 = vpack.c.b16 %v712, %v696
      %v777 = vpack.c.b16 %v713, %v697
      %v778 = vpack.c.b16 %v714, %v698
      %v779 = vpack.c.b16 %v715, %v699
      %v780 = vpack.c.b16 %v716, %v700
      %v781 = vpack.c.b16 %v717, %v701
      %v782 = vpack.c.b16 %v718, %v702
      %v783 = vpack.c.b16 %v719, %v703
      %v784 = vpack.c.b16 %v720, %v704
      %v785 = vpack.c.b16 %v721, %v705
      %v786 = vpack.c.b16 %v722, %v706
      %v787 = vpack.c.b16 %v723, %v707
      %v788 = vpack.c.b16 %v724, %v708
      %v1109 = vunpack.c.l.b16 %v277
      %v1110 = vunpack.c.l.b16 %v278
      %v1111 = vunpack.c.l.b16 %v279
      %v1112 = vunpack.c.l.b16 %v280
      %v1113 = vunpack.c.l.b16 %v281
      %v1114 = vunpack.c.l.b16 %v282
      %v1115 = vunpack.c.l.b16 %v283
      %v1116 = vunpack.c.l.b16 %v284
      %v1117 = vunpack.c.l.b16 %v285
      %v1118 = vunpack.c.l.b16 %v286
      %v1119 = vunpack.c.l.b16 %v287
      %v1120 = vunpack.c.l.b16 %v288
      %v1121 = vunpack.c.l.b16 %v289
      %v1122 = vunpack.c.l.b16 %v290
      %v1123 = vunpack.c.l.b16 %v291
      %v1124 = vunpack.c.l.b16 %v292
      %v1125 = vunpack.c.l.b16 %v293
      %v1126 = vunpack.c.l.b16 %v294
      %v1127 = vunpack.c.l.b16 %v295
      %v1128 = vunpack.c.l.b16 %v296
      %v1129 = vunpack.c.l.b16 %v297
      %v1130 = vunpack.c.l.b16 %v298
      %v1131 = vunpack.c.l.b16 %v299
      %v1132 = vunpack.c.l.b16 %v300
      %v1133 = vunpack.c.l.b16 %v301
      %v1134 = vunpack.c.l.b16 %v302
      %v1135 = vunpack.c.l.b16 %v303
      %v1136 = vunpack.c.l.b16 %v304
      %v1137 = vunpack.c.l.b16 %v305
      %v1138 = vunpack.c.l.b16 %v306
      %v1139 = vunpack.c.l.b16 %v307
      %v1140 = vunpack.c.l.b16 %v308
      %v1141 = vunpack.c.l.b16 %v309
      %v1142 = vunpack.c.l.b16 %v310
      %v1143 = vunpack.c.l.b16 %v311
      %v1144 = vunpack.c.l.b16 %v312
      %v1145 = vunpack.c.l.b16 %v313
      %v1146 = vunpack.c.l.b16 %v314
      %v1147 = vunpack.c.l.b16 %v315
      %v1148 = vunpack.c.l.b16 %v316
      %v1149 = vunpack.c.l.b16 %v317
      %v1150 = vunpack.c.l.b16 %v318
      %v1151 = vunpack.c.l.b16 %v319
      %v1152 = vunpack.c.l.b16 %v320
      %v1153 = vunpack.c.l.b16 %v321
      %v1154 = vunpack.c.l.b16 %v322
      %v1155 = vunpack.c.l.b16 %v323
      %v1156 = vunpack.c.l.b16 %v324
      %v1157 = vunpack.c.l.b16 %v325
      %v1158 = vunpack.c.l.b16 %v326
      %v1159 = vunpack.c.l.b16 %v327
      %v1160 = vunpack.c.l.b16 %v328
      %v1161 = vunpack.c.l.b16 %v329
      %v1162 = vunpack.c.l.b16 %v330
      %v1163 = vunpack.c.l.b16 %v331
      %v1164 = vunpack.c.l.b16 %v332
      %v1165 = vunpack.c.l.b16 %v333
      %v1166 = vunpack.c.l.b16 %v334
      %v1167 = vunpack.c.l.b16 %v335
      %v1168 = vunpack.c.l.b16 %v336
      %v1169 = vunpack.c.l.b16 %v337
      %v1170 = vunpack.c.l.b16 %v338
      %v1171 = vunpack.c.l.b16 %v339
      %v1172 = vunpack.c.l.b16 %v340
      %v1173 = vunpack.c.l.b16 %v341
      %v1174 = vunpack.c.l.b16 %v342
      %v1175 = vunpack.c.l.b16 %v343
      %v1176 = vunpack.c.l.b16 %v344
      %v1177 = vunpack.c.l.b16 %v345
      %v1178 = vunpack.c.l.b16 %v346
      %v1179 = vunpack.c.l.b16 %v347
      %v1180 = vunpack.c.l.b16 %v348
      %v1181 = vunpack.c.l.b16 %v349
      %v1182 = vunpack.c.l.b16 %v350
      %v1183 = vunpack.c.l.b16 %v351
      %v1184 = vunpack.c.l.b16 %v352
      %v1185 = vunpack.c.l.b16 %v353
      %v1186 = vunpack.c.l.b16 %v354
      %v1187 = vunpack.c.l.b16 %v355
      %v1188 = vunpack.c.l.b16 %v356
      %v1189 = vunpack.c.l.b16 %v357
      %v1190 = vunpack.c.l.b16 %v358
      %v1191 = vunpack.c.l.b16 %v359
      %v1192 = vunpack.c.l.b16 %v360
      %v1193 = vunpack.c.l.b16 %v361
      %v1194 = vunpack.c.l.b16 %v362
      %v1195 = vunpack.c.l.b16 %v363
      %v1196 = vunpack.c.l.b16 %v364
      %v1197 = vunpack.c.l.b16 %v365
      %v1198 = vunpack.c.l.b16 %v366
      %v1199 = vunpack.c.l.b16 %v367
      %v1200 = vunpack.c.l.b16 %v368
      %v1201 = vunpack.c.l.b16 %v369
      %v1202 = vunpack.c.l.b16 %v370
      %v1203 = vunpack.c.l.b16 %v371
      %v1204 = vunpack.c.l.b16 %v372
      %v1205 = vunpack.c.l.b16 %v373
      %v1206 = vunpack.c.l.b16 %v374
      %v1207 = vunpack.c.l.b16 %v375
      %v1208 = vunpack.c.l.b16 %v376
      %v1209 = vunpack.c.l.b16 %v377
      %v1210 = vunpack.c.l.b16 %v378
      %v1211 = vunpack.c.l.b16 %v379
      %v1212 = vunpack.c.l.b16 %v380
      %v1213 = vunpack.c.l.b16 %v381
      %v1214 = vunpack.c.l.b16 %v382
      %v1215 = vunpack.c.l.b16 %v383
      %v1216 = vunpack.c.l.b16 %v384
      %v1217 = vunpack.c.l.b16 %v385
      %v1218 = vunpack.c.l.b16 %v386
      %v1219 = vunpack.c.l.b16 %v387
      %v1220 = vunpack.c.l.b16 %v388
      %v1221 = vunpack.c.l.b16 %v389
      %v1222 = vunpack.c.l.b16 %v390
      %v1223 = vunpack.c.l.b16 %v391
      %v1224 = vunpack.c.l.b16 %v392
      %v1225 = vunpack.c.l.b16 %v393
      %v1226 = vunpack.c.l.b16 %v394
      %v1227 = vunpack.c.l.b16 %v395
      %v1228 = vunpack.c.l.b16 %v396
      %v1229 = vunpack.c.l.b16 %v397
      %v1230 = vunpack.c.l.b16 %v398
      %v1231 = vunpack.c.l.b16 %v399
      %v1232 = vunpack.c.l.b16 %v400
      %v1233 = vunpack.c.l.b16 %v401
      %v1234 = vunpack.c.l.b16 %v402
      %v1235 = vunpack.c.l.b16 %v403
      %v1236 = vunpack.c.l.b16 %v404
      %v1237 = vunpack.c.l.b16 %v405
      %v1238 = vunpack.c.l.b16 %v406
      %v1239 = vunpack.c.l.b16 %v407
      %v1240 = vunpack.c.l.b16 %v408
      %v1241 = vunpack.c.l.b16 %v409
      %v1242 = vunpack.c.l.b16 %v410
      %v1243 = vunpack.c.l.b16 %v411
      %v1244 = vunpack.c.l.b16 %v412
      %v1245 = vunpack.c.l.b16 %v413
      %v1246 = vunpack.c.l.b16 %v414
      %v1247 = vunpack.c.l.b16 %v415
      %v1248 = vunpack.c.l.b16 %v416
      %v1249 = vunpack.c.l.b16 %v417
      %v1250 = vunpack.c.l.b16 %v418
      %v1251 = vunpack.c.l.b16 %v419
      %v1252 = vunpack.c.l.b16 %v420
      %v1253 = vunpack.c.l.b16 %v421
      %v1254 = vunpack.c.l.b16 %v422
      %v1255 = vunpack.c.l.b16 %v423
      %v1256 = vunpack.c.l.b16 %v424
      %v1257 = vunpack.c.l.b16 %v425
      %v1258 = vunpack.c.l.b16 %v426
      %v1259 = vunpack.c.l.b16 %v427
      %v1260 = vunpack.c.l.b16 %v428
      %v1261 = vunpack.c.l.b16 %v429
      %v1262 = vunpack.c.l.b16 %v430
      %v1263 = vunpack.c.l.b16 %v431
      %v1264 = vunpack.c.l.b16 %v432
      %v1265 = vunpack.c.l.b16 %v433
      %v1266 = vunpack.c.l.b16 %v434
      %v1267 = vunpack.c.l.b16 %v435
      %v1268 = vunpack.c.l.b16 %v436
      %v1269 = vunpack.c.l.b16 %v437
      %v1270 = vunpack.c.l.b16 %v438
      %v1271 = vunpack.c.l.b16 %v439
      %v1272 = vunpack.c.l.b16 %v440
      %v1273 = vunpack.c.l.b16 %v441
      %v1274 = vunpack.c.l.b16 %v442
      %v1275 = vunpack.c.l.b16 %v443
      %v1276 = vunpack.c.l.b16 %v444
      %v1277 = vunpack.c.l.b16 %v445
      %v1278 = vunpack.c.l.b16 %v446
      %v1279 = vunpack.c.l.b16 %v447
      %v1280 = vunpack.c.l.b16 %v448
      %v1281 = vunpack.c.l.b16 %v449
      %v1282 = vunpack.c.l.b16 %v450
      %v1283 = vunpack.c.l.b16 %v451
      %v1284 = vunpack.c.l.b16 %v452
      %v1285 = vunpack.c.l.b16 %v453
      %v1286 = vunpack.c.l.b16 %v454
      %v1287 = vunpack.c.l.b16 %v455
      %v1288 = vunpack.c.l.b16 %v456
      %v1289 = vunpack.c.l.b16 %v457
      %v1290 = vunpack.c.l.b16 %v458
      %v1291 = vunpack.c.l.b16 %v459
      %v1292 = vunpack.c.l.b16 %v460
      %v1293 = vunpack.c.l.b16 %v461
      %v1294 = vunpack.c.l.b16 %v462
      %v1295 = vunpack.c.l.b16 %v463
      %v1296 = vunpack.c.l.b16 %v464
      %v1297 = vunpack.c.l.b16 %v465
      %v1298 = vunpack.c.l.b16 %v466
      %v1299 = vunpack.c.l.b16 %v467
      %v1300 = vunpack.c.l.b16 %v468
      %v1301 = vunpack.c.l.b16 %v469
      %v1302 = vunpack.c.l.b16 %v470
      %v1303 = vunpack.c.l.b16 %v471
      %v1304 = vunpack.c.l.b16 %v472
      %v1305 = vunpack.c.l.b16 %v473
      %v1306 = vunpack.c.l.b16 %v474
      %v1307 = vunpack.c.l.b16 %v475
      %v1308 = vunpack.c.l.b16 %v476
      %v1309 = vunpack.c.l.b16 %v477
      %v1310 = vunpack.c.l.b16 %v478
      %v1311 = vunpack.c.l.b16 %v479
      %v1312 = vunpack.c.l.b16 %v480
      %v1313 = vunpack.c.l.b16 %v481
      %v1314 = vunpack.c.l.b16 %v482
      %v1315 = vunpack.c.l.b16 %v483
      %v1316 = vunpack.c.l.b16 %v484
      %v1317 = vunpack.c.l.b16 %v485
      %v1318 = vunpack.c.l.b16 %v486
      %v1319 = vunpack.c.l.b16 %v487
      %v1320 = vunpack.c.l.b16 %v488
      %v1321 = vunpack.c.l.b16 %v489
      %v1322 = vunpack.c.l.b16 %v490
      %v1323 = vunpack.c.l.b16 %v491
      %v1324 = vunpack.c.l.b16 %v492
      %v1325 = vunpack.c.l.b16 %v493
      %v1326 = vunpack.c.l.b16 %v494
      %v1327 = vunpack.c.l.b16 %v495
      %v1328 = vunpack.c.l.b16 %v496
      %v1329 = vunpack.c.l.b16 %v497
      %v1330 = vunpack.c.l.b16 %v498
      %v1331 = vunpack.c.l.b16 %v499
      %v1332 = vunpack.c.l.b16 %v500
      %v1333 = vunpack.c.l.b16 %v501
      %v1334 = vunpack.c.l.b16 %v502
      %v1335 = vunpack.c.l.b16 %v503
      %v1336 = vunpack.c.l.b16 %v504
      %v1337 = vunpack.c.l.b16 %v505
      %v1338 = vunpack.c.l.b16 %v506
      %v1339 = vunpack.c.l.b16 %v507
      %v1340 = vunpack.c.l.b16 %v508
      %v1341 = vunpack.c.l.b16 %v509
      %v1342 = vunpack.c.l.b16 %v510
      %v1343 = vunpack.c.l.b16 %v511
      %v1344 = vunpack.c.l.b16 %v512
      %v1345 = vunpack.c.l.b16 %v513
      %v1346 = vunpack.c.l.b16 %v514
      %v1347 = vunpack.c.l.b16 %v515
      %v1348 = vunpack.c.l.b16 %v516
      %v1349 = vunpack.c.l.b16 %v517
      %v1350 = vunpack.c.l.b16 %v518
      %v1351 = vunpack.c.l.b16 %v519
      %v1352 = vunpack.c.l.b16 %v520
      %v1353 = vunpack.c.l.b16 %v521
      %v1354 = vunpack.c.l.b16 %v522
      %v1355 = vunpack.c.l.b16 %v523
      %v1356 = vunpack.c.l.b16 %v524
      %v1357 = vunpack.c.l.b16 %v525
      %v1358 = vunpack.c.l.b16 %v526
      %v1359 = vunpack.c.l.b16 %v527
      %v1360 = vunpack.c.l.b16 %v528
      %v1361 = vunpack.c.l.b16 %v529
      %v1362 = vunpack.c.l.b16 %v530
      %v1363 = vunpack.c.l.b16 %v531
      %v1364 = vunpack.c.l.b16 %v532
      %v1365 = vpack.c.b16 %v1110, %v1109
      %v1366 = vpack.c.b16 %v1112, %v1111
      %v1367 = vpack.c.b16 %v1114, %v1113
      %v1368 = vpack.c.b16 %v1116, %v1115
      %v1369 = vpack.c.b16 %v1118, %v1117
      %v1370 = vpack.c.b16 %v1120, %v1119
      %v1371 = vpack.c.b16 %v1122, %v1121
      %v1372 = vpack.c.b16 %v1124, %v1123
      %v1373 = vpack.c.b16 %v1126, %v1125
      %v1374 = vpack.c.b16 %v1128, %v1127
      %v1375 = vpack.c.b16 %v1130, %v1129
      %v1376 = vpack.c.b16 %v1132, %v1131
      %v1377 = vpack.c.b16 %v1134, %v1133
      %v1378 = vpack.c.b16 %v1136, %v1135
      %v1379 = vpack.c.b16 %v1138, %v1137
      %v1380 = vpack.c.b16 %v1140, %v1139
      %v1381 = vpack.c.b16 %v1142, %v1141
      %v1382 = vpack.c.b16 %v1144, %v1143
      %v1383 = vpack.c.b16 %v1146, %v1145
      %v1384 = vpack.c.b16 %v1148, %v1147
      %v1385 = vpack.c.b16 %v1150, %v1149
      %v1386 = vpack.c.b16 %v1152, %v1151
      %v1387 = vpack.c.b16 %v1154, %v1153
      %v1388 = vpack.c.b16 %v1156, %v1155
      %v1389 = vpack.c.b16 %v1158, %v1157
      %v1390 = vpack.c.b16 %v1160, %v1159
      %v1391 = vpack.c.b16 %v1162, %v1161
      %v1392 = vpack.c.b16 %v1164, %v1163
      %v1393 = vpack.c.b16 %v1166, %v1165
      %v1394 = vpack.c.b16 %v1168, %v1167
      %v1395 = vpack.c.b16 %v1170, %v1169
      %v1396 = vpack.c.b16 %v1172, %v1171
      %v1397 = vpack.c.b16 %v1174, %v1173
      %v1398 = vpack.c.b16 %v1176, %v1175
      %v1399 = vpack.c.b16 %v1178, %v1177
      %v1400 = vpack.c.b16 %v1180, %v1179
      %v1401 = vpack.c.b16 %v1182, %v1181
      %v1402 = vpack.c.b16 %v1184, %v1183
      %v1403 = vpack.c.b16 %v1186, %v1185
      %v1404 = vpack.c.b16 %v1188, %v1187
      %v1405 = vpack.c.b16 %v1190, %v1189
      %v1406 = vpack.c.b16 %v1192, %v1191
      %v1407 = vpack.c.b16 %v1194, %v1193
      %v1408 = vpack.c.b16 %v1196, %v1195
      %v1409 = vpack.c.b16 %v1198, %v1197
      %v1410 = vpack.c.b16 %v1200, %v1199
      %v1411 = vpack.c.b16 %v1202, %v1201
      %v1412 = vpack.c.b16 %v1204, %v1203
      %v1413 = vpack.c.b16 %v1206, %v1205
      %v1414 = vpack.c.b16 %v1208, %v1207
      %v1415 = vpack.c.b16 %v1210, %v1209
      %v1416 = vpack.c.b16 %v1212, %v1211
      %v1417 = vpack.c.b16 %v1214, %v1213
      %v1418 = vpack.c.b16 %v1216, %v1215
      %v1419 = vpack.c.b16 %v1218, %v1217
      %v1420 = vpack.c.b16 %v1220, %v1219
      %v1421 = vpack.c.b16 %v1222, %v1221
      %v1422 = vpack.c.b16 %v1224, %v1223
      %v1423 = vpack.c.b16 %v1226, %v1225
      %v1424 = vpack.c.b16 %v1228, %v1227
      %v1425 = vpack.c.b16 %v1230, %v1229
      %v1426 = vpack.c.b16 %v1232, %v1231
      %v1427 = vpack.c.b16 %v1234, %v1233
      %v1428 = vpack.c.b16 %v1236, %v1235
      %v1429 = vpack.c.b16 %v1238, %v1237
      %v1430 = vpack.c.b16 %v1240, %v1239
      %v1431 = vpack.c.b16 %v1242, %v1241
      %v1432 = vpack.c.b16 %v1244, %v1243
      %v1433 = vpack.c.b16 %v1246, %v1245
      %v1434 = vpack.c.b16 %v1248, %v1247
      %v1435 = vpack.c.b16 %v1250, %v1249
      %v1436 = vpack.c.b16 %v1252, %v1251
      %v1437 = vpack.c.b16 %v1254, %v1253
      %v1438 = vpack.c.b16 %v1256, %v1255
      %v1439 = vpack.c.b16 %v1258, %v1257
      %v1440 = vpack.c.b16 %v1260, %v1259
      %v1441 = vpack.c.b16 %v1262, %v1261
      %v1442 = vpack.c.b16 %v1264, %v1263
      %v1443 = vpack.c.b16 %v1266, %v1265
      %v1444 = vpack.c.b16 %v1268, %v1267
      %v1445 = vpack.c.b16 %v1270, %v1269
      %v1446 = vpack.c.b16 %v1272, %v1271
      %v1447 = vpack.c.b16 %v1274, %v1273
      %v1448 = vpack.c.b16 %v1276, %v1275
      %v1449 = vpack.c.b16 %v1278, %v1277
      %v1450 = vpack.c.b16 %v1280, %v1279
      %v1451 = vpack.c.b16 %v1282, %v1281
      %v1452 = vpack.c.b16 %v1284, %v1283
      %v1453 = vpack.c.b16 %v1286, %v1285
      %v1454 = vpack.c.b16 %v1288, %v1287
      %v1455 = vpack.c.b16 %v1290, %v1289
      %v1456 = vpack.c.b16 %v1292, %v1291
      %v1457 = vpack.c.b16 %v1294, %v1293
      %v1458 = vpack.c.b16 %v1296, %v1295
      %v1459 = vpack.c.b16 %v1298, %v1297
      %v1460 = vpack.c.b16 %v1300, %v1299
      %v1461 = vpack.c.b16 %v1302, %v1301
      %v1462 = vpack.c.b16 %v1304, %v1303
      %v1463 = vpack.c.b16 %v1306, %v1305
      %v1464 = vpack.c.b16 %v1308, %v1307
      %v1465 = vpack.c.b16 %v1310, %v1309
      %v1466 = vpack.c.b16 %v1312, %v1311
      %v1467 = vpack.c.b16 %v1314, %v1313
      %v1468 = vpack.c.b16 %v1316, %v1315
      %v1469 = vpack.c.b16 %v1318, %v1317
      %v1470 = vpack.c.b16 %v1320, %v1319
      %v1471 = vpack.c.b16 %v1322, %v1321
      %v1472 = vpack.c.b16 %v1324, %v1323
      %v1473 = vpack.c.b16 %v1326, %v1325
      %v1474 = vpack.c.b16 %v1328, %v1327
      %v1475 = vpack.c.b16 %v1330, %v1329
      %v1476 = vpack.c.b16 %v1332, %v1331
      %v1477 = vpack.c.b16 %v1334, %v1333
      %v1478 = vpack.c.b16 %v1336, %v1335
      %v1479 = vpack.c.b16 %v1338, %v1337
      %v1480 = vpack.c.b16 %v1340, %v1339
      %v1481 = vpack.c.b16 %v1342, %v1341
      %v1482 = vpack.c.b16 %v1344, %v1343
      %v1483 = vpack.c.b16 %v1346, %v1345
      %v1484 = vpack.c.b16 %v1348, %v1347
      %v1485 = vpack.c.b16 %v1350, %v1349
      %v1486 = vpack.c.b16 %v1352, %v1351
      %v1487 = vpack.c.b16 %v1354, %v1353
      %v1488 = vpack.c.b16 %v1356, %v1355
      %v1489 = vpack.c.b16 %v1358, %v1357
      %v1490 = vpack.c.b16 %v1360, %v1359
      %v1491 = vpack.c.b16 %v1362, %v1361
      %v1492 = vpack.c.b16 %v1364, %v1363
      %1621 = vmatprep.subr.bf16.mxu0 0
      %1622 = vmatpush1.bf16.msra.mxu0 %v1365
      %1623 = vmatprep.subr.bf16.mxu0 0
      %1624 = vmatpush1.bf16.msra.mxu0 %v1366
      %1625 = vmatprep.subr.bf16.mxu0 0
      %1626 = vmatpush1.bf16.msra.mxu0 %v1367
      %1627 = vmatprep.subr.bf16.mxu0 0
      %1628 = vmatpush1.bf16.msra.mxu0 %v1368
      %1629 = vmatprep.subr.bf16.mxu0 0
      %1630 = vmatpush1.bf16.msra.mxu0 %v1369
      %1631 = vmatprep.subr.bf16.mxu0 0
      %1632 = vmatpush1.bf16.msra.mxu0 %v1370
      %1633 = vmatprep.subr.bf16.mxu0 0
      %1634 = vmatpush1.bf16.msra.mxu0 %v1371
      %1635 = vmatprep.subr.bf16.mxu0 0
      %1636 = vmatpush1.bf16.msra.mxu0 %v1372
      %1637 = vmatprep.subr.bf16.mxu0 0
      %1638 = vmatpush1.bf16.msra.mxu0 %v1373
      %1639 = vmatprep.subr.bf16.mxu0 0
      %1640 = vmatpush1.bf16.msra.mxu0 %v1374
      %1641 = vmatprep.subr.bf16.mxu0 0
      %1642 = vmatpush1.bf16.msra.mxu0 %v1375
      %1643 = vmatprep.subr.bf16.mxu0 0
      %1644 = vmatpush1.bf16.msra.mxu0 %v1376
      %1645 = vmatprep.subr.bf16.mxu0 0
      %1646 = vmatpush1.bf16.msra.mxu0 %v1377
      %1647 = vmatprep.subr.bf16.mxu0 0
      %1648 = vmatpush1.bf16.msra.mxu0 %v1378
      %1649 = vmatprep.subr.bf16.mxu0 0
      %1650 = vmatpush1.bf16.msra.mxu0 %v1379
      %1651 = vmatprep.subr.bf16.mxu0 0
      %1652 = vmatpush1.bf16.msra.mxu0 %v1380
      %1653 = vmatprep.mubr.bf16.mxu0 %v726
      %1654 = vmatmul.mubr.bf16.gmra.mrb[0].mxu0 %v725
      %v1655 = vpop.f32.mrb[0].mxu0
      %v1656 = vadd.f32 0.0, %v1655
      %v1657 = vpop.f32.mrb[0].mxu0
      %v1658 = vpop.f32.mrb[0].mxu0
      %v1659 = vadd.f32 0.0, %v1658
      %v1660 = vpop.f32.mrb[0].mxu0
      %1661 = vmatprep.mubr.bf16.mxu0 %v742
      %1662 = vmatmul.mubr.bf16.gmra.mrb[0].mxu0 %v741
      %v1663 = vpop.f32.mrb[0].mxu0
      %v1664 = vadd.f32 0.0, %v1663
      %v1665 = vpop.f32.mrb[0].mxu0
      %v1666 = vpop.f32.mrb[0].mxu0
      %v1667 = vadd.f32 0.0, %v1666
      %v1668 = vpop.f32.mrb[0].mxu0
      %1669 = vmatprep.mubr.bf16.mxu0 %v758
      %1670 = vmatmul.mubr.bf16.gmra.mrb[0].mxu0 %v757
      %v1671 = vpop.f32.mrb[0].mxu0
      %v1672 = vadd.f32 0.0, %v1671
      %v1673 = vpop.f32.mrb[0].mxu0
      %v1674 = vpop.f32.mrb[0].mxu0
      %v1675 = vadd.f32 0.0, %v1674
      %v1676 = vpop.f32.mrb[0].mxu0
      %1677 = vmatprep.mubr.bf16.mxu0 %v774
      %1678 = vmatmul.mubr.bf16.gmra.mrb[0].mxu0 %v773
      %v1679 = vpop.f32.mrb[0].mxu0
      %v1680 = vadd.f32 0.0, %v1679
      %v1681 = vpop.f32.mrb[0].mxu0
      %v1682 = vpop.f32.mrb[0].mxu0
      %v1683 = vadd.f32 0.0, %v1682
      %v1684 = vpop.f32.mrb[0].mxu0
      %1685 = vdwg.mxu0
      %1686 = vmatprep.subr.bf16.mxu0 0
      %1687 = vmatpush1.bf16.msra.mxu0 %v1381
      %1688 = vmatprep.subr.bf16.mxu0 0
      %1689 = vmatpush1.bf16.msra.mxu0 %v1382
      %1690 = vmatprep.subr.bf16.mxu0 0
      %1691 = vmatpush1.bf16.msra.mxu0 %v1383
      %1692 = vmatprep.subr.bf16.mxu0 0
      %1693 = vmatpush1.bf16.msra.mxu0 %v1384
      %1694 = vmatprep.subr.bf16.mxu0 0
      %1695 = vmatpush1.bf16.msra.mxu0 %v1385
      %1696 = vmatprep.subr.bf16.mxu0 0
      %1697 = vmatpush1.bf16.msra.mxu0 %v1386
      %1698 = vmatprep.subr.bf16.mxu0 0
      %1699 = vmatpush1.bf16.msra.mxu0 %v1387
      %1700 = vmatprep.subr.bf16.mxu0 0
      %1701 = vmatpush1.bf16.msra.mxu0 %v1388
      %1702 = vmatprep.subr.bf16.mxu0 0
      %1703 = vmatpush1.bf16.msra.mxu0 %v1389
      %1704 = vmatprep.subr.bf16.mxu0 0
      %1705 = vmatpush1.bf16.msra.mxu0 %v1390
      %1706 = vmatprep.subr.bf16.mxu0 0
      %1707 = vmatpush1.bf16.msra.mxu0 %v1391
      %1708 = vmatprep.subr.bf16.mxu0 0
      %1709 = vmatpush1.bf16.msra.mxu0 %v1392
      %1710 = vmatprep.subr.bf16.mxu0 0
      %1711 = vmatpush1.bf16.msra.mxu0 %v1393
      %1712 = vmatprep.subr.bf16.mxu0 0
      %1713 = vmatpush1.bf16.msra.mxu0 %v1394
      %1714 = vmatprep.subr.bf16.mxu0 0
      %1715 = vmatpush1.bf16.msra.mxu0 %v1395
      %1716 = vmatprep.subr.bf16.mxu0 0
      %1717 = vmatpush1.bf16.msra.mxu0 %v1396
      %1718 = vmatprep.mubr.bf16.mxu0 %v728
      %1719 = vmatmul.mubr.bf16.gmra.mrb[0].mxu0 %v727
      %v1720 = vpop.f32.mrb[0].mxu0
      %v1721 = vadd.f32 %v1656, %v1720
      %v1722 = vpop.f32.mrb[0].mxu0
      %v1723 = vpop.f32.mrb[0].mxu0
      %v1724 = vadd.f32 %v1659, %v1723
      %v1725 = vpop.f32.mrb[0].mxu0
      %1726 = vmatprep.mubr.bf16.mxu0 %v744
      %1727 = vmatmul.mubr.bf16.gmra.mrb[0].mxu0 %v743
      %v1728 = vpop.f32.mrb[0].mxu0
      %v1729 = vadd.f32 %v1664, %v1728
      %v1730 = vpop.f32.mrb[0].mxu0
      %v1731 = vpop.f32.mrb[0].mxu0
      %v1732 = vadd.f32 %v1667, %v1731
      %v1733 = vpop.f32.mrb[0].mxu0
      %1734 = vmatprep.mubr.bf16.mxu0 %v760
      %1735 = vmatmul.mubr.bf16.gmra.mrb[0].mxu0 %v759
      %v1736 = vpop.f32.mrb[0].mxu0
      %v1737 = vadd.f32 %v1672, %v1736
      %v1738 = vpop.f32.mrb[0].mxu0
      %v1739 = vpop.f32.mrb[0].mxu0
      %v1740 = vadd.f32 %v1675, %v1739
      %v1741 = vpop.f32.mrb[0].mxu0
      %1742 = vmatprep.mubr.bf16.mxu0 %v776
      %1743 = vmatmul.mubr.bf16.gmra.mrb[0].mxu0 %v775
      %v1744 = vpop.f32.mrb[0].mxu0
      %v1745 = vadd.f32 %v1680, %v1744
      %v1746 = vpop.f32.mrb[0].mxu0
      %v1747 = vpop.f32.mrb[0].mxu0
      %v1748 = vadd.f32 %v1683, %v1747
      %v1749 = vpop.f32.mrb[0].mxu0
      %1750 = vdwg.mxu0
      %1751 = vmatprep.subr.bf16.mxu0 0
      %1752 = vmatpush1.bf16.msra.mxu0 %v1397
      %1753 = vmatprep.subr.bf16.mxu0 0
      %1754 = vmatpush1.bf16.msra.mxu0 %v1398
      %1755 = vmatprep.subr.bf16.mxu0 0
      %1756 = vmatpush1.bf16.msra.mxu0 %v1399
      %1757 = vmatprep.subr.bf16.mxu0 0
      %1758 = vmatpush1.bf16.msra.mxu0 %v1400
      %1759 = vmatprep.subr.bf16.mxu0 0
      %1760 = vmatpush1.bf16.msra.mxu0 %v1401
      %1761 = vmatprep.subr.bf16.mxu0 0
      %1762 = vmatpush1.bf16.msra.mxu0 %v1402
      %1763 = vmatprep.subr.bf16.mxu0 0
      %1764 = vmatpush1.bf16.msra.mxu0 %v1403
      %1765 = vmatprep.subr.bf16.mxu0 0
      %1766 = vmatpush1.bf16.msra.mxu0 %v1404
      %1767 = vmatprep.subr.bf16.mxu0 0
      %1768 = vmatpush1.bf16.msra.mxu0 %v1405
      %1769 = vmatprep.subr.bf16.mxu0 0
      %1770 = vmatpush1.bf16.msra.mxu0 %v1406
      %1771 = vmatprep.subr.bf16.mxu0 0
      %1772 = vmatpush1.bf16.msra.mxu0 %v1407
      %1773 = vmatprep.subr.bf16.mxu0 0
      %1774 = vmatpush1.bf16.msra.mxu0 %v1408
      %1775 = vmatprep.subr.bf16.mxu0 0
      %1776 = vmatpush1.bf16.msra.mxu0 %v1409
      %1777 = vmatprep.subr.bf16.mxu0 0
      %1778 = vmatpush1.bf16.msra.mxu0 %v1410
      %1779 = vmatprep.subr.bf16.mxu0 0
      %1780 = vmatpush1.bf16.msra.mxu0 %v1411
      %1781 = vmatprep.subr.bf16.mxu0 0
      %1782 = vmatpush1.bf16.msra.mxu0 %v1412
      %1783 = vmatprep.mubr.bf16.mxu0 %v730
      %1784 = vmatmul.mubr.bf16.gmra.mrb[0].mxu0 %v729
      %v1785 = vpop.f32.mrb[0].mxu0
      %v1786 = vadd.f32 %v1721, %v1785
      %v1787 = vpop.f32.mrb[0].mxu0
      %v1788 = vpop.f32.mrb[0].mxu0
      %v1789 = vadd.f32 %v1724, %v1788
      %v1790 = vpop.f32.mrb[0].mxu0
      %1791 = vmatprep.mubr.bf16.mxu0 %v746
      %1792 = vmatmul.mubr.bf16.gmra.mrb[0].mxu0 %v745
      %v1793 = vpop.f32.mrb[0].mxu0
      %v1794 = vadd.f32 %v1729, %v1793
      %v1795 = vpop.f32.mrb[0].mxu0
      %v1796 = vpop.f32.mrb[0].mxu0
      %v1797 = vadd.f32 %v1732, %v1796
      %v1798 = vpop.f32.mrb[0].mxu0
      %1799 = vmatprep.mubr.bf16.mxu0 %v762
      %1800 = vmatmul.mubr.bf16.gmra.mrb[0].mxu0 %v761
      %v1801 = vpop.f32.mrb[0].mxu0
      %v1802 = vadd.f32 %v1737, %v1801
      %v1803 = vpop.f32.mrb[0].mxu0
      %v1804 = vpop.f32.mrb[0].mxu0
      %v1805 = vadd.f32 %v1740, %v1804
      %v1806 = vpop.f32.mrb[0].mxu0
      %1807 = vmatprep.mubr.bf16.mxu0 %v778
      %1808 = vmatmul.mubr.bf16.gmra.mrb[0].mxu0 %v777
      %v1809 = vpop.f32.mrb[0].mxu0
      %v1810 = vadd.f32 %v1745, %v1809
      %v1811 = vpop.f32.mrb[0].mxu0
      %v1812 = vpop.f32.mrb[0].mxu0
      %v1813 = vadd.f32 %v1748, %v1812
      %v1814 = vpop.f32.mrb[0].mxu0
      %1815 = vdwg.mxu0
      %1816 = vmatprep.subr.bf16.mxu0 0
      %1817 = vmatpush1.bf16.msra.mxu0 %v1413
      %1818 = vmatprep.subr.bf16.mxu0 0
      %1819 = vmatpush1.bf16.msra.mxu0 %v1414
      %1820 = vmatprep.subr.bf16.mxu0 0
      %1821 = vmatpush1.bf16.msra.mxu0 %v1415
      %1822 = vmatprep.subr.bf16.mxu0 0
      %1823 = vmatpush1.bf16.msra.mxu0 %v1416
      %1824 = vmatprep.subr.bf16.mxu0 0
      %1825 = vmatpush1.bf16.msra.mxu0 %v1417
      %1826 = vmatprep.subr.bf16.mxu0 0
      %1827 = vmatpush1.bf16.msra.mxu0 %v1418
      %1828 = vmatprep.subr.bf16.mxu0 0
      %1829 = vmatpush1.bf16.msra.mxu0 %v1419
      %1830 = vmatprep.subr.bf16.mxu0 0
      %1831 = vmatpush1.bf16.msra.mxu0 %v1420
      %1832 = vmatprep.subr.bf16.mxu0 0
      %1833 = vmatpush1.bf16.msra.mxu0 %v1421
      %1834 = vmatprep.subr.bf16.mxu0 0
      %1835 = vmatpush1.bf16.msra.mxu0 %v1422
      %1836 = vmatprep.subr.bf16.mxu0 0
      %1837 = vmatpush1.bf16.msra.mxu0 %v1423
      %1838 = vmatprep.subr.bf16.mxu0 0
      %1839 = vmatpush1.bf16.msra.mxu0 %v1424
      %1840 = vmatprep.subr.bf16.mxu0 0
      %1841 = vmatpush1.bf16.msra.mxu0 %v1425
      %1842 = vmatprep.subr.bf16.mxu0 0
      %1843 = vmatpush1.bf16.msra.mxu0 %v1426
      %1844 = vmatprep.subr.bf16.mxu0 0
      %1845 = vmatpush1.bf16.msra.mxu0 %v1427
      %1846 = vmatprep.subr.bf16.mxu0 0
      %1847 = vmatpush1.bf16.msra.mxu0 %v1428
      %1848 = vmatprep.mubr.bf16.mxu0 %v732
      %1849 = vmatmul.mubr.bf16.gmra.mrb[0].mxu0 %v731
      %v1850 = vpop.f32.mrb[0].mxu0
      %v1851 = vadd.f32 %v1786, %v1850
      %v1852 = vpop.f32.mrb[0].mxu0
      %v1853 = vpop.f32.mrb[0].mxu0
      %v1854 = vadd.f32 %v1789, %v1853
      %v1855 = vpop.f32.mrb[0].mxu0
      %1856 = vmatprep.mubr.bf16.mxu0 %v748
      %1857 = vmatmul.mubr.bf16.gmra.mrb[0].mxu0 %v747
      %v1858 = vpop.f32.mrb[0].mxu0
      %v1859 = vadd.f32 %v1794, %v1858
      %v1860 = vpop.f32.mrb[0].mxu0
      %v1861 = vpop.f32.mrb[0].mxu0
      %v1862 = vadd.f32 %v1797, %v1861
      %v1863 = vpop.f32.mrb[0].mxu0
      %1864 = vmatprep.mubr.bf16.mxu0 %v764
      %1865 = vmatmul.mubr.bf16.gmra.mrb[0].mxu0 %v763
      %v1866 = vpop.f32.mrb[0].mxu0
      %v1867 = vadd.f32 %v1802, %v1866
      %v1868 = vpop.f32.mrb[0].mxu0
      %v1869 = vpop.f32.mrb[0].mxu0
      %v1870 = vadd.f32 %v1805, %v1869
      %v1871 = vpop.f32.mrb[0].mxu0
      %1872 = vmatprep.mubr.bf16.mxu0 %v780
      %1873 = vmatmul.mubr.bf16.gmra.mrb[0].mxu0 %v779
      %v1874 = vpop.f32.mrb[0].mxu0
      %v1875 = vadd.f32 %v1810, %v1874
      %v1876 = vpop.f32.mrb[0].mxu0
      %v1877 = vpop.f32.mrb[0].mxu0
      %v1878 = vadd.f32 %v1813, %v1877
      %v1879 = vpop.f32.mrb[0].mxu0
      %1880 = vdwg.mxu0
      %1881 = vmatprep.subr.bf16.mxu0 0
      %1882 = vmatpush1.bf16.msra.mxu0 %v1429
      %1883 = vmatprep.subr.bf16.mxu0 0
      %1884 = vmatpush1.bf16.msra.mxu0 %v1430
      %1885 = vmatprep.subr.bf16.mxu0 0
      %1886 = vmatpush1.bf16.msra.mxu0 %v1431
      %1887 = vmatprep.subr.bf16.mxu0 0
      %1888 = vmatpush1.bf16.msra.mxu0 %v1432
      %1889 = vmatprep.subr.bf16.mxu0 0
      %1890 = vmatpush1.bf16.msra.mxu0 %v1433
      %1891 = vmatprep.subr.bf16.mxu0 0
      %1892 = vmatpush1.bf16.msra.mxu0 %v1434
      %1893 = vmatprep.subr.bf16.mxu0 0
      %1894 = vmatpush1.bf16.msra.mxu0 %v1435
      %1895 = vmatprep.subr.bf16.mxu0 0
      %1896 = vmatpush1.bf16.msra.mxu0 %v1436
      %1897 = vmatprep.subr.bf16.mxu0 0
      %1898 = vmatpush1.bf16.msra.mxu0 %v1437
      %1899 = vmatprep.subr.bf16.mxu0 0
      %1900 = vmatpush1.bf16.msra.mxu0 %v1438
      %1901 = vmatprep.subr.bf16.mxu0 0
      %1902 = vmatpush1.bf16.msra.mxu0 %v1439
      %1903 = vmatprep.subr.bf16.mxu0 0
      %1904 = vmatpush1.bf16.msra.mxu0 %v1440
      %1905 = vmatprep.subr.bf16.mxu0 0
      %1906 = vmatpush1.bf16.msra.mxu0 %v1441
      %1907 = vmatprep.subr.bf16.mxu0 0
      %1908 = vmatpush1.bf16.msra.mxu0 %v1442
      %1909 = vmatprep.subr.bf16.mxu0 0
      %1910 = vmatpush1.bf16.msra.mxu0 %v1443
      %1911 = vmatprep.subr.bf16.mxu0 0
      %1912 = vmatpush1.bf16.msra.mxu0 %v1444
      %1913 = vmatprep.mubr.bf16.mxu0 %v734
      %1914 = vmatmul.mubr.bf16.gmra.mrb[0].mxu0 %v733
      %v1915 = vpop.f32.mrb[0].mxu0
      %v1916 = vadd.f32 %v1851, %v1915
      %v1917 = vpop.f32.mrb[0].mxu0
      %v1918 = vpop.f32.mrb[0].mxu0
      %v1919 = vadd.f32 %v1854, %v1918
      %v1920 = vpop.f32.mrb[0].mxu0
      %1921 = vmatprep.mubr.bf16.mxu0 %v750
      %1922 = vmatmul.mubr.bf16.gmra.mrb[0].mxu0 %v749
      %v1923 = vpop.f32.mrb[0].mxu0
      %v1924 = vadd.f32 %v1859, %v1923
      %v1925 = vpop.f32.mrb[0].mxu0
      %v1926 = vpop.f32.mrb[0].mxu0
      %v1927 = vadd.f32 %v1862, %v1926
      %v1928 = vpop.f32.mrb[0].mxu0
      %1929 = vmatprep.mubr.bf16.mxu0 %v766
      %1930 = vmatmul.mubr.bf16.gmra.mrb[0].mxu0 %v765
      %v1931 = vpop.f32.mrb[0].mxu0
      %v1932 = vadd.f32 %v1867, %v1931
      %v1933 = vpop.f32.mrb[0].mxu0
      %v1934 = vpop.f32.mrb[0].mxu0
      %v1935 = vadd.f32 %v1870, %v1934
      %v1936 = vpop.f32.mrb[0].mxu0
      %1937 = vmatprep.mubr.bf16.mxu0 %v782
      %1938 = vmatmul.mubr.bf16.gmra.mrb[0].mxu0 %v781
      %v1939 = vpop.f32.mrb[0].mxu0
      %v1940 = vadd.f32 %v1875, %v1939
      %v1941 = vpop.f32.mrb[0].mxu0
      %v1942 = vpop.f32.mrb[0].mxu0
      %v1943 = vadd.f32 %v1878, %v1942
      %v1944 = vpop.f32.mrb[0].mxu0
      %1945 = vdwg.mxu0
      %1946 = vmatprep.subr.bf16.mxu0 0
      %1947 = vmatpush1.bf16.msra.mxu0 %v1445
      %1948 = vmatprep.subr.bf16.mxu0 0
      %1949 = vmatpush1.bf16.msra.mxu0 %v1446
      %1950 = vmatprep.subr.bf16.mxu0 0
      %1951 = vmatpush1.bf16.msra.mxu0 %v1447
      %1952 = vmatprep.subr.bf16.mxu0 0
      %1953 = vmatpush1.bf16.msra.mxu0 %v1448
      %1954 = vmatprep.subr.bf16.mxu0 0
      %1955 = vmatpush1.bf16.msra.mxu0 %v1449
      %1956 = vmatprep.subr.bf16.mxu0 0
      %1957 = vmatpush1.bf16.msra.mxu0 %v1450
      %1958 = vmatprep.subr.bf16.mxu0 0
      %1959 = vmatpush1.bf16.msra.mxu0 %v1451
      %1960 = vmatprep.subr.bf16.mxu0 0
      %1961 = vmatpush1.bf16.msra.mxu0 %v1452
      %1962 = vmatprep.subr.bf16.mxu0 0
      %1963 = vmatpush1.bf16.msra.mxu0 %v1453
      %1964 = vmatprep.subr.bf16.mxu0 0
      %1965 = vmatpush1.bf16.msra.mxu0 %v1454
      %1966 = vmatprep.subr.bf16.mxu0 0
      %1967 = vmatpush1.bf16.msra.mxu0 %v1455
      %1968 = vmatprep.subr.bf16.mxu0 0
      %1969 = vmatpush1.bf16.msra.mxu0 %v1456
      %1970 = vmatprep.subr.bf16.mxu0 0
      %1971 = vmatpush1.bf16.msra.mxu0 %v1457
      %1972 = vmatprep.subr.bf16.mxu0 0
      %1973 = vmatpush1.bf16.msra.mxu0 %v1458
      %1974 = vmatprep.subr.bf16.mxu0 0
      %1975 = vmatpush1.bf16.msra.mxu0 %v1459
      %1976 = vmatprep.subr.bf16.mxu0 0
      %1977 = vmatpush1.bf16.msra.mxu0 %v1460
      %1978 = vmatprep.mubr.bf16.mxu0 %v736
      %1979 = vmatmul.mubr.bf16.gmra.mrb[0].mxu0 %v735
      %v1980 = vpop.f32.mrb[0].mxu0
      %v1981 = vadd.f32 %v1916, %v1980
      %v1982 = vpop.f32.mrb[0].mxu0
      %v1983 = vpop.f32.mrb[0].mxu0
      %v1984 = vadd.f32 %v1919, %v1983
      %v1985 = vpop.f32.mrb[0].mxu0
      %1986 = vmatprep.mubr.bf16.mxu0 %v752
      %1987 = vmatmul.mubr.bf16.gmra.mrb[0].mxu0 %v751
      %v1988 = vpop.f32.mrb[0].mxu0
      %v1989 = vadd.f32 %v1924, %v1988
      %v1990 = vpop.f32.mrb[0].mxu0
      %v1991 = vpop.f32.mrb[0].mxu0
      %v1992 = vadd.f32 %v1927, %v1991
      %v1993 = vpop.f32.mrb[0].mxu0
      %1994 = vmatprep.mubr.bf16.mxu0 %v768
      %1995 = vmatmul.mubr.bf16.gmra.mrb[0].mxu0 %v767
      %v1996 = vpop.f32.mrb[0].mxu0
      %v1997 = vadd.f32 %v1932, %v1996
      %v1998 = vpop.f32.mrb[0].mxu0
      %v1999 = vpop.f32.mrb[0].mxu0
      %v2000 = vadd.f32 %v1935, %v1999
      %v2001 = vpop.f32.mrb[0].mxu0
      %2002 = vmatprep.mubr.bf16.mxu0 %v784
      %2003 = vmatmul.mubr.bf16.gmra.mrb[0].mxu0 %v783
      %v2004 = vpop.f32.mrb[0].mxu0
      %v2005 = vadd.f32 %v1940, %v2004
      %v2006 = vpop.f32.mrb[0].mxu0
      %v2007 = vpop.f32.mrb[0].mxu0
      %v2008 = vadd.f32 %v1943, %v2007
      %v2009 = vpop.f32.mrb[0].mxu0
      %2010 = vdwg.mxu0
      %2011 = vmatprep.subr.bf16.mxu0 0
      %2012 = vmatpush1.bf16.msra.mxu0 %v1461
      %2013 = vmatprep.subr.bf16.mxu0 0
      %2014 = vmatpush1.bf16.msra.mxu0 %v1462
      %2015 = vmatprep.subr.bf16.mxu0 0
      %2016 = vmatpush1.bf16.msra.mxu0 %v1463
      %2017 = vmatprep.subr.bf16.mxu0 0
      %2018 = vmatpush1.bf16.msra.mxu0 %v1464
      %2019 = vmatprep.subr.bf16.mxu0 0
      %2020 = vmatpush1.bf16.msra.mxu0 %v1465
      %2021 = vmatprep.subr.bf16.mxu0 0
      %2022 = vmatpush1.bf16.msra.mxu0 %v1466
      %2023 = vmatprep.subr.bf16.mxu0 0
      %2024 = vmatpush1.bf16.msra.mxu0 %v1467
      %2025 = vmatprep.subr.bf16.mxu0 0
      %2026 = vmatpush1.bf16.msra.mxu0 %v1468
      %2027 = vmatprep.subr.bf16.mxu0 0
      %2028 = vmatpush1.bf16.msra.mxu0 %v1469
      %2029 = vmatprep.subr.bf16.mxu0 0
      %2030 = vmatpush1.bf16.msra.mxu0 %v1470
      %2031 = vmatprep.subr.bf16.mxu0 0
      %2032 = vmatpush1.bf16.msra.mxu0 %v1471
      %2033 = vmatprep.subr.bf16.mxu0 0
      %2034 = vmatpush1.bf16.msra.mxu0 %v1472
      %2035 = vmatprep.subr.bf16.mxu0 0
      %2036 = vmatpush1.bf16.msra.mxu0 %v1473
      %2037 = vmatprep.subr.bf16.mxu0 0
      %2038 = vmatpush1.bf16.msra.mxu0 %v1474
      %2039 = vmatprep.subr.bf16.mxu0 0
      %2040 = vmatpush1.bf16.msra.mxu0 %v1475
      %2041 = vmatprep.subr.bf16.mxu0 0
      %2042 = vmatpush1.bf16.msra.mxu0 %v1476
      %2043 = vmatprep.mubr.bf16.mxu0 %v738
      %2044 = vmatmul.mubr.bf16.gmra.mrb[0].mxu0 %v737
      %v2045 = vpop.f32.mrb[0].mxu0
      %v2046 = vadd.f32 %v1981, %v2045
      %v2047 = vpop.f32.mrb[0].mxu0
      %v2048 = vpop.f32.mrb[0].mxu0
      %v2049 = vadd.f32 %v1984, %v2048
      %v2050 = vpop.f32.mrb[0].mxu0
      %2051 = vmatprep.mubr.bf16.mxu0 %v754
      %2052 = vmatmul.mubr.bf16.gmra.mrb[0].mxu0 %v753
      %v2053 = vpop.f32.mrb[0].mxu0
      %v2054 = vadd.f32 %v1989, %v2053
      %v2055 = vpop.f32.mrb[0].mxu0
      %v2056 = vpop.f32.mrb[0].mxu0
      %v2057 = vadd.f32 %v1992, %v2056
      %v2058 = vpop.f32.mrb[0].mxu0
      %2059 = vmatprep.mubr.bf16.mxu0 %v770
      %2060 = vmatmul.mubr.bf16.gmra.mrb[0].mxu0 %v769
      %v2061 = vpop.f32.mrb[0].mxu0
      %v2062 = vadd.f32 %v1997, %v2061
      %v2063 = vpop.f32.mrb[0].mxu0
      %v2064 = vpop.f32.mrb[0].mxu0
      %v2065 = vadd.f32 %v2000, %v2064
      %v2066 = vpop.f32.mrb[0].mxu0
      %2067 = vmatprep.mubr.bf16.mxu0 %v786
      %2068 = vmatmul.mubr.bf16.gmra.mrb[0].mxu0 %v785
      %v2069 = vpop.f32.mrb[0].mxu0
      %v2070 = vadd.f32 %v2005, %v2069
      %v2071 = vpop.f32.mrb[0].mxu0
      %v2072 = vpop.f32.mrb[0].mxu0
      %v2073 = vadd.f32 %v2008, %v2072
      %v2074 = vpop.f32.mrb[0].mxu0
      %2075 = vdwg.mxu0
      %2076 = vmatprep.subr.bf16.mxu0 0
      %2077 = vmatpush1.bf16.msra.mxu0 %v1477
      %2078 = vmatprep.subr.bf16.mxu0 0
      %2079 = vmatpush1.bf16.msra.mxu0 %v1478
      %2080 = vmatprep.subr.bf16.mxu0 0
      %2081 = vmatpush1.bf16.msra.mxu0 %v1479
      %2082 = vmatprep.subr.bf16.mxu0 0
      %2083 = vmatpush1.bf16.msra.mxu0 %v1480
      %2084 = vmatprep.subr.bf16.mxu0 0
      %2085 = vmatpush1.bf16.msra.mxu0 %v1481
      %2086 = vmatprep.subr.bf16.mxu0 0
      %2087 = vmatpush1.bf16.msra.mxu0 %v1482
      %2088 = vmatprep.subr.bf16.mxu0 0
      %2089 = vmatpush1.bf16.msra.mxu0 %v1483
      %2090 = vmatprep.subr.bf16.mxu0 0
      %2091 = vmatpush1.bf16.msra.mxu0 %v1484
      %2092 = vmatprep.subr.bf16.mxu0 0
      %2093 = vmatpush1.bf16.msra.mxu0 %v1485
      %2094 = vmatprep.subr.bf16.mxu0 0
      %2095 = vmatpush1.bf16.msra.mxu0 %v1486
      %2096 = vmatprep.subr.bf16.mxu0 0
      %2097 = vmatpush1.bf16.msra.mxu0 %v1487
      %2098 = vmatprep.subr.bf16.mxu0 0
      %2099 = vmatpush1.bf16.msra.mxu0 %v1488
      %2100 = vmatprep.subr.bf16.mxu0 0
      %2101 = vmatpush1.bf16.msra.mxu0 %v1489
      %2102 = vmatprep.subr.bf16.mxu0 0
      %2103 = vmatpush1.bf16.msra.mxu0 %v1490
      %2104 = vmatprep.subr.bf16.mxu0 0
      %2105 = vmatpush1.bf16.msra.mxu0 %v1491
      %2106 = vmatprep.subr.bf16.mxu0 0
      %2107 = vmatpush1.bf16.msra.mxu0 %v1492
      %2108 = vmatprep.mubr.bf16.mxu0 %v740
      %2109 = vmatmul.mubr.bf16.gmra.mrb[0].mxu0 %v739
      %v2110 = vpop.f32.mrb[0].mxu0
      %v2111 = vadd.f32 %v2046, %v2110
      %v2112 = vpop.f32.mrb[0].mxu0
      %v2113 = vpop.f32.mrb[0].mxu0
      %v2114 = vadd.f32 %v2049, %v2113
      %v2115 = vpop.f32.mrb[0].mxu0
      %2116 = vmatprep.mubr.bf16.mxu0 %v756
      %2117 = vmatmul.mubr.bf16.gmra.mrb[0].mxu0 %v755
      %v2118 = vpop.f32.mrb[0].mxu0
      %v2119 = vadd.f32 %v2054, %v2118
      %v2120 = vpop.f32.mrb[0].mxu0
      %v2121 = vpop.f32.mrb[0].mxu0
      %v2122 = vadd.f32 %v2057, %v2121
      %v2123 = vpop.f32.mrb[0].mxu0
      %2124 = vmatprep.mubr.bf16.mxu0 %v772
      %2125 = vmatmul.mubr.bf16.gmra.mrb[0].mxu0 %v771
      %v2126 = vpop.f32.mrb[0].mxu0
      %v2127 = vadd.f32 %v2062, %v2126
      %v2128 = vpop.f32.mrb[0].mxu0
      %v2129 = vpop.f32.mrb[0].mxu0
      %v2130 = vadd.f32 %v2065, %v2129
      %v2131 = vpop.f32.mrb[0].mxu0
      %2132 = vmatprep.mubr.bf16.mxu0 %v788
      %2133 = vmatmul.mubr.bf16.gmra.mrb[0].mxu0 %v787
      %v2134 = vpop.f32.mrb[0].mxu0
      %v2135 = vadd.f32 %v2070, %v2134
      %v2136 = vpop.f32.mrb[0].mxu0
      %v2137 = vpop.f32.mrb[0].mxu0
      %v2138 = vadd.f32 %v2073, %v2137
      %v2139 = vpop.f32.mrb[0].mxu0
      %2140 = vdwg.mxu0
      %v2141 = vpack.c.bf16 %v2114, %v2111
      %v2142 = vpack.c.bf16 %v2122, %v2119
      %v2143 = vpack.c.bf16 %v2130, %v2127
      %v2144 = vpack.c.bf16 %v2138, %v2135
      %v2149 = vunpack.c.l.b16 %v2141
      %v2150 = vunpack.c.h.b16 %v2141
      %v2151 = vunpack.c.l.b16 %v2142
      %v2152 = vunpack.c.h.b16 %v2142
      %v2153 = vunpack.c.l.b16 %v2143
      %v2154 = vunpack.c.h.b16 %v2143
      %v2155 = vunpack.c.l.b16 %v2144
      %v2156 = vunpack.c.h.b16 %v2144
      %v2157 = vpack.c.b16 %v2149, %v2149
      %v2158 = vpack.c.b16 %v2150, %v2150
      %v2159 = vpack.c.b16 %v2151, %v2151
      %v2160 = vpack.c.b16 %v2152, %v2152
      %v2161 = vpack.c.b16 %v2153, %v2153
      %v2162 = vpack.c.b16 %v2154, %v2154
      %v2163 = vpack.c.b16 %v2155, %v2155
      %v2164 = vpack.c.b16 %v2156, %v2156
      %2173 = vst [vmem:[%s205] sm:$0xf] %v2157
      %2174 = vst [vmem:[%s205 + $0x4] sm:$0xf] %v2158
      %2175 = vst [vmem:[%s205 + $0x8] sm:$0xf] %v2159
      %2176 = vst [vmem:[%s205 + $0xc] sm:$0xf] %v2160
      %2177 = vst [vmem:[%s205 + $0x10] sm:$0xf] %v2161
      %2178 = vst [vmem:[%s205 + $0x14] sm:$0xf] %v2162
      %2179 = vst [vmem:[%s205 + $0x18] sm:$0xf] %v2163
      %2180 = vst [vmem:[%s205 + $0x1c] sm:$0xf] %v2164
      %v2181 = vadd.f32 %v2111, %v2114
      %v2182 = vadd.f32 %v2181, %v2119
      %v2183 = vadd.f32 %v2182, %v2122
      %v2184 = vadd.f32 %v2183, %v2127
      %v2185 = vadd.f32 %v2184, %v2130
      %v2186 = vadd.f32 %v2185, %v2135
      %v2187 = vadd.f32 %v2186, %v2138
      %v2188 = vrot.slane %v2187, 4
      %v2189 = vadd.f32 %v2187, %v2188
      %v2190 = vrot.slane %v2189, 2
      %v2191 = vadd.f32 %v2189, %v2190
      %v2192 = vrot.slane %v2191, 1
      %v2193 = vadd.f32 %v2191, %v2192
      %v2194 = vmul.f32 %v2111, %v2111
      %v2195 = vmul.f32 %v2114, %v2114
      %v2196 = vmul.f32 %v2119, %v2119
      %v2197 = vmul.f32 %v2122, %v2122
      %v2198 = vmul.f32 %v2127, %v2127
      %v2199 = vmul.f32 %v2130, %v2130
      %v2200 = vmul.f32 %v2135, %v2135
      %v2201 = vmul.f32 %v2138, %v2138
      %v2202 = vadd.f32 %v2194, %v2195
      %v2203 = vadd.f32 %v2202, %v2196
      %v2204 = vadd.f32 %v2203, %v2197
      %v2205 = vadd.f32 %v2204, %v2198
      %v2206 = vadd.f32 %v2205, %v2199
      %v2207 = vadd.f32 %v2206, %v2200
      %v2208 = vadd.f32 %v2207, %v2201
      %v2209 = vrot.slane %v2208, 4
      %v2210 = vadd.f32 %v2208, %v2209
      %v2211 = vrot.slane %v2210, 2
      %v2212 = vadd.f32 %v2210, %v2211
      %v2213 = vrot.slane %v2212, 1
      %v2214 = vadd.f32 %v2212, %v2213
      %p2215 = scmp.eq.s32.totalorder %s20, 0
      // Predicated region
      $region29: #{dcgan_discriminator_forward.7} parent=27 // pred_check
        %p2216 = pneg %p2215
      $region30: #{dcgan_discriminator_forward.7} parent=27 // pred_check_branch
        %2218 = sbr.rel (%p2216) target = $region32
      $region31: #{dcgan_discriminator_forward.7} parent=27 // pred_region
        %2219 = vst [vmem:[#allocation2] sm:$0x3] 0.0
      $region32: #{dcgan_discriminator_forward.7} parent=27 // pred_fallthru
        _
      %v2220 = vld [vmem:[#allocation2] sm:$0x1]
      %v2221 = vadd.f32 %v2220, %v2193
      %2222 = vst [vmem:[#allocation2] sm:$0x1] %v2221
      %v2223 = vld [vmem:[#allocation2 + $0x1] sm:$0x1]
      %v2224 = vadd.f32 %v2223, %v2214
      %2225 = vst [vmem:[#allocation2 + $0x1] sm:$0x1] %v2224
      // Predicated region
      $region33: #{dcgan_discriminator_forward.7} parent=27 // pred_check
        %p2226 = pneg %p2215
      $region34: #{dcgan_discriminator_forward.7} parent=27 // pred_check_branch
        %2228 = sbr.rel (%p2226) target = $region36
      $region35: #{dcgan_discriminator_forward.7} parent=27 // pred_region
        %v2229 = vld [vmem:[#allocation2] sm:$0x3]
        %2230 = vst [vmem:[%s211] sm:$0x3] %v2229
      $region36: #{dcgan_discriminator_forward.7} parent=27 // pred_fallthru
        _
      %s2231 = sadd.s32 %s19, %s20
      %s2232 = smul.u32 8, %s2231
      %p2233 = scmp.lt.s32.totalorder %s2232, 15
      %s2234 = scalar_select %p2233, %s2232, 15
      %s2235 = smul.addr %s2234, 4
      %s2236 = scalar_lea.vmem %s2, %s2235
      %p2237 = scmp.lt.s32.totalorder %s19, 1
      %s2238 = scalar_select %p2237, %s19, 1
      %s2239 = smul.addr %s2238, 2
      %s2240 = scalar_lea.vmem %s3, %s2239
      // Predicated region
      $region37: #{dcgan_discriminator_forward.7} parent=27 // pred_check
        %p2241 = pneg %p96
      $region38: #{dcgan_discriminator_forward.7} parent=27 // pred_check_branch
        %2243 = sbr.rel (%p2241) target = $region40
      $region39: #{dcgan_discriminator_forward.7} parent=27 // pred_region
        %s2244 = sadd.s32 %s19, %s20
        %s2245 = smul.u32 8, %s2244
      $region40: #{dcgan_discriminator_forward.7} parent=27 // pred_fallthru
        _
      // Predicated region
      $region41: #{dcgan_discriminator_forward.7} parent=27 // pred_check
        %p2246 = pneg %p122
      $region42: #{dcgan_discriminator_forward.7} parent=27 // pred_check_branch
        %2248 = sbr.rel (%p2246) target = $region44
      $region43: #{dcgan_discriminator_forward.7} parent=27 // pred_region
        _
      $region44: #{dcgan_discriminator_forward.7} parent=27 // pred_fallthru
        _
    $region28: #{dcgan_discriminator_forward.7} parent=5 // pred_fallthru
      _
    %p2249 = scmp.le.s32.totalorder 2, %s10
    // Predicated region
    $region45: #{dcgan_discriminator_forward.7} parent=5 // pred_check
      %p2250 = pneg %p2249
    $region46: #{dcgan_discriminator_forward.7} parent=5 // pred_check_branch
      %2252 = sbr.rel (%p2250) target = $region48
    $region47: #{dcgan_discriminator_forward.7} parent=5 // pred_region
      %s2253 = ssub.s32 %s10, 2
      // Predicated region
      $region49: #{dcgan_discriminator_forward.7} parent=47 // pred_check
        %p2254 = pneg %p102
      $region50: #{dcgan_discriminator_forward.7} parent=47 // pred_check_branch
        %2256 = sbr.rel (%p2254) target = $region52
      $region51: #{dcgan_discriminator_forward.7} parent=47 // pred_region
        %s2257 = sadd.s32 %s21, %s22
        %s2258 = smul.u32 8, %s2257
        %p2259 = scmp.lt.s32.totalorder %s2258, 15
        %s2260 = scalar_select %p2259, %s2258, 15
        %s2261 = smul.addr %s2260, 4
        %s2262 = scalar_lea.vmem %s2, %s2261
      $region52: #{dcgan_discriminator_forward.7} parent=47 // pred_fallthru
        _
      // Predicated region
      $region53: #{dcgan_discriminator_forward.7} parent=47 // pred_check
        %p2263 = pneg %p128
      $region54: #{dcgan_discriminator_forward.7} parent=47 // pred_check_branch
        %2265 = sbr.rel (%p2263) target = $region56
      $region55: #{dcgan_discriminator_forward.7} parent=47 // pred_region
        %p2266 = scmp.lt.s32.totalorder %s21, 1
        %s2267 = scalar_select %p2266, %s21, 1
        %s2268 = smul.addr %s2267, 2
        %s2269 = scalar_lea.vmem %s3, %s2268
      $region56: #{dcgan_discriminator_forward.7} parent=47 // pred_fallthru
        _
    $region48: #{dcgan_discriminator_forward.7} parent=5 // pred_fallthru
      _
  $region6: #{dcgan_discriminator_forward.7} parent=0 // loop_footer
    %s14 = sadd.s32 1, %s10
  $region7: #{dcgan_discriminator_forward.7} parent=0 // loop_footer_branch
    %9 = sbr.rel target = $region3
  $region8: #{dcgan_discriminator_forward.7} parent=0 // loop_exit
    _

// kernel: dcgan_discriminator_forward.10
$region0: #{dcgan_discriminator_forward.10}
  #allocation0 [shape = 'u32[]', space=smem, size = 0x4, offset = 0x4, fixed_abs, tag = 'smem constant byte address 0x4 - core index']
  #allocation1 [shape = 'u32[144,128]{1,0:T(1,128)}', space=vmem, size = 0x12000, scoped, tag = 'internal scratch']
  %s0 = inlined_call_operand.vmem [shape: bf16[32,128], index: 0, kind: input, shape index: {}]
  %s1 = inlined_call_operand.vmem [shape: f32[2,128], index: 1, kind: input, shape index: {}]
  %s2 = inlined_call_operand.vmem [shape: f32[1,128], index: 2, kind: input, shape index: {}]
  %s3 = inlined_call_operand.vmem [shape: f32[1,128], index: 3, kind: input, shape index: {}]
  %s4 = inlined_call_operand.vmem [shape: bf16[32,128], index: 4, kind: output, shape index: {}]
  %s5 = sld [smem:[#allocation0]]
  $region26: #{dcgan_discriminator_forward.10} parent=0
    _
  %s7 = ssub.s32 1, %s5
  %s8 = scalar_select 0, %s7, %s5
  // Predicated region
  $region2: #{dcgan_discriminator_forward.10} parent=0 // pred_check
    _
  $region3: #{dcgan_discriminator_forward.10} parent=0 // pred_check_branch
    %10 = sbr.rel (0) target = $region5
  $region4: #{dcgan_discriminator_forward.10} parent=0 // pred_region
    _
  $region5: #{dcgan_discriminator_forward.10} parent=0 // pred_fallthru
    _
  // Predicated region
  $region6: #{dcgan_discriminator_forward.10} parent=0 // pred_check
    _
  $region7: #{dcgan_discriminator_forward.10} parent=0 // pred_check_branch
    %12 = sbr.rel (0) target = $region9
  $region8: #{dcgan_discriminator_forward.10} parent=0 // pred_region
    _
  $region9: #{dcgan_discriminator_forward.10} parent=0 // pred_fallthru
    _
  // Predicated region
  $region10: #{dcgan_discriminator_forward.10} parent=0 // pred_check
    _
  $region11: #{dcgan_discriminator_forward.10} parent=0 // pred_check_branch
    %14 = sbr.rel (0) target = $region13
  $region12: #{dcgan_discriminator_forward.10} parent=0 // pred_region
    _
  $region13: #{dcgan_discriminator_forward.10} parent=0 // pred_fallthru
    _
  // Predicated region
  $region14: #{dcgan_discriminator_forward.10} parent=0 // pred_check
    _
  $region15: #{dcgan_discriminator_forward.10} parent=0 // pred_check_branch
    %16 = sbr.rel (0) target = $region17
  $region16: #{dcgan_discriminator_forward.10} parent=0 // pred_region
    _
  $region17: #{dcgan_discriminator_forward.10} parent=0 // pred_fallthru
    _
  %v17 = vld [vmem:[%s0] sm:$0xf]
  %v18 = vld [vmem:[%s0 + $0x4] sm:$0xf]
  %v19 = vld [vmem:[%s0 + $0x8] sm:$0xf]
  %v20 = vld [vmem:[%s0 + $0xc] sm:$0xf]
  %v21 = vunpack.c.l.bf16 %v17
  %v22 = vunpack.c.l.bf16 %v18
  %v23 = vunpack.c.l.bf16 %v19
  %v24 = vunpack.c.l.bf16 %v20
  %v25 = vld [vmem:[%s1] sm:$0x1]
  %v26 = vmul.f32 %v25, 0.03125
  %v27 = vld [vmem:[%s1 + $0x1] sm:$0x1]
  %v28 = vmul.f32 %v27, 0.03125
  %v29 = vmul.f32 %v26, %v26
  %v30 = vsub.f32 %v28, %v29
  %v31 = vmax.f32 %v30, 0.0
  %v32 = vadd.f32 %v31, 1e-05
  %v33 = vrsqrt.pop %v32
  %v34 = vld [vmem:[%s2] sm:$0x1]
  %v35 = vmul.f32 %v33, %v34
  %v36 = vld [vmem:[%s3] sm:$0x1]
  %v37 = vmul.f32 %v26, %v35
  %v38 = vsub.f32 %v36, %v37
  %v39 = vlaneseq
  %v40 = vshrl.u32 %v39, 7
  %v41 = vsub.s32 0, %v40
  %v42 = vrot.slane %v35, %v41
  %v43 = vmul.f32 %v21, %v42
  %v44 = vmul.f32 %v22, %v42
  %v45 = vmul.f32 %v23, %v42
  %v46 = vmul.f32 %v24, %v42
  %v48 = vlaneseq
  %v49 = vshrl.u32 %v48, 7
  %v50 = vsub.s32 0, %v49
  %v51 = vrot.slane %v38, %v50
  %v53 = vadd.f32 %v43, %v51
  %v54 = vadd.f32 %v44, %v51
  %v55 = vadd.f32 %v45, %v51
  %v56 = vadd.f32 %v46, %v51
  %vm57 = vcmp.ge.f32.partialorder %v53, 0.0
  %vm58 = vcmp.ge.f32.partialorder %v54, 0.0
  %vm59 = vcmp.ge.f32.partialorder %v55, 0.0
  %vm60 = vcmp.ge.f32.partialorder %v56, 0.0
  %v61 = vmul.f32 %v53, 0.2
  %v62 = vmul.f32 %v54, 0.2
  %v63 = vmul.f32 %v55, 0.2
  %v64 = vmul.f32 %v56, 0.2
  %v65 = vsel %vm57, %v53, %v61
  %v66 = vsel %vm58, %v54, %v62
  %v67 = vsel %vm59, %v55, %v63
  %v68 = vsel %vm60, %v56, %v64
  %v69 = vpack.c.bf16 %v66, %v65
  %v70 = vpack.c.bf16 %v68, %v67
  %v73 = vunpack.c.l.b16 %v69
  %v74 = vunpack.c.h.b16 %v69
  %v75 = vunpack.c.l.b16 %v70
  %v76 = vunpack.c.h.b16 %v70
  %v77 = vpack.c.b16 %v73, %v73
  %v78 = vpack.c.b16 %v74, %v74
  %v79 = vpack.c.b16 %v75, %v75
  %v80 = vpack.c.b16 %v76, %v76
  %85 = vst [vmem:[%s4] sm:$0xf] %v77
  %86 = vst [vmem:[%s4 + $0x4] sm:$0xf] %v78
  %87 = vst [vmem:[%s4 + $0x8] sm:$0xf] %v79
  %88 = vst [vmem:[%s4 + $0xc] sm:$0xf] %v80
  // Predicated region
  $region18: #{dcgan_discriminator_forward.10} parent=0 // pred_check
    _
  $region19: #{dcgan_discriminator_forward.10} parent=0 // pred_check_branch
    %90 = sbr.rel (0) target = $region21
  $region20: #{dcgan_discriminator_forward.10} parent=0 // pred_region
    _
  $region21: #{dcgan_discriminator_forward.10} parent=0 // pred_fallthru
    _
  // Predicated region
  $region22: #{dcgan_discriminator_forward.10} parent=0 // pred_check
    _
  $region23: #{dcgan_discriminator_forward.10} parent=0 // pred_check_branch
    %92 = sbr.rel (0) target = $region25
  $region24: #{dcgan_discriminator_forward.10} parent=0 // pred_region
    _
  $region25: #{dcgan_discriminator_forward.10} parent=0 // pred_fallthru
    _

// kernel: dcgan_discriminator_forward.9
$region0: #{dcgan_discriminator_forward.9}
  #allocation0 [shape = 'u32[]', space=smem, size = 0x4, offset = 0x4, fixed_abs, tag = 'smem constant byte address 0x4 - core index']
  #allocation1 [shape = 'u32[144,128]{1,0:T(1,128)}', space=vmem, size = 0x12000, scoped, tag = 'internal scratch']
  #allocation2 [shape = 'f32[2,128]{1,0:T(2,128)}', space=vmem, size = 0x400, scoped, tag = 'scratch operand']
  %s0 = inlined_call_operand.vmem [shape: bf16[32,2048], index: 0, kind: input, shape index: {}]
  %s1 = inlined_call_operand.vmem [shape: bf16[2048,128], index: 1, kind: input, shape index: {}]
  %s2 = inlined_call_operand.vmem [shape: bf16[32,128], index: 2, kind: output, shape index: {0}]
  %s3 = inlined_call_operand.vmem [shape: f32[2,256], index: 3, kind: output, shape index: {1}]
  %4 = xla_tuple %s2, %s3
  %s5 = sld [smem:[#allocation0]]
  $region57: #{dcgan_discriminator_forward.9} parent=0
    _
  %s7 = ssub.s32 1, %s5
  %s8 = scalar_select 0, %s7, %s5
  loop: start=0, step=1, limit=4
  $region2: #{dcgan_discriminator_forward.9} parent=0 // loop_pre_header
    _
  $region3: #{dcgan_discriminator_forward.9} parent=0 // loop_header
    %s10 = sphi 0, %s14
    %p11 = scmp.ge.s32.totalorder %s10, 4
    %s17 = sphi 0, %s29
    %s18 = sphi 0, %s25
    %s19 = sphi 0, %s17
    %s20 = sphi 0, %s18
    %s21 = sphi 0, %s19
    %s22 = sphi 0, %s20
    %s34 = sphi 0, %s36
    %s37 = sphi 0, %s34
    %s38 = sphi 0, %s37
    %s54 = sphi 0, %s38
    %s58 = sphi 0, %s58
    %s60 = sphi 0, %s58
    %s61 = sphi 0, %s60
    %s75 = sphi 0, %s61
    %s83 = sphi 0, %s85
    %s86 = sphi 0, %s83
    %s87 = sphi 0, %s86
    %s103 = sphi 0, %s87
    %s109 = sphi 0, %s111
    %s112 = sphi 0, %s109
    %s113 = sphi 0, %s112
    %s129 = sphi 0, %s113
  $region4: #{dcgan_discriminator_forward.9} parent=0 // loop_header_branch
    %13 = sbr.rel (%p11) target = $region8
  $region5: #{dcgan_discriminator_forward.9} parent=0 // loop_body
    %s15 = ssub.s32 %s10, 1
    %s16 = ssub.s32 %s10, 2
    %s23 = sadd.s32 1, %s18
    %p24 = scmp.ge.s32.totalorder %s23, 1
    %s25 = scalar_select %p24, 0, %s23
    %s26 = sadd.s32 1, %s17
    %s27 = scalar_select %p24, %s26, %s17
    %p28 = scmp.ge.s32.totalorder %s27, 2
    %s29 = scalar_select %p28, 0, %s27
    %s30 = sadd.s32 %s17, %s18
    %s31 = sadd.s32 %s29, %s25
    %s32 = ssub.s32 %s30, %s31
    %p33 = scmp.eq.s32.totalorder %s32, 0
    %s35 = sadd.s32 %s34, 1
    %s36 = scalar_select %p33, %s34, %s35
    %p39 = pneg %p33
    %p40 = scmp.eq.s32.totalorder %s10, 1
    %p41 = por %p39, %p40
    %p42 = scmp.ne.s32.totalorder %s34, %s37
    %p43 = scmp.eq.s32.totalorder %s10, 0
    %p44 = por %p42, %p43
    %p45 = scmp.ne.s32.totalorder %s34, %s37
    %p46 = scmp.eq.s32.totalorder %s15, 1
    %p47 = por %p45, %p46
    %p48 = scmp.ne.s32.totalorder %s37, %s38
    %p49 = scmp.eq.s32.totalorder %s15, 0
    %p50 = por %p48, %p49
    %p51 = scmp.ne.s32.totalorder %s37, %s38
    %p52 = scmp.eq.s32.totalorder %s16, 1
    %p53 = por %p51, %p52
    %p55 = scmp.ne.s32.totalorder %s38, %s54
    %p56 = scmp.eq.s32.totalorder %s16, 0
    %p57 = por %p55, %p56
    %s59 = sadd.s32 %s58, 1
    %p62 = scmp.eq.s32.totalorder %s10, 1
    %p63 = scmp.ne.s32.totalorder %s58, %s60
    %p64 = scmp.eq.s32.totalorder %s10, 0
    %p65 = por %p63, %p64
    %p66 = scmp.ne.s32.totalorder %s58, %s60
    %p67 = scmp.eq.s32.totalorder %s15, 1
    %p68 = por %p66, %p67
    %p69 = scmp.ne.s32.totalorder %s60, %s61
    %p70 = scmp.eq.s32.totalorder %s15, 0
    %p71 = por %p69, %p70
    %p72 = scmp.ne.s32.totalorder %s60, %s61
    %p73 = scmp.eq.s32.totalorder %s16, 1
    %p74 = por %p72, %p73
    %p76 = scmp.ne.s32.totalorder %s61, %s75
    %p77 = scmp.eq.s32.totalorder %s16, 0
    %p78 = por %p76, %p77
    %s79 = sadd.s32 %s17, %s18
    %s80 = sadd.s32 %s29, %s25
    %s81 = ssub.s32 %s79, %s80
    %p82 = scmp.eq.s32.totalorder %s81, 0
    %s84 = sadd.s32 %s83, 1
    %s85 = scalar_select %p82, %s83, %s84
    %p88 = pneg %p82
    %p89 = scmp.eq.s32.totalorder %s10, 1
    %p90 = por %p88, %p89
    %p91 = scmp.ne.s32.totalorder %s83, %s86
    %p92 = scmp.eq.s32.totalorder %s10, 0
    %p93 = por %p91, %p92
    %p94 = scmp.ne.s32.totalorder %s83, %s86
    %p95 = scmp.eq.s32.totalorder %s15, 1
    %p96 = por %p94, %p95
    %p97 = scmp.ne.s32.totalorder %s86, %s87
    %p98 = scmp.eq.s32.totalorder %s15, 0
    %p99 = por %p97, %p98
    %p100 = scmp.ne.s32.totalorder %s86, %s87
    %p101 = scmp.eq.s32.totalorder %s16, 1
    %p102 = por %p100, %p101
    %p104 = scmp.ne.s32.totalorder %s87, %s103
    %p105 = scmp.eq.s32.totalorder %s16, 0
    %p106 = por %p104, %p105
    %s107 = ssub.s32 %s17, %s29
    %p108 = scmp.eq.s32.totalorder %s107, 0
    %s110 = sadd.s32 %s109, 1
    %s111 = scalar_select %p108, %s109, %s110
    %p114 = pneg %p108
    %p115 = scmp.eq.s32.totalorder %s10, 1
    %p116 = por %p114, %p115
    %p117 = scmp.ne.s32.totalorder %s109, %s112
    %p118 = scmp.eq.s32.totalorder %s10, 0
    %p119 = por %p117, %p118
    %p120 = scmp.ne.s32.totalorder %s109, %s112
    %p121 = scmp.eq.s32.totalorder %s15, 1
    %p122 = por %p120, %p121
    %p123 = scmp.ne.s32.totalorder %s112, %s113
    %p124 = scmp.eq.s32.totalorder %s15, 0
    %p125 = por %p123, %p124
    %p126 = scmp.ne.s32.totalorder %s112, %s113
    %p127 = scmp.eq.s32.totalorder %s16, 1
    %p128 = por %p126, %p127
    %p130 = scmp.ne.s32.totalorder %s113, %s129
    %p131 = scmp.eq.s32.totalorder %s16, 0
    %p132 = por %p130, %p131
    %p133 = scmp.le.s32.totalorder 1, %s10
    %p134 = scmp.lt.s32.totalorder %s10, 3
    %p135 = pnand %p133, %p134
    %p136 = pneg %p135
    // Predicated region
    $region9: #{dcgan_discriminator_forward.9} parent=5 // pred_check
      _
    $region10: #{dcgan_discriminator_forward.9} parent=5 // pred_check_branch
      %138 = sbr.rel (%p135) target = $region12
    $region11: #{dcgan_discriminator_forward.9} parent=5 // pred_region
      %s139 = ssub.s32 %s10, 1
      // Predicated region
      $region13: #{dcgan_discriminator_forward.9} parent=11 // pred_check
        %p140 = pneg %p71
      $region14: #{dcgan_discriminator_forward.9} parent=11 // pred_check_branch
        %142 = sbr.rel (%p140) target = $region16
      $region15: #{dcgan_discriminator_forward.9} parent=11 // pred_region
        _
      $region16: #{dcgan_discriminator_forward.9} parent=11 // pred_fallthru
        _
    $region12: #{dcgan_discriminator_forward.9} parent=5 // pred_fallthru
      _
    %p143 = scmp.lt.s32.totalorder %s10, 2
    // Predicated region
    $region17: #{dcgan_discriminator_forward.9} parent=5 // pred_check
      %p144 = pneg %p143
    $region18: #{dcgan_discriminator_forward.9} parent=5 // pred_check_branch
      %146 = sbr.rel (%p144) target = $region20
    $region19: #{dcgan_discriminator_forward.9} parent=5 // pred_region
      // Predicated region
      $region21: #{dcgan_discriminator_forward.9} parent=19 // pred_check
        %p147 = pneg %p44
      $region22: #{dcgan_discriminator_forward.9} parent=19 // pred_check_branch
        %149 = sbr.rel (%p147) target = $region24
      $region23: #{dcgan_discriminator_forward.9} parent=19 // pred_region
        %s150 = sadd.s32 %s17, %s18
        %s151 = smul.u32 2, %s150
        %p152 = scmp.lt.s32.totalorder %s151, 3
        %s153 = scalar_select %p152, %s151, 3
        %s154 = smul.addr %s153, 16
        %s155 = smul.addr %s154, 4
        %s156 = scalar_lea.vmem %s0, %s155
        %s157 = sadd.s32 %s17, %s18
        %s158 = smul.u32 2, %s157
      $region24: #{dcgan_discriminator_forward.9} parent=19 // pred_fallthru
        _
    $region20: #{dcgan_discriminator_forward.9} parent=5 // pred_fallthru
      _
    %p159 = scmp.le.s32.totalorder 1, %s10
    %p160 = scmp.lt.s32.totalorder %s10, 3
    %p161 = pnand %p159, %p160
    %p162 = pneg %p161
    // Predicated region
    $region25: #{dcgan_discriminator_forward.9} parent=5 // pred_check
      _
    $region26: #{dcgan_discriminator_forward.9} parent=5 // pred_check_branch
      %164 = sbr.rel (%p161) target = $region28
    $region27: #{dcgan_discriminator_forward.9} parent=5 // pred_region
      %s165 = ssub.s32 %s10, 1
      %s166 = sadd.s32 %s19, %s20
      %s167 = smul.u32 2, %s166
      %p168 = scmp.lt.s32.totalorder %s167, 3
      %s169 = scalar_select %p168, %s167, 3
      %s170 = smul.addr %s169, 16
      %s171 = smul.addr %s170, 4
      %s172 = scalar_lea.vmem %s0, %s171
      %p173 = pneg %p50
      %p174 = pneg %p47
      %p175 = pneg %p71
      %p176 = pneg %p68
      %p177 = pneg %p99
      %p178 = pneg %p96
      %s179 = sadd.s32 %s19, %s20
      %s180 = smul.u32 2, %s179
      %p181 = scmp.lt.s32.totalorder %s180, 3
      %s182 = scalar_select %p181, %s180, 3
      %s183 = smul.addr %s182, 4
      %s184 = scalar_lea.vmem %s2, %s183
      %p185 = pneg %p125
      %p186 = pneg %p122
      %p187 = scmp.lt.s32.totalorder %s19, 1
      %s188 = scalar_select %p187, %s19, 1
      %s189 = smul.addr %s188, 2
      %s190 = scalar_lea.vmem %s3, %s189
      %s191 = sadd.s32 %s19, %s20
      %s192 = smul.u32 2, %s191
      %p193 = scmp.lt.s32.totalorder %s192, 3
      %s194 = scalar_select %p193, %s192, 3
      %s195 = smul.addr %s194, 16
      %s196 = smul.addr %s195, 4
      %s197 = scalar_lea.vmem %s0, %s196
      %s198 = sadd.s32 %s19, %s20
      %s199 = smul.u32 2, %s198
      %s200 = sadd.s32 %s19, %s20
      %s201 = smul.u32 2, %s200
      %p202 = scmp.lt.s32.totalorder %s201, 3
      %s203 = scalar_select %p202, %s201, 3
      %s204 = smul.addr %s203, 4
      %s205 = scalar_lea.vmem %s2, %s204
      %s206 = sadd.s32 %s19, %s20
      %s207 = smul.u32 2, %s206
      %p208 = scmp.lt.s32.totalorder %s19, 1
      %s209 = scalar_select %p208, %s19, 1
      %s210 = smul.addr %s209, 2
      %s211 = scalar_lea.vmem %s3, %s210
      %v213 = vld [vmem:[%s197] sm:$0xff]
      %v214 = vld [vmem:[%s197 + $0x8] sm:$0xff]
      %v215 = vld [vmem:[%s197 + $0x10] sm:$0xff]
      %v216 = vld [vmem:[%s197 + $0x18] sm:$0xff]
      %v217 = vld [vmem:[%s197 + $0x20] sm:$0xff]
      %v218 = vld [vmem:[%s197 + $0x28] sm:$0xff]
      %v219 = vld [vmem:[%s197 + $0x30] sm:$0xff]
      %v220 = vld [vmem:[%s197 + $0x38] sm:$0xff]
      %v221 = vld [vmem:[%s197 + $0x40] sm:$0xff]
      %v222 = vld [vmem:[%s197 + $0x48] sm:$0xff]
      %v223 = vld [vmem:[%s197 + $0x50] sm:$0xff]
      %v224 = vld [vmem:[%s197 + $0x58] sm:$0xff]
      %v225 = vld [vmem:[%s197 + $0x60] sm:$0xff]
      %v226 = vld [vmem:[%s197 + $0x68] sm:$0xff]
      %v227 = vld [vmem:[%s197 + $0x70] sm:$0xff]
      %v228 = vld [vmem:[%s197 + $0x78] sm:$0xff]
      %v229 = vld [vmem:[%s1] sm:$0xf]
      %v230 = vld [vmem:[%s1 + $0x4] sm:$0xf]
      %v231 = vld [vmem:[%s1 + $0x8] sm:$0xf]
      %v232 = vld [vmem:[%s1 + $0xc] sm:$0xf]
      %v233 = vld [vmem:[%s1 + $0x10] sm:$0xf]
      %v234 = vld [vmem:[%s1 + $0x14] sm:$0xf]
      %v235 = vld [vmem:[%s1 + $0x18] sm:$0xf]
      %v236 = vld [vmem:[%s1 + $0x1c] sm:$0xf]
      %v237 = vld [vmem:[%s1 + $0x20] sm:$0xf]
      %v238 = vld [vmem:[%s1 + $0x24] sm:$0xf]
      %v239 = vld [vmem:[%s1 + $0x28] sm:$0xf]
      %v240 = vld [vmem:[%s1 + $0x2c] sm:$0xf]
      %v241 = vld [vmem:[%s1 + $0x30] sm:$0xf]
      %v242 = vld [vmem:[%s1 + $0x34] sm:$0xf]
      %v243 = vld [vmem:[%s1 + $0x38] sm:$0xf]
      %v244 = vld [vmem:[%s1 + $0x3c] sm:$0xf]
      %v245 = vld [vmem:[%s1 + $0x40] sm:$0xf]
      %v246 = vld [vmem:[%s1 + $0x44] sm:$0xf]
      %v247 = vld [vmem:[%s1 + $0x48] sm:$0xf]
      %v248 = vld [vmem:[%s1 + $0x4c] sm:$0xf]
      %v249 = vld [vmem:[%s1 + $0x50] sm:$0xf]
      %v250 = vld [vmem:[%s1 + $0x54] sm:$0xf]
      %v251 = vld [vmem:[%s1 + $0x58] sm:$0xf]
      %v252 = vld [vmem:[%s1 + $0x5c] sm:$0xf]
      %v253 = vld [vmem:[%s1 + $0x60] sm:$0xf]
      %v254 = vld [vmem:[%s1 + $0x64] sm:$0xf]
      %v255 = vld [vmem:[%s1 + $0x68] sm:$0xf]
      %v256 = vld [vmem:[%s1 + $0x6c] sm:$0xf]
      %v257 = vld [vmem:[%s1 + $0x70] sm:$0xf]
      %v258 = vld [vmem:[%s1 + $0x74] sm:$0xf]
      %v259 = vld [vmem:[%s1 + $0x78] sm:$0xf]
      %v260 = vld [vmem:[%s1 + $0x7c] sm:$0xf]
      %v261 = vld [vmem:[%s1 + $0x80] sm:$0xf]
      %v262 = vld [vmem:[%s1 + $0x84] sm:$0xf]
      %v263 = vld [vmem:[%s1 + $0x88] sm:$0xf]
      %v264 = vld [vmem:[%s1 + $0x8c] sm:$0xf]
      %v265 = vld [vmem:[%s1 + $0x90] sm:$0xf]
      %v266 = vld [vmem:[%s1 + $0x94] sm:$0xf]
      %v267 = vld [vmem:[%s1 + $0x98] sm:$0xf]
      %v268 = vld [vmem:[%s1 + $0x9c] sm:$0xf]
      %v269 = vld [vmem:[%s1 + $0xa0] sm:$0xf]
      %v270 = vld [vmem:[%s1 + $0xa4] sm:$0xf]
      %v271 = vld [vmem:[%s1 + $0xa8] sm:$0xf]
      %v272 = vld [vmem:[%s1 + $0xac] sm:$0xf]
      %v273 = vld [vmem:[%s1 + $0xb0] sm:$0xf]
      %v274 = vld [vmem:[%s1 + $0xb4] sm:$0xf]
      %v275 = vld [vmem:[%s1 + $0xb8] sm:$0xf]
      %v276 = vld [vmem:[%s1 + $0xbc] sm:$0xf]
      %v277 = vld [vmem:[%s1 + $0xc0] sm:$0xf]
      %v278 = vld [vmem:[%s1 + $0xc4] sm:$0xf]
      %v279 = vld [vmem:[%s1 + $0xc8] sm:$0xf]
      %v280 = vld [vmem:[%s1 + $0xcc] sm:$0xf]
      %v281 = vld [vmem:[%s1 + $0xd0] sm:$0xf]
      %v282 = vld [vmem:[%s1 + $0xd4] sm:$0xf]
      %v283 = vld [vmem:[%s1 + $0xd8] sm:$0xf]
      %v284 = vld [vmem:[%s1 + $0xdc] sm:$0xf]
      %v285 = vld [vmem:[%s1 + $0xe0] sm:$0xf]
      %v286 = vld [vmem:[%s1 + $0xe4] sm:$0xf]
      %v287 = vld [vmem:[%s1 + $0xe8] sm:$0xf]
      %v288 = vld [vmem:[%s1 + $0xec] sm:$0xf]
      %v289 = vld [vmem:[%s1 + $0xf0] sm:$0xf]
      %v290 = vld [vmem:[%s1 + $0xf4] sm:$0xf]
      %v291 = vld [vmem:[%s1 + $0xf8] sm:$0xf]
      %v292 = vld [vmem:[%s1 + $0xfc] sm:$0xf]
      %v293 = vld [vmem:[%s1 + $0x100] sm:$0xf]
      %v294 = vld [vmem:[%s1 + $0x104] sm:$0xf]
      %v295 = vld [vmem:[%s1 + $0x108] sm:$0xf]
      %v296 = vld [vmem:[%s1 + $0x10c] sm:$0xf]
      %v297 = vld [vmem:[%s1 + $0x110] sm:$0xf]
      %v298 = vld [vmem:[%s1 + $0x114] sm:$0xf]
      %v299 = vld [vmem:[%s1 + $0x118] sm:$0xf]
      %v300 = vld [vmem:[%s1 + $0x11c] sm:$0xf]
      %v301 = vld [vmem:[%s1 + $0x120] sm:$0xf]
      %v302 = vld [vmem:[%s1 + $0x124] sm:$0xf]
      %v303 = vld [vmem:[%s1 + $0x128] sm:$0xf]
      %v304 = vld [vmem:[%s1 + $0x12c] sm:$0xf]
      %v305 = vld [vmem:[%s1 + $0x130] sm:$0xf]
      %v306 = vld [vmem:[%s1 + $0x134] sm:$0xf]
      %v307 = vld [vmem:[%s1 + $0x138] sm:$0xf]
      %v308 = vld [vmem:[%s1 + $0x13c] sm:$0xf]
      %v309 = vld [vmem:[%s1 + $0x140] sm:$0xf]
      %v310 = vld [vmem:[%s1 + $0x144] sm:$0xf]
      %v311 = vld [vmem:[%s1 + $0x148] sm:$0xf]
      %v312 = vld [vmem:[%s1 + $0x14c] sm:$0xf]
      %v313 = vld [vmem:[%s1 + $0x150] sm:$0xf]
      %v314 = vld [vmem:[%s1 + $0x154] sm:$0xf]
      %v315 = vld [vmem:[%s1 + $0x158] sm:$0xf]
      %v316 = vld [vmem:[%s1 + $0x15c] sm:$0xf]
      %v317 = vld [vmem:[%s1 + $0x160] sm:$0xf]
      %v318 = vld [vmem:[%s1 + $0x164] sm:$0xf]
      %v319 = vld [vmem:[%s1 + $0x168] sm:$0xf]
      %v320 = vld [vmem:[%s1 + $0x16c] sm:$0xf]
      %v321 = vld [vmem:[%s1 + $0x170] sm:$0xf]
      %v322 = vld [vmem:[%s1 + $0x174] sm:$0xf]
      %v323 = vld [vmem:[%s1 + $0x178] sm:$0xf]
      %v324 = vld [vmem:[%s1 + $0x17c] sm:$0xf]
      %v325 = vld [vmem:[%s1 + $0x180] sm:$0xf]
      %v326 = vld [vmem:[%s1 + $0x184] sm:$0xf]
      %v327 = vld [vmem:[%s1 + $0x188] sm:$0xf]
      %v328 = vld [vmem:[%s1 + $0x18c] sm:$0xf]
      %v329 = vld [vmem:[%s1 + $0x190] sm:$0xf]
      %v330 = vld [vmem:[%s1 + $0x194] sm:$0xf]
      %v331 = vld [vmem:[%s1 + $0x198] sm:$0xf]
      %v332 = vld [vmem:[%s1 + $0x19c] sm:$0xf]
      %v333 = vld [vmem:[%s1 + $0x1a0] sm:$0xf]
      %v334 = vld [vmem:[%s1 + $0x1a4] sm:$0xf]
      %v335 = vld [vmem:[%s1 + $0x1a8] sm:$0xf]
      %v336 = vld [vmem:[%s1 + $0x1ac] sm:$0xf]
      %v337 = vld [vmem:[%s1 + $0x1b0] sm:$0xf]
      %v338 = vld [vmem:[%s1 + $0x1b4] sm:$0xf]
      %v339 = vld [vmem:[%s1 + $0x1b8] sm:$0xf]
      %v340 = vld [vmem:[%s1 + $0x1bc] sm:$0xf]
      %v341 = vld [vmem:[%s1 + $0x1c0] sm:$0xf]
      %v342 = vld [vmem:[%s1 + $0x1c4] sm:$0xf]
      %v343 = vld [vmem:[%s1 + $0x1c8] sm:$0xf]
      %v344 = vld [vmem:[%s1 + $0x1cc] sm:$0xf]
      %v345 = vld [vmem:[%s1 + $0x1d0] sm:$0xf]
      %v346 = vld [vmem:[%s1 + $0x1d4] sm:$0xf]
      %v347 = vld [vmem:[%s1 + $0x1d8] sm:$0xf]
      %v348 = vld [vmem:[%s1 + $0x1dc] sm:$0xf]
      %v349 = vld [vmem:[%s1 + $0x1e0] sm:$0xf]
      %v350 = vld [vmem:[%s1 + $0x1e4] sm:$0xf]
      %v351 = vld [vmem:[%s1 + $0x1e8] sm:$0xf]
      %v352 = vld [vmem:[%s1 + $0x1ec] sm:$0xf]
      %v353 = vld [vmem:[%s1 + $0x1f0] sm:$0xf]
      %v354 = vld [vmem:[%s1 + $0x1f4] sm:$0xf]
      %v355 = vld [vmem:[%s1 + $0x1f8] sm:$0xf]
      %v356 = vld [vmem:[%s1 + $0x1fc] sm:$0xf]
      %v357 = vld [vmem:[%s1 + $0x200] sm:$0xf]
      %v358 = vld [vmem:[%s1 + $0x204] sm:$0xf]
      %v359 = vld [vmem:[%s1 + $0x208] sm:$0xf]
      %v360 = vld [vmem:[%s1 + $0x20c] sm:$0xf]
      %v361 = vld [vmem:[%s1 + $0x210] sm:$0xf]
      %v362 = vld [vmem:[%s1 + $0x214] sm:$0xf]
      %v363 = vld [vmem:[%s1 + $0x218] sm:$0xf]
      %v364 = vld [vmem:[%s1 + $0x21c] sm:$0xf]
      %v365 = vld [vmem:[%s1 + $0x220] sm:$0xf]
      %v366 = vld [vmem:[%s1 + $0x224] sm:$0xf]
      %v367 = vld [vmem:[%s1 + $0x228] sm:$0xf]
      %v368 = vld [vmem:[%s1 + $0x22c] sm:$0xf]
      %v369 = vld [vmem:[%s1 + $0x230] sm:$0xf]
      %v370 = vld [vmem:[%s1 + $0x234] sm:$0xf]
      %v371 = vld [vmem:[%s1 + $0x238] sm:$0xf]
      %v372 = vld [vmem:[%s1 + $0x23c] sm:$0xf]
      %v373 = vld [vmem:[%s1 + $0x240] sm:$0xf]
      %v374 = vld [vmem:[%s1 + $0x244] sm:$0xf]
      %v375 = vld [vmem:[%s1 + $0x248] sm:$0xf]
      %v376 = vld [vmem:[%s1 + $0x24c] sm:$0xf]
      %v377 = vld [vmem:[%s1 + $0x250] sm:$0xf]
      %v378 = vld [vmem:[%s1 + $0x254] sm:$0xf]
      %v379 = vld [vmem:[%s1 + $0x258] sm:$0xf]
      %v380 = vld [vmem:[%s1 + $0x25c] sm:$0xf]
      %v381 = vld [vmem:[%s1 + $0x260] sm:$0xf]
      %v382 = vld [vmem:[%s1 + $0x264] sm:$0xf]
      %v383 = vld [vmem:[%s1 + $0x268] sm:$0xf]
      %v384 = vld [vmem:[%s1 + $0x26c] sm:$0xf]
      %v385 = vld [vmem:[%s1 + $0x270] sm:$0xf]
      %v386 = vld [vmem:[%s1 + $0x274] sm:$0xf]
      %v387 = vld [vmem:[%s1 + $0x278] sm:$0xf]
      %v388 = vld [vmem:[%s1 + $0x27c] sm:$0xf]
      %v389 = vld [vmem:[%s1 + $0x280] sm:$0xf]
      %v390 = vld [vmem:[%s1 + $0x284] sm:$0xf]
      %v391 = vld [vmem:[%s1 + $0x288] sm:$0xf]
      %v392 = vld [vmem:[%s1 + $0x28c] sm:$0xf]
      %v393 = vld [vmem:[%s1 + $0x290] sm:$0xf]
      %v394 = vld [vmem:[%s1 + $0x294] sm:$0xf]
      %v395 = vld [vmem:[%s1 + $0x298] sm:$0xf]
      %v396 = vld [vmem:[%s1 + $0x29c] sm:$0xf]
      %v397 = vld [vmem:[%s1 + $0x2a0] sm:$0xf]
      %v398 = vld [vmem:[%s1 + $0x2a4] sm:$0xf]
      %v399 = vld [vmem:[%s1 + $0x2a8] sm:$0xf]
      %v400 = vld [vmem:[%s1 + $0x2ac] sm:$0xf]
      %v401 = vld [vmem:[%s1 + $0x2b0] sm:$0xf]
      %v402 = vld [vmem:[%s1 + $0x2b4] sm:$0xf]
      %v403 = vld [vmem:[%s1 + $0x2b8] sm:$0xf]
      %v404 = vld [vmem:[%s1 + $0x2bc] sm:$0xf]
      %v405 = vld [vmem:[%s1 + $0x2c0] sm:$0xf]
      %v406 = vld [vmem:[%s1 + $0x2c4] sm:$0xf]
      %v407 = vld [vmem:[%s1 + $0x2c8] sm:$0xf]
      %v408 = vld [vmem:[%s1 + $0x2cc] sm:$0xf]
      %v409 = vld [vmem:[%s1 + $0x2d0] sm:$0xf]
      %v410 = vld [vmem:[%s1 + $0x2d4] sm:$0xf]
      %v411 = vld [vmem:[%s1 + $0x2d8] sm:$0xf]
      %v412 = vld [vmem:[%s1 + $0x2dc] sm:$0xf]
      %v413 = vld [vmem:[%s1 + $0x2e0] sm:$0xf]
      %v414 = vld [vmem:[%s1 + $0x2e4] sm:$0xf]
      %v415 = vld [vmem:[%s1 + $0x2e8] sm:$0xf]
      %v416 = vld [vmem:[%s1 + $0x2ec] sm:$0xf]
      %v417 = vld [vmem:[%s1 + $0x2f0] sm:$0xf]
      %v418 = vld [vmem:[%s1 + $0x2f4] sm:$0xf]
      %v419 = vld [vmem:[%s1 + $0x2f8] sm:$0xf]
      %v420 = vld [vmem:[%s1 + $0x2fc] sm:$0xf]
      %v421 = vld [vmem:[%s1 + $0x300] sm:$0xf]
      %v422 = vld [vmem:[%s1 + $0x304] sm:$0xf]
      %v423 = vld [vmem:[%s1 + $0x308] sm:$0xf]
      %v424 = vld [vmem:[%s1 + $0x30c] sm:$0xf]
      %v425 = vld [vmem:[%s1 + $0x310] sm:$0xf]
      %v426 = vld [vmem:[%s1 + $0x314] sm:$0xf]
      %v427 = vld [vmem:[%s1 + $0x318] sm:$0xf]
      %v428 = vld [vmem:[%s1 + $0x31c] sm:$0xf]
      %v429 = vld [vmem:[%s1 + $0x320] sm:$0xf]
      %v430 = vld [vmem:[%s1 + $0x324] sm:$0xf]
      %v431 = vld [vmem:[%s1 + $0x328] sm:$0xf]
      %v432 = vld [vmem:[%s1 + $0x32c] sm:$0xf]
      %v433 = vld [vmem:[%s1 + $0x330] sm:$0xf]
      %v434 = vld [vmem:[%s1 + $0x334] sm:$0xf]
      %v435 = vld [vmem:[%s1 + $0x338] sm:$0xf]
      %v436 = vld [vmem:[%s1 + $0x33c] sm:$0xf]
      %v437 = vld [vmem:[%s1 + $0x340] sm:$0xf]
      %v438 = vld [vmem:[%s1 + $0x344] sm:$0xf]
      %v439 = vld [vmem:[%s1 + $0x348] sm:$0xf]
      %v440 = vld [vmem:[%s1 + $0x34c] sm:$0xf]
      %v441 = vld [vmem:[%s1 + $0x350] sm:$0xf]
      %v442 = vld [vmem:[%s1 + $0x354] sm:$0xf]
      %v443 = vld [vmem:[%s1 + $0x358] sm:$0xf]
      %v444 = vld [vmem:[%s1 + $0x35c] sm:$0xf]
      %v445 = vld [vmem:[%s1 + $0x360] sm:$0xf]
      %v446 = vld [vmem:[%s1 + $0x364] sm:$0xf]
      %v447 = vld [vmem:[%s1 + $0x368] sm:$0xf]
      %v448 = vld [vmem:[%s1 + $0x36c] sm:$0xf]
      %v449 = vld [vmem:[%s1 + $0x370] sm:$0xf]
      %v450 = vld [vmem:[%s1 + $0x374] sm:$0xf]
      %v451 = vld [vmem:[%s1 + $0x378] sm:$0xf]
      %v452 = vld [vmem:[%s1 + $0x37c] sm:$0xf]
      %v453 = vld [vmem:[%s1 + $0x380] sm:$0xf]
      %v454 = vld [vmem:[%s1 + $0x384] sm:$0xf]
      %v455 = vld [vmem:[%s1 + $0x388] sm:$0xf]
      %v456 = vld [vmem:[%s1 + $0x38c] sm:$0xf]
      %v457 = vld [vmem:[%s1 + $0x390] sm:$0xf]
      %v458 = vld [vmem:[%s1 + $0x394] sm:$0xf]
      %v459 = vld [vmem:[%s1 + $0x398] sm:$0xf]
      %v460 = vld [vmem:[%s1 + $0x39c] sm:$0xf]
      %v461 = vld [vmem:[%s1 + $0x3a0] sm:$0xf]
      %v462 = vld [vmem:[%s1 + $0x3a4] sm:$0xf]
      %v463 = vld [vmem:[%s1 + $0x3a8] sm:$0xf]
      %v464 = vld [vmem:[%s1 + $0x3ac] sm:$0xf]
      %v465 = vld [vmem:[%s1 + $0x3b0] sm:$0xf]
      %v466 = vld [vmem:[%s1 + $0x3b4] sm:$0xf]
      %v467 = vld [vmem:[%s1 + $0x3b8] sm:$0xf]
      %v468 = vld [vmem:[%s1 + $0x3bc] sm:$0xf]
      %v469 = vld [vmem:[%s1 + $0x3c0] sm:$0xf]
      %v470 = vld [vmem:[%s1 + $0x3c4] sm:$0xf]
      %v471 = vld [vmem:[%s1 + $0x3c8] sm:$0xf]
      %v472 = vld [vmem:[%s1 + $0x3cc] sm:$0xf]
      %v473 = vld [vmem:[%s1 + $0x3d0] sm:$0xf]
      %v474 = vld [vmem:[%s1 + $0x3d4] sm:$0xf]
      %v475 = vld [vmem:[%s1 + $0x3d8] sm:$0xf]
      %v476 = vld [vmem:[%s1 + $0x3dc] sm:$0xf]
      %v477 = vld [vmem:[%s1 + $0x3e0] sm:$0xf]
      %v478 = vld [vmem:[%s1 + $0x3e4] sm:$0xf]
      %v479 = vld [vmem:[%s1 + $0x3e8] sm:$0xf]
      %v480 = vld [vmem:[%s1 + $0x3ec] sm:$0xf]
      %v481 = vld [vmem:[%s1 + $0x3f0] sm:$0xf]
      %v482 = vld [vmem:[%s1 + $0x3f4] sm:$0xf]
      %v483 = vld [vmem:[%s1 + $0x3f8] sm:$0xf]
      %v484 = vld [vmem:[%s1 + $0x3fc] sm:$0xf]
      %v501 = vunpack.c.l.b16 %v213
      %v502 = vunpack.c.h.b16 %v213
      %v503 = vunpack.c.l.b16 %v214
      %v504 = vunpack.c.h.b16 %v214
      %v505 = vunpack.c.l.b16 %v215
      %v506 = vunpack.c.h.b16 %v215
      %v507 = vunpack.c.l.b16 %v216
      %v508 = vunpack.c.h.b16 %v216
      %v509 = vunpack.c.l.b16 %v217
      %v510 = vunpack.c.h.b16 %v217
      %v511 = vunpack.c.l.b16 %v218
      %v512 = vunpack.c.h.b16 %v218
      %v513 = vunpack.c.l.b16 %v219
      %v514 = vunpack.c.h.b16 %v219
      %v515 = vunpack.c.l.b16 %v220
      %v516 = vunpack.c.h.b16 %v220
      %v517 = vunpack.c.l.b16 %v221
      %v518 = vunpack.c.h.b16 %v221
      %v519 = vunpack.c.l.b16 %v222
      %v520 = vunpack.c.h.b16 %v222
      %v521 = vunpack.c.l.b16 %v223
      %v522 = vunpack.c.h.b16 %v223
      %v523 = vunpack.c.l.b16 %v224
      %v524 = vunpack.c.h.b16 %v224
      %v525 = vunpack.c.l.b16 %v225
      %v526 = vunpack.c.h.b16 %v225
      %v527 = vunpack.c.l.b16 %v226
      %v528 = vunpack.c.h.b16 %v226
      %v529 = vunpack.c.l.b16 %v227
      %v530 = vunpack.c.h.b16 %v227
      %v531 = vunpack.c.l.b16 %v228
      %v532 = vunpack.c.h.b16 %v228
      %v533 = vpack.c.b16 %v517, %v501
      %v534 = vpack.c.b16 %v518, %v502
      %v535 = vpack.c.b16 %v519, %v503
      %v536 = vpack.c.b16 %v520, %v504
      %v537 = vpack.c.b16 %v521, %v505
      %v538 = vpack.c.b16 %v522, %v506
      %v539 = vpack.c.b16 %v523, %v507
      %v540 = vpack.c.b16 %v524, %v508
      %v541 = vpack.c.b16 %v525, %v509
      %v542 = vpack.c.b16 %v526, %v510
      %v543 = vpack.c.b16 %v527, %v511
      %v544 = vpack.c.b16 %v528, %v512
      %v545 = vpack.c.b16 %v529, %v513
      %v546 = vpack.c.b16 %v530, %v514
      %v547 = vpack.c.b16 %v531, %v515
      %v548 = vpack.c.b16 %v532, %v516
      %v821 = vunpack.c.l.b16 %v229
      %v822 = vunpack.c.l.b16 %v230
      %v823 = vunpack.c.l.b16 %v231
      %v824 = vunpack.c.l.b16 %v232
      %v825 = vunpack.c.l.b16 %v233
      %v826 = vunpack.c.l.b16 %v234
      %v827 = vunpack.c.l.b16 %v235
      %v828 = vunpack.c.l.b16 %v236
      %v829 = vunpack.c.l.b16 %v237
      %v830 = vunpack.c.l.b16 %v238
      %v831 = vunpack.c.l.b16 %v239
      %v832 = vunpack.c.l.b16 %v240
      %v833 = vunpack.c.l.b16 %v241
      %v834 = vunpack.c.l.b16 %v242
      %v835 = vunpack.c.l.b16 %v243
      %v836 = vunpack.c.l.b16 %v244
      %v837 = vunpack.c.l.b16 %v245
      %v838 = vunpack.c.l.b16 %v246
      %v839 = vunpack.c.l.b16 %v247
      %v840 = vunpack.c.l.b16 %v248
      %v841 = vunpack.c.l.b16 %v249
      %v842 = vunpack.c.l.b16 %v250
      %v843 = vunpack.c.l.b16 %v251
      %v844 = vunpack.c.l.b16 %v252
      %v845 = vunpack.c.l.b16 %v253
      %v846 = vunpack.c.l.b16 %v254
      %v847 = vunpack.c.l.b16 %v255
      %v848 = vunpack.c.l.b16 %v256
      %v849 = vunpack.c.l.b16 %v257
      %v850 = vunpack.c.l.b16 %v258
      %v851 = vunpack.c.l.b16 %v259
      %v852 = vunpack.c.l.b16 %v260
      %v853 = vunpack.c.l.b16 %v261
      %v854 = vunpack.c.l.b16 %v262
      %v855 = vunpack.c.l.b16 %v263
      %v856 = vunpack.c.l.b16 %v264
      %v857 = vunpack.c.l.b16 %v265
      %v858 = vunpack.c.l.b16 %v266
      %v859 = vunpack.c.l.b16 %v267
      %v860 = vunpack.c.l.b16 %v268
      %v861 = vunpack.c.l.b16 %v269
      %v862 = vunpack.c.l.b16 %v270
      %v863 = vunpack.c.l.b16 %v271
      %v864 = vunpack.c.l.b16 %v272
      %v865 = vunpack.c.l.b16 %v273
      %v866 = vunpack.c.l.b16 %v274
      %v867 = vunpack.c.l.b16 %v275
      %v868 = vunpack.c.l.b16 %v276
      %v869 = vunpack.c.l.b16 %v277
      %v870 = vunpack.c.l.b16 %v278
      %v871 = vunpack.c.l.b16 %v279
      %v872 = vunpack.c.l.b16 %v280
      %v873 = vunpack.c.l.b16 %v281
      %v874 = vunpack.c.l.b16 %v282
      %v875 = vunpack.c.l.b16 %v283
      %v876 = vunpack.c.l.b16 %v284
      %v877 = vunpack.c.l.b16 %v285
      %v878 = vunpack.c.l.b16 %v286
      %v879 = vunpack.c.l.b16 %v287
      %v880 = vunpack.c.l.b16 %v288
      %v881 = vunpack.c.l.b16 %v289
      %v882 = vunpack.c.l.b16 %v290
      %v883 = vunpack.c.l.b16 %v291
      %v884 = vunpack.c.l.b16 %v292
      %v885 = vunpack.c.l.b16 %v293
      %v886 = vunpack.c.l.b16 %v294
      %v887 = vunpack.c.l.b16 %v295
      %v888 = vunpack.c.l.b16 %v296
      %v889 = vunpack.c.l.b16 %v297
      %v890 = vunpack.c.l.b16 %v298
      %v891 = vunpack.c.l.b16 %v299
      %v892 = vunpack.c.l.b16 %v300
      %v893 = vunpack.c.l.b16 %v301
      %v894 = vunpack.c.l.b16 %v302
      %v895 = vunpack.c.l.b16 %v303
      %v896 = vunpack.c.l.b16 %v304
      %v897 = vunpack.c.l.b16 %v305
      %v898 = vunpack.c.l.b16 %v306
      %v899 = vunpack.c.l.b16 %v307
      %v900 = vunpack.c.l.b16 %v308
      %v901 = vunpack.c.l.b16 %v309
      %v902 = vunpack.c.l.b16 %v310
      %v903 = vunpack.c.l.b16 %v311
      %v904 = vunpack.c.l.b16 %v312
      %v905 = vunpack.c.l.b16 %v313
      %v906 = vunpack.c.l.b16 %v314
      %v907 = vunpack.c.l.b16 %v315
      %v908 = vunpack.c.l.b16 %v316
      %v909 = vunpack.c.l.b16 %v317
      %v910 = vunpack.c.l.b16 %v318
      %v911 = vunpack.c.l.b16 %v319
      %v912 = vunpack.c.l.b16 %v320
      %v913 = vunpack.c.l.b16 %v321
      %v914 = vunpack.c.l.b16 %v322
      %v915 = vunpack.c.l.b16 %v323
      %v916 = vunpack.c.l.b16 %v324
      %v917 = vunpack.c.l.b16 %v325
      %v918 = vunpack.c.l.b16 %v326
      %v919 = vunpack.c.l.b16 %v327
      %v920 = vunpack.c.l.b16 %v328
      %v921 = vunpack.c.l.b16 %v329
      %v922 = vunpack.c.l.b16 %v330
      %v923 = vunpack.c.l.b16 %v331
      %v924 = vunpack.c.l.b16 %v332
      %v925 = vunpack.c.l.b16 %v333
      %v926 = vunpack.c.l.b16 %v334
      %v927 = vunpack.c.l.b16 %v335
      %v928 = vunpack.c.l.b16 %v336
      %v929 = vunpack.c.l.b16 %v337
      %v930 = vunpack.c.l.b16 %v338
      %v931 = vunpack.c.l.b16 %v339
      %v932 = vunpack.c.l.b16 %v340
      %v933 = vunpack.c.l.b16 %v341
      %v934 = vunpack.c.l.b16 %v342
      %v935 = vunpack.c.l.b16 %v343
      %v936 = vunpack.c.l.b16 %v344
      %v937 = vunpack.c.l.b16 %v345
      %v938 = vunpack.c.l.b16 %v346
      %v939 = vunpack.c.l.b16 %v347
      %v940 = vunpack.c.l.b16 %v348
      %v941 = vunpack.c.l.b16 %v349
      %v942 = vunpack.c.l.b16 %v350
      %v943 = vunpack.c.l.b16 %v351
      %v944 = vunpack.c.l.b16 %v352
      %v945 = vunpack.c.l.b16 %v353
      %v946 = vunpack.c.l.b16 %v354
      %v947 = vunpack.c.l.b16 %v355
      %v948 = vunpack.c.l.b16 %v356
      %v949 = vunpack.c.l.b16 %v357
      %v950 = vunpack.c.l.b16 %v358
      %v951 = vunpack.c.l.b16 %v359
      %v952 = vunpack.c.l.b16 %v360
      %v953 = vunpack.c.l.b16 %v361
      %v954 = vunpack.c.l.b16 %v362
      %v955 = vunpack.c.l.b16 %v363
      %v956 = vunpack.c.l.b16 %v364
      %v957 = vunpack.c.l.b16 %v365
      %v958 = vunpack.c.l.b16 %v366
      %v959 = vunpack.c.l.b16 %v367
      %v960 = vunpack.c.l.b16 %v368
      %v961 = vunpack.c.l.b16 %v369
      %v962 = vunpack.c.l.b16 %v370
      %v963 = vunpack.c.l.b16 %v371
      %v964 = vunpack.c.l.b16 %v372
      %v965 = vunpack.c.l.b16 %v373
      %v966 = vunpack.c.l.b16 %v374
      %v967 = vunpack.c.l.b16 %v375
      %v968 = vunpack.c.l.b16 %v376
      %v969 = vunpack.c.l.b16 %v377
      %v970 = vunpack.c.l.b16 %v378
      %v971 = vunpack.c.l.b16 %v379
      %v972 = vunpack.c.l.b16 %v380
      %v973 = vunpack.c.l.b16 %v381
      %v974 = vunpack.c.l.b16 %v382
      %v975 = vunpack.c.l.b16 %v383
      %v976 = vunpack.c.l.b16 %v384
      %v977 = vunpack.c.l.b16 %v385
      %v978 = vunpack.c.l.b16 %v386
      %v979 = vunpack.c.l.b16 %v387
      %v980 = vunpack.c.l.b16 %v388
      %v981 = vunpack.c.l.b16 %v389
      %v982 = vunpack.c.l.b16 %v390
      %v983 = vunpack.c.l.b16 %v391
      %v984 = vunpack.c.l.b16 %v392
      %v985 = vunpack.c.l.b16 %v393
      %v986 = vunpack.c.l.b16 %v394
      %v987 = vunpack.c.l.b16 %v395
      %v988 = vunpack.c.l.b16 %v396
      %v989 = vunpack.c.l.b16 %v397
      %v990 = vunpack.c.l.b16 %v398
      %v991 = vunpack.c.l.b16 %v399
      %v992 = vunpack.c.l.b16 %v400
      %v993 = vunpack.c.l.b16 %v401
      %v994 = vunpack.c.l.b16 %v402
      %v995 = vunpack.c.l.b16 %v403
      %v996 = vunpack.c.l.b16 %v404
      %v997 = vunpack.c.l.b16 %v405
      %v998 = vunpack.c.l.b16 %v406
      %v999 = vunpack.c.l.b16 %v407
      %v1000 = vunpack.c.l.b16 %v408
      %v1001 = vunpack.c.l.b16 %v409
      %v1002 = vunpack.c.l.b16 %v410
      %v1003 = vunpack.c.l.b16 %v411
      %v1004 = vunpack.c.l.b16 %v412
      %v1005 = vunpack.c.l.b16 %v413
      %v1006 = vunpack.c.l.b16 %v414
      %v1007 = vunpack.c.l.b16 %v415
      %v1008 = vunpack.c.l.b16 %v416
      %v1009 = vunpack.c.l.b16 %v417
      %v1010 = vunpack.c.l.b16 %v418
      %v1011 = vunpack.c.l.b16 %v419
      %v1012 = vunpack.c.l.b16 %v420
      %v1013 = vunpack.c.l.b16 %v421
      %v1014 = vunpack.c.l.b16 %v422
      %v1015 = vunpack.c.l.b16 %v423
      %v1016 = vunpack.c.l.b16 %v424
      %v1017 = vunpack.c.l.b16 %v425
      %v1018 = vunpack.c.l.b16 %v426
      %v1019 = vunpack.c.l.b16 %v427
      %v1020 = vunpack.c.l.b16 %v428
      %v1021 = vunpack.c.l.b16 %v429
      %v1022 = vunpack.c.l.b16 %v430
      %v1023 = vunpack.c.l.b16 %v431
      %v1024 = vunpack.c.l.b16 %v432
      %v1025 = vunpack.c.l.b16 %v433
      %v1026 = vunpack.c.l.b16 %v434
      %v1027 = vunpack.c.l.b16 %v435
      %v1028 = vunpack.c.l.b16 %v436
      %v1029 = vunpack.c.l.b16 %v437
      %v1030 = vunpack.c.l.b16 %v438
      %v1031 = vunpack.c.l.b16 %v439
      %v1032 = vunpack.c.l.b16 %v440
      %v1033 = vunpack.c.l.b16 %v441
      %v1034 = vunpack.c.l.b16 %v442
      %v1035 = vunpack.c.l.b16 %v443
      %v1036 = vunpack.c.l.b16 %v444
      %v1037 = vunpack.c.l.b16 %v445
      %v1038 = vunpack.c.l.b16 %v446
      %v1039 = vunpack.c.l.b16 %v447
      %v1040 = vunpack.c.l.b16 %v448
      %v1041 = vunpack.c.l.b16 %v449
      %v1042 = vunpack.c.l.b16 %v450
      %v1043 = vunpack.c.l.b16 %v451
      %v1044 = vunpack.c.l.b16 %v452
      %v1045 = vunpack.c.l.b16 %v453
      %v1046 = vunpack.c.l.b16 %v454
      %v1047 = vunpack.c.l.b16 %v455
      %v1048 = vunpack.c.l.b16 %v456
      %v1049 = vunpack.c.l.b16 %v457
      %v1050 = vunpack.c.l.b16 %v458
      %v1051 = vunpack.c.l.b16 %v459
      %v1052 = vunpack.c.l.b16 %v460
      %v1053 = vunpack.c.l.b16 %v461
      %v1054 = vunpack.c.l.b16 %v462
      %v1055 = vunpack.c.l.b16 %v463
      %v1056 = vunpack.c.l.b16 %v464
      %v1057 = vunpack.c.l.b16 %v465
      %v1058 = vunpack.c.l.b16 %v466
      %v1059 = vunpack.c.l.b16 %v467
      %v1060 = vunpack.c.l.b16 %v468
      %v1061 = vunpack.c.l.b16 %v469
      %v1062 = vunpack.c.l.b16 %v470
      %v1063 = vunpack.c.l.b16 %v471
      %v1064 = vunpack.c.l.b16 %v472
      %v1065 = vunpack.c.l.b16 %v473
      %v1066 = vunpack.c.l.b16 %v474
      %v1067 = vunpack.c.l.b16 %v475
      %v1068 = vunpack.c.l.b16 %v476
      %v1069 = vunpack.c.l.b16 %v477
      %v1070 = vunpack.c.l.b16 %v478
      %v1071 = vunpack.c.l.b16 %v479
      %v1072 = vunpack.c.l.b16 %v480
      %v1073 = vunpack.c.l.b16 %v481
      %v1074 = vunpack.c.l.b16 %v482
      %v1075 = vunpack.c.l.b16 %v483
      %v1076 = vunpack.c.l.b16 %v484
      %v1077 = vpack.c.b16 %v822, %v821
      %v1078 = vpack.c.b16 %v824, %v823
      %v1079 = vpack.c.b16 %v826, %v825
      %v1080 = vpack.c.b16 %v828, %v827
      %v1081 = vpack.c.b16 %v830, %v829
      %v1082 = vpack.c.b16 %v832, %v831
      %v1083 = vpack.c.b16 %v834, %v833
      %v1084 = vpack.c.b16 %v836, %v835
      %v1085 = vpack.c.b16 %v838, %v837
      %v1086 = vpack.c.b16 %v840, %v839
      %v1087 = vpack.c.b16 %v842, %v841
      %v1088 = vpack.c.b16 %v844, %v843
      %v1089 = vpack.c.b16 %v846, %v845
      %v1090 = vpack.c.b16 %v848, %v847
      %v1091 = vpack.c.b16 %v850, %v849
      %v1092 = vpack.c.b16 %v852, %v851
      %v1093 = vpack.c.b16 %v854, %v853
      %v1094 = vpack.c.b16 %v856, %v855
      %v1095 = vpack.c.b16 %v858, %v857
      %v1096 = vpack.c.b16 %v860, %v859
      %v1097 = vpack.c.b16 %v862, %v861
      %v1098 = vpack.c.b16 %v864, %v863
      %v1099 = vpack.c.b16 %v866, %v865
      %v1100 = vpack.c.b16 %v868, %v867
      %v1101 = vpack.c.b16 %v870, %v869
      %v1102 = vpack.c.b16 %v872, %v871
      %v1103 = vpack.c.b16 %v874, %v873
      %v1104 = vpack.c.b16 %v876, %v875
      %v1105 = vpack.c.b16 %v878, %v877
      %v1106 = vpack.c.b16 %v880, %v879
      %v1107 = vpack.c.b16 %v882, %v881
      %v1108 = vpack.c.b16 %v884, %v883
      %v1109 = vpack.c.b16 %v886, %v885
      %v1110 = vpack.c.b16 %v888, %v887
      %v1111 = vpack.c.b16 %v890, %v889
      %v1112 = vpack.c.b16 %v892, %v891
      %v1113 = vpack.c.b16 %v894, %v893
      %v1114 = vpack.c.b16 %v896, %v895
      %v1115 = vpack.c.b16 %v898, %v897
      %v1116 = vpack.c.b16 %v900, %v899
      %v1117 = vpack.c.b16 %v902, %v901
      %v1118 = vpack.c.b16 %v904, %v903
      %v1119 = vpack.c.b16 %v906, %v905
      %v1120 = vpack.c.b16 %v908, %v907
      %v1121 = vpack.c.b16 %v910, %v909
      %v1122 = vpack.c.b16 %v912, %v911
      %v1123 = vpack.c.b16 %v914, %v913
      %v1124 = vpack.c.b16 %v916, %v915
      %v1125 = vpack.c.b16 %v918, %v917
      %v1126 = vpack.c.b16 %v920, %v919
      %v1127 = vpack.c.b16 %v922, %v921
      %v1128 = vpack.c.b16 %v924, %v923
      %v1129 = vpack.c.b16 %v926, %v925
      %v1130 = vpack.c.b16 %v928, %v927
      %v1131 = vpack.c.b16 %v930, %v929
      %v1132 = vpack.c.b16 %v932, %v931
      %v1133 = vpack.c.b16 %v934, %v933
      %v1134 = vpack.c.b16 %v936, %v935
      %v1135 = vpack.c.b16 %v938, %v937
      %v1136 = vpack.c.b16 %v940, %v939
      %v1137 = vpack.c.b16 %v942, %v941
      %v1138 = vpack.c.b16 %v944, %v943
      %v1139 = vpack.c.b16 %v946, %v945
      %v1140 = vpack.c.b16 %v948, %v947
      %v1141 = vpack.c.b16 %v950, %v949
      %v1142 = vpack.c.b16 %v952, %v951
      %v1143 = vpack.c.b16 %v954, %v953
      %v1144 = vpack.c.b16 %v956, %v955
      %v1145 = vpack.c.b16 %v958, %v957
      %v1146 = vpack.c.b16 %v960, %v959
      %v1147 = vpack.c.b16 %v962, %v961
      %v1148 = vpack.c.b16 %v964, %v963
      %v1149 = vpack.c.b16 %v966, %v965
      %v1150 = vpack.c.b16 %v968, %v967
      %v1151 = vpack.c.b16 %v970, %v969
      %v1152 = vpack.c.b16 %v972, %v971
      %v1153 = vpack.c.b16 %v974, %v973
      %v1154 = vpack.c.b16 %v976, %v975
      %v1155 = vpack.c.b16 %v978, %v977
      %v1156 = vpack.c.b16 %v980, %v979
      %v1157 = vpack.c.b16 %v982, %v981
      %v1158 = vpack.c.b16 %v984, %v983
      %v1159 = vpack.c.b16 %v986, %v985
      %v1160 = vpack.c.b16 %v988, %v987
      %v1161 = vpack.c.b16 %v990, %v989
      %v1162 = vpack.c.b16 %v992, %v991
      %v1163 = vpack.c.b16 %v994, %v993
      %v1164 = vpack.c.b16 %v996, %v995
      %v1165 = vpack.c.b16 %v998, %v997
      %v1166 = vpack.c.b16 %v1000, %v999
      %v1167 = vpack.c.b16 %v1002, %v1001
      %v1168 = vpack.c.b16 %v1004, %v1003
      %v1169 = vpack.c.b16 %v1006, %v1005
      %v1170 = vpack.c.b16 %v1008, %v1007
      %v1171 = vpack.c.b16 %v1010, %v1009
      %v1172 = vpack.c.b16 %v1012, %v1011
      %v1173 = vpack.c.b16 %v1014, %v1013
      %v1174 = vpack.c.b16 %v1016, %v1015
      %v1175 = vpack.c.b16 %v1018, %v1017
      %v1176 = vpack.c.b16 %v1020, %v1019
      %v1177 = vpack.c.b16 %v1022, %v1021
      %v1178 = vpack.c.b16 %v1024, %v1023
      %v1179 = vpack.c.b16 %v1026, %v1025
      %v1180 = vpack.c.b16 %v1028, %v1027
      %v1181 = vpack.c.b16 %v1030, %v1029
      %v1182 = vpack.c.b16 %v1032, %v1031
      %v1183 = vpack.c.b16 %v1034, %v1033
      %v1184 = vpack.c.b16 %v1036, %v1035
      %v1185 = vpack.c.b16 %v1038, %v1037
      %v1186 = vpack.c.b16 %v1040, %v1039
      %v1187 = vpack.c.b16 %v1042, %v1041
      %v1188 = vpack.c.b16 %v1044, %v1043
      %v1189 = vpack.c.b16 %v1046, %v1045
      %v1190 = vpack.c.b16 %v1048, %v1047
      %v1191 = vpack.c.b16 %v1050, %v1049
      %v1192 = vpack.c.b16 %v1052, %v1051
      %v1193 = vpack.c.b16 %v1054, %v1053
      %v1194 = vpack.c.b16 %v1056, %v1055
      %v1195 = vpack.c.b16 %v1058, %v1057
      %v1196 = vpack.c.b16 %v1060, %v1059
      %v1197 = vpack.c.b16 %v1062, %v1061
      %v1198 = vpack.c.b16 %v1064, %v1063
      %v1199 = vpack.c.b16 %v1066, %v1065
      %v1200 = vpack.c.b16 %v1068, %v1067
      %v1201 = vpack.c.b16 %v1070, %v1069
      %v1202 = vpack.c.b16 %v1072, %v1071
      %v1203 = vpack.c.b16 %v1074, %v1073
      %v1204 = vpack.c.b16 %v1076, %v1075
      %1333 = vmatprep.subr.bf16.mxu0 0
      %1334 = vmatpush1.bf16.msra.mxu0 %v1077
      %1335 = vmatprep.subr.bf16.mxu0 0
      %1336 = vmatpush1.bf16.msra.mxu0 %v1078
      %1337 = vmatprep.subr.bf16.mxu0 0
      %1338 = vmatpush1.bf16.msra.mxu0 %v1079
      %1339 = vmatprep.subr.bf16.mxu0 0
      %1340 = vmatpush1.bf16.msra.mxu0 %v1080
      %1341 = vmatprep.subr.bf16.mxu0 0
      %1342 = vmatpush1.bf16.msra.mxu0 %v1081
      %1343 = vmatprep.subr.bf16.mxu0 0
      %1344 = vmatpush1.bf16.msra.mxu0 %v1082
      %1345 = vmatprep.subr.bf16.mxu0 0
      %1346 = vmatpush1.bf16.msra.mxu0 %v1083
      %1347 = vmatprep.subr.bf16.mxu0 0
      %1348 = vmatpush1.bf16.msra.mxu0 %v1084
      %1349 = vmatprep.subr.bf16.mxu0 0
      %1350 = vmatpush1.bf16.msra.mxu0 %v1085
      %1351 = vmatprep.subr.bf16.mxu0 0
      %1352 = vmatpush1.bf16.msra.mxu0 %v1086
      %1353 = vmatprep.subr.bf16.mxu0 0
      %1354 = vmatpush1.bf16.msra.mxu0 %v1087
      %1355 = vmatprep.subr.bf16.mxu0 0
      %1356 = vmatpush1.bf16.msra.mxu0 %v1088
      %1357 = vmatprep.subr.bf16.mxu0 0
      %1358 = vmatpush1.bf16.msra.mxu0 %v1089
      %1359 = vmatprep.subr.bf16.mxu0 0
      %1360 = vmatpush1.bf16.msra.mxu0 %v1090
      %1361 = vmatprep.subr.bf16.mxu0 0
      %1362 = vmatpush1.bf16.msra.mxu0 %v1091
      %1363 = vmatprep.subr.bf16.mxu0 0
      %1364 = vmatpush1.bf16.msra.mxu0 %v1092
      %1365 = vmatprep.mubr.bf16.mxu0 %v534
      %1366 = vmatmul.mubr.bf16.gmra.mrb[0].mxu0 %v533
      %v1367 = vpop.f32.mrb[0].mxu0
      %v1368 = vadd.f32 0.0, %v1367
      %v1369 = vpop.f32.mrb[0].mxu0
      %v1370 = vpop.f32.mrb[0].mxu0
      %v1371 = vadd.f32 0.0, %v1370
      %v1372 = vpop.f32.mrb[0].mxu0
      %1373 = vdwg.mxu0
      %1374 = vmatprep.subr.bf16.mxu0 0
      %1375 = vmatpush1.bf16.msra.mxu0 %v1093
      %1376 = vmatprep.subr.bf16.mxu0 0
      %1377 = vmatpush1.bf16.msra.mxu0 %v1094
      %1378 = vmatprep.subr.bf16.mxu0 0
      %1379 = vmatpush1.bf16.msra.mxu0 %v1095
      %1380 = vmatprep.subr.bf16.mxu0 0
      %1381 = vmatpush1.bf16.msra.mxu0 %v1096
      %1382 = vmatprep.subr.bf16.mxu0 0
      %1383 = vmatpush1.bf16.msra.mxu0 %v1097
      %1384 = vmatprep.subr.bf16.mxu0 0
      %1385 = vmatpush1.bf16.msra.mxu0 %v1098
      %1386 = vmatprep.subr.bf16.mxu0 0
      %1387 = vmatpush1.bf16.msra.mxu0 %v1099
      %1388 = vmatprep.subr.bf16.mxu0 0
      %1389 = vmatpush1.bf16.msra.mxu0 %v1100
      %1390 = vmatprep.subr.bf16.mxu0 0
      %1391 = vmatpush1.bf16.msra.mxu0 %v1101
      %1392 = vmatprep.subr.bf16.mxu0 0
      %1393 = vmatpush1.bf16.msra.mxu0 %v1102
      %1394 = vmatprep.subr.bf16.mxu0 0
      %1395 = vmatpush1.bf16.msra.mxu0 %v1103
      %1396 = vmatprep.subr.bf16.mxu0 0
      %1397 = vmatpush1.bf16.msra.mxu0 %v1104
      %1398 = vmatprep.subr.bf16.mxu0 0
      %1399 = vmatpush1.bf16.msra.mxu0 %v1105
      %1400 = vmatprep.subr.bf16.mxu0 0
      %1401 = vmatpush1.bf16.msra.mxu0 %v1106
      %1402 = vmatprep.subr.bf16.mxu0 0
      %1403 = vmatpush1.bf16.msra.mxu0 %v1107
      %1404 = vmatprep.subr.bf16.mxu0 0
      %1405 = vmatpush1.bf16.msra.mxu0 %v1108
      %1406 = vmatprep.mubr.bf16.mxu0 %v536
      %1407 = vmatmul.mubr.bf16.gmra.mrb[0].mxu0 %v535
      %v1408 = vpop.f32.mrb[0].mxu0
      %v1409 = vadd.f32 %v1368, %v1408
      %v1410 = vpop.f32.mrb[0].mxu0
      %v1411 = vpop.f32.mrb[0].mxu0
      %v1412 = vadd.f32 %v1371, %v1411
      %v1413 = vpop.f32.mrb[0].mxu0
      %1414 = vdwg.mxu0
      %1415 = vmatprep.subr.bf16.mxu0 0
      %1416 = vmatpush1.bf16.msra.mxu0 %v1109
      %1417 = vmatprep.subr.bf16.mxu0 0
      %1418 = vmatpush1.bf16.msra.mxu0 %v1110
      %1419 = vmatprep.subr.bf16.mxu0 0
      %1420 = vmatpush1.bf16.msra.mxu0 %v1111
      %1421 = vmatprep.subr.bf16.mxu0 0
      %1422 = vmatpush1.bf16.msra.mxu0 %v1112
      %1423 = vmatprep.subr.bf16.mxu0 0
      %1424 = vmatpush1.bf16.msra.mxu0 %v1113
      %1425 = vmatprep.subr.bf16.mxu0 0
      %1426 = vmatpush1.bf16.msra.mxu0 %v1114
      %1427 = vmatprep.subr.bf16.mxu0 0
      %1428 = vmatpush1.bf16.msra.mxu0 %v1115
      %1429 = vmatprep.subr.bf16.mxu0 0
      %1430 = vmatpush1.bf16.msra.mxu0 %v1116
      %1431 = vmatprep.subr.bf16.mxu0 0
      %1432 = vmatpush1.bf16.msra.mxu0 %v1117
      %1433 = vmatprep.subr.bf16.mxu0 0
      %1434 = vmatpush1.bf16.msra.mxu0 %v1118
      %1435 = vmatprep.subr.bf16.mxu0 0
      %1436 = vmatpush1.bf16.msra.mxu0 %v1119
      %1437 = vmatprep.subr.bf16.mxu0 0
      %1438 = vmatpush1.bf16.msra.mxu0 %v1120
      %1439 = vmatprep.subr.bf16.mxu0 0
      %1440 = vmatpush1.bf16.msra.mxu0 %v1121
      %1441 = vmatprep.subr.bf16.mxu0 0
      %1442 = vmatpush1.bf16.msra.mxu0 %v1122
      %1443 = vmatprep.subr.bf16.mxu0 0
      %1444 = vmatpush1.bf16.msra.mxu0 %v1123
      %1445 = vmatprep.subr.bf16.mxu0 0
      %1446 = vmatpush1.bf16.msra.mxu0 %v1124
      %1447 = vmatprep.mubr.bf16.mxu0 %v538
      %1448 = vmatmul.mubr.bf16.gmra.mrb[0].mxu0 %v537
      %v1449 = vpop.f32.mrb[0].mxu0
      %v1450 = vadd.f32 %v1409, %v1449
      %v1451 = vpop.f32.mrb[0].mxu0
      %v1452 = vpop.f32.mrb[0].mxu0
      %v1453 = vadd.f32 %v1412, %v1452
      %v1454 = vpop.f32.mrb[0].mxu0
      %1455 = vdwg.mxu0
      %1456 = vmatprep.subr.bf16.mxu0 0
      %1457 = vmatpush1.bf16.msra.mxu0 %v1125
      %1458 = vmatprep.subr.bf16.mxu0 0
      %1459 = vmatpush1.bf16.msra.mxu0 %v1126
      %1460 = vmatprep.subr.bf16.mxu0 0
      %1461 = vmatpush1.bf16.msra.mxu0 %v1127
      %1462 = vmatprep.subr.bf16.mxu0 0
      %1463 = vmatpush1.bf16.msra.mxu0 %v1128
      %1464 = vmatprep.subr.bf16.mxu0 0
      %1465 = vmatpush1.bf16.msra.mxu0 %v1129
      %1466 = vmatprep.subr.bf16.mxu0 0
      %1467 = vmatpush1.bf16.msra.mxu0 %v1130
      %1468 = vmatprep.subr.bf16.mxu0 0
      %1469 = vmatpush1.bf16.msra.mxu0 %v1131
      %1470 = vmatprep.subr.bf16.mxu0 0
      %1471 = vmatpush1.bf16.msra.mxu0 %v1132
      %1472 = vmatprep.subr.bf16.mxu0 0
      %1473 = vmatpush1.bf16.msra.mxu0 %v1133
      %1474 = vmatprep.subr.bf16.mxu0 0
      %1475 = vmatpush1.bf16.msra.mxu0 %v1134
      %1476 = vmatprep.subr.bf16.mxu0 0
      %1477 = vmatpush1.bf16.msra.mxu0 %v1135
      %1478 = vmatprep.subr.bf16.mxu0 0
      %1479 = vmatpush1.bf16.msra.mxu0 %v1136
      %1480 = vmatprep.subr.bf16.mxu0 0
      %1481 = vmatpush1.bf16.msra.mxu0 %v1137
      %1482 = vmatprep.subr.bf16.mxu0 0
      %1483 = vmatpush1.bf16.msra.mxu0 %v1138
      %1484 = vmatprep.subr.bf16.mxu0 0
      %1485 = vmatpush1.bf16.msra.mxu0 %v1139
      %1486 = vmatprep.subr.bf16.mxu0 0
      %1487 = vmatpush1.bf16.msra.mxu0 %v1140
      %1488 = vmatprep.mubr.bf16.mxu0 %v540
      %1489 = vmatmul.mubr.bf16.gmra.mrb[0].mxu0 %v539
      %v1490 = vpop.f32.mrb[0].mxu0
      %v1491 = vadd.f32 %v1450, %v1490
      %v1492 = vpop.f32.mrb[0].mxu0
      %v1493 = vpop.f32.mrb[0].mxu0
      %v1494 = vadd.f32 %v1453, %v1493
      %v1495 = vpop.f32.mrb[0].mxu0
      %1496 = vdwg.mxu0
      %1497 = vmatprep.subr.bf16.mxu0 0
      %1498 = vmatpush1.bf16.msra.mxu0 %v1141
      %1499 = vmatprep.subr.bf16.mxu0 0
      %1500 = vmatpush1.bf16.msra.mxu0 %v1142
      %1501 = vmatprep.subr.bf16.mxu0 0
      %1502 = vmatpush1.bf16.msra.mxu0 %v1143
      %1503 = vmatprep.subr.bf16.mxu0 0
      %1504 = vmatpush1.bf16.msra.mxu0 %v1144
      %1505 = vmatprep.subr.bf16.mxu0 0
      %1506 = vmatpush1.bf16.msra.mxu0 %v1145
      %1507 = vmatprep.subr.bf16.mxu0 0
      %1508 = vmatpush1.bf16.msra.mxu0 %v1146
      %1509 = vmatprep.subr.bf16.mxu0 0
      %1510 = vmatpush1.bf16.msra.mxu0 %v1147
      %1511 = vmatprep.subr.bf16.mxu0 0
      %1512 = vmatpush1.bf16.msra.mxu0 %v1148
      %1513 = vmatprep.subr.bf16.mxu0 0
      %1514 = vmatpush1.bf16.msra.mxu0 %v1149
      %1515 = vmatprep.subr.bf16.mxu0 0
      %1516 = vmatpush1.bf16.msra.mxu0 %v1150
      %1517 = vmatprep.subr.bf16.mxu0 0
      %1518 = vmatpush1.bf16.msra.mxu0 %v1151
      %1519 = vmatprep.subr.bf16.mxu0 0
      %1520 = vmatpush1.bf16.msra.mxu0 %v1152
      %1521 = vmatprep.subr.bf16.mxu0 0
      %1522 = vmatpush1.bf16.msra.mxu0 %v1153
      %1523 = vmatprep.subr.bf16.mxu0 0
      %1524 = vmatpush1.bf16.msra.mxu0 %v1154
      %1525 = vmatprep.subr.bf16.mxu0 0
      %1526 = vmatpush1.bf16.msra.mxu0 %v1155
      %1527 = vmatprep.subr.bf16.mxu0 0
      %1528 = vmatpush1.bf16.msra.mxu0 %v1156
      %1529 = vmatprep.mubr.bf16.mxu0 %v542
      %1530 = vmatmul.mubr.bf16.gmra.mrb[0].mxu0 %v541
      %v1531 = vpop.f32.mrb[0].mxu0
      %v1532 = vadd.f32 %v1491, %v1531
      %v1533 = vpop.f32.mrb[0].mxu0
      %v1534 = vpop.f32.mrb[0].mxu0
      %v1535 = vadd.f32 %v1494, %v1534
      %v1536 = vpop.f32.mrb[0].mxu0
      %1537 = vdwg.mxu0
      %1538 = vmatprep.subr.bf16.mxu0 0
      %1539 = vmatpush1.bf16.msra.mxu0 %v1157
      %1540 = vmatprep.subr.bf16.mxu0 0
      %1541 = vmatpush1.bf16.msra.mxu0 %v1158
      %1542 = vmatprep.subr.bf16.mxu0 0
      %1543 = vmatpush1.bf16.msra.mxu0 %v1159
      %1544 = vmatprep.subr.bf16.mxu0 0
      %1545 = vmatpush1.bf16.msra.mxu0 %v1160
      %1546 = vmatprep.subr.bf16.mxu0 0
      %1547 = vmatpush1.bf16.msra.mxu0 %v1161
      %1548 = vmatprep.subr.bf16.mxu0 0
      %1549 = vmatpush1.bf16.msra.mxu0 %v1162
      %1550 = vmatprep.subr.bf16.mxu0 0
      %1551 = vmatpush1.bf16.msra.mxu0 %v1163
      %1552 = vmatprep.subr.bf16.mxu0 0
      %1553 = vmatpush1.bf16.msra.mxu0 %v1164
      %1554 = vmatprep.subr.bf16.mxu0 0
      %1555 = vmatpush1.bf16.msra.mxu0 %v1165
      %1556 = vmatprep.subr.bf16.mxu0 0
      %1557 = vmatpush1.bf16.msra.mxu0 %v1166
      %1558 = vmatprep.subr.bf16.mxu0 0
      %1559 = vmatpush1.bf16.msra.mxu0 %v1167
      %1560 = vmatprep.subr.bf16.mxu0 0
      %1561 = vmatpush1.bf16.msra.mxu0 %v1168
      %1562 = vmatprep.subr.bf16.mxu0 0
      %1563 = vmatpush1.bf16.msra.mxu0 %v1169
      %1564 = vmatprep.subr.bf16.mxu0 0
      %1565 = vmatpush1.bf16.msra.mxu0 %v1170
      %1566 = vmatprep.subr.bf16.mxu0 0
      %1567 = vmatpush1.bf16.msra.mxu0 %v1171
      %1568 = vmatprep.subr.bf16.mxu0 0
      %1569 = vmatpush1.bf16.msra.mxu0 %v1172
      %1570 = vmatprep.mubr.bf16.mxu0 %v544
      %1571 = vmatmul.mubr.bf16.gmra.mrb[0].mxu0 %v543
      %v1572 = vpop.f32.mrb[0].mxu0
      %v1573 = vadd.f32 %v1532, %v1572
      %v1574 = vpop.f32.mrb[0].mxu0
      %v1575 = vpop.f32.mrb[0].mxu0
      %v1576 = vadd.f32 %v1535, %v1575
      %v1577 = vpop.f32.mrb[0].mxu0
      %1578 = vdwg.mxu0
      %1579 = vmatprep.subr.bf16.mxu0 0
      %1580 = vmatpush1.bf16.msra.mxu0 %v1173
      %1581 = vmatprep.subr.bf16.mxu0 0
      %1582 = vmatpush1.bf16.msra.mxu0 %v1174
      %1583 = vmatprep.subr.bf16.mxu0 0
      %1584 = vmatpush1.bf16.msra.mxu0 %v1175
      %1585 = vmatprep.subr.bf16.mxu0 0
      %1586 = vmatpush1.bf16.msra.mxu0 %v1176
      %1587 = vmatprep.subr.bf16.mxu0 0
      %1588 = vmatpush1.bf16.msra.mxu0 %v1177
      %1589 = vmatprep.subr.bf16.mxu0 0
      %1590 = vmatpush1.bf16.msra.mxu0 %v1178
      %1591 = vmatprep.subr.bf16.mxu0 0
      %1592 = vmatpush1.bf16.msra.mxu0 %v1179
      %1593 = vmatprep.subr.bf16.mxu0 0
      %1594 = vmatpush1.bf16.msra.mxu0 %v1180
      %1595 = vmatprep.subr.bf16.mxu0 0
      %1596 = vmatpush1.bf16.msra.mxu0 %v1181
      %1597 = vmatprep.subr.bf16.mxu0 0
      %1598 = vmatpush1.bf16.msra.mxu0 %v1182
      %1599 = vmatprep.subr.bf16.mxu0 0
      %1600 = vmatpush1.bf16.msra.mxu0 %v1183
      %1601 = vmatprep.subr.bf16.mxu0 0
      %1602 = vmatpush1.bf16.msra.mxu0 %v1184
      %1603 = vmatprep.subr.bf16.mxu0 0
      %1604 = vmatpush1.bf16.msra.mxu0 %v1185
      %1605 = vmatprep.subr.bf16.mxu0 0
      %1606 = vmatpush1.bf16.msra.mxu0 %v1186
      %1607 = vmatprep.subr.bf16.mxu0 0
      %1608 = vmatpush1.bf16.msra.mxu0 %v1187
      %1609 = vmatprep.subr.bf16.mxu0 0
      %1610 = vmatpush1.bf16.msra.mxu0 %v1188
      %1611 = vmatprep.mubr.bf16.mxu0 %v546
      %1612 = vmatmul.mubr.bf16.gmra.mrb[0].mxu0 %v545
      %v1613 = vpop.f32.mrb[0].mxu0
      %v1614 = vadd.f32 %v1573, %v1613
      %v1615 = vpop.f32.mrb[0].mxu0
      %v1616 = vpop.f32.mrb[0].mxu0
      %v1617 = vadd.f32 %v1576, %v1616
      %v1618 = vpop.f32.mrb[0].mxu0
      %1619 = vdwg.mxu0
      %1620 = vmatprep.subr.bf16.mxu0 0
      %1621 = vmatpush1.bf16.msra.mxu0 %v1189
      %1622 = vmatprep.subr.bf16.mxu0 0
      %1623 = vmatpush1.bf16.msra.mxu0 %v1190
      %1624 = vmatprep.subr.bf16.mxu0 0
      %1625 = vmatpush1.bf16.msra.mxu0 %v1191
      %1626 = vmatprep.subr.bf16.mxu0 0
      %1627 = vmatpush1.bf16.msra.mxu0 %v1192
      %1628 = vmatprep.subr.bf16.mxu0 0
      %1629 = vmatpush1.bf16.msra.mxu0 %v1193
      %1630 = vmatprep.subr.bf16.mxu0 0
      %1631 = vmatpush1.bf16.msra.mxu0 %v1194
      %1632 = vmatprep.subr.bf16.mxu0 0
      %1633 = vmatpush1.bf16.msra.mxu0 %v1195
      %1634 = vmatprep.subr.bf16.mxu0 0
      %1635 = vmatpush1.bf16.msra.mxu0 %v1196
      %1636 = vmatprep.subr.bf16.mxu0 0
      %1637 = vmatpush1.bf16.msra.mxu0 %v1197
      %1638 = vmatprep.subr.bf16.mxu0 0
      %1639 = vmatpush1.bf16.msra.mxu0 %v1198
      %1640 = vmatprep.subr.bf16.mxu0 0
      %1641 = vmatpush1.bf16.msra.mxu0 %v1199
      %1642 = vmatprep.subr.bf16.mxu0 0
      %1643 = vmatpush1.bf16.msra.mxu0 %v1200
      %1644 = vmatprep.subr.bf16.mxu0 0
      %1645 = vmatpush1.bf16.msra.mxu0 %v1201
      %1646 = vmatprep.subr.bf16.mxu0 0
      %1647 = vmatpush1.bf16.msra.mxu0 %v1202
      %1648 = vmatprep.subr.bf16.mxu0 0
      %1649 = vmatpush1.bf16.msra.mxu0 %v1203
      %1650 = vmatprep.subr.bf16.mxu0 0
      %1651 = vmatpush1.bf16.msra.mxu0 %v1204
      %1652 = vmatprep.mubr.bf16.mxu0 %v548
      %1653 = vmatmul.mubr.bf16.gmra.mrb[0].mxu0 %v547
      %v1654 = vpop.f32.mrb[0].mxu0
      %v1655 = vadd.f32 %v1614, %v1654
      %v1656 = vpop.f32.mrb[0].mxu0
      %v1657 = vpop.f32.mrb[0].mxu0
      %v1658 = vadd.f32 %v1617, %v1657
      %v1659 = vpop.f32.mrb[0].mxu0
      %1660 = vdwg.mxu0
      %v1661 = vpack.c.bf16 %v1658, %v1655
      %v1663 = vunpack.c.l.b16 %v1661
      %v1664 = vunpack.c.h.b16 %v1661
      %v1665 = vpack.c.b16 %v1663, %v1663
      %v1666 = vpack.c.b16 %v1664, %v1664
      %1669 = vst [vmem:[%s205] sm:$0xf] %v1665
      %1670 = vst [vmem:[%s205 + $0x4] sm:$0xf] %v1666
      %v1671 = vadd.f32 %v1655, %v1658
      %v1672 = vrot.slane %v1671, 4
      %v1673 = vadd.f32 %v1671, %v1672
      %v1674 = vrot.slane %v1673, 2
      %v1675 = vadd.f32 %v1673, %v1674
      %v1676 = vrot.slane %v1675, 1
      %v1677 = vadd.f32 %v1675, %v1676
      %v1678 = vmul.f32 %v1655, %v1655
      %v1679 = vmul.f32 %v1658, %v1658
      %v1680 = vadd.f32 %v1678, %v1679
      %v1681 = vrot.slane %v1680, 4
      %v1682 = vadd.f32 %v1680, %v1681
      %v1683 = vrot.slane %v1682, 2
      %v1684 = vadd.f32 %v1682, %v1683
      %v1685 = vrot.slane %v1684, 1
      %v1686 = vadd.f32 %v1684, %v1685
      %p1687 = scmp.eq.s32.totalorder %s20, 0
      // Predicated region
      $region29: #{dcgan_discriminator_forward.9} parent=27 // pred_check
        %p1688 = pneg %p1687
      $region30: #{dcgan_discriminator_forward.9} parent=27 // pred_check_branch
        %1690 = sbr.rel (%p1688) target = $region32
      $region31: #{dcgan_discriminator_forward.9} parent=27 // pred_region
        %1691 = vst [vmem:[#allocation2] sm:$0x3] 0.0
      $region32: #{dcgan_discriminator_forward.9} parent=27 // pred_fallthru
        _
      %v1692 = vld [vmem:[#allocation2] sm:$0x1]
      %v1693 = vadd.f32 %v1692, %v1677
      %1694 = vst [vmem:[#allocation2] sm:$0x1] %v1693
      %v1695 = vld [vmem:[#allocation2 + $0x1] sm:$0x1]
      %v1696 = vadd.f32 %v1695, %v1686
      %1697 = vst [vmem:[#allocation2 + $0x1] sm:$0x1] %v1696
      // Predicated region
      $region33: #{dcgan_discriminator_forward.9} parent=27 // pred_check
        %p1698 = pneg %p1687
      $region34: #{dcgan_discriminator_forward.9} parent=27 // pred_check_branch
        %1700 = sbr.rel (%p1698) target = $region36
      $region35: #{dcgan_discriminator_forward.9} parent=27 // pred_region
        %v1701 = vld [vmem:[#allocation2] sm:$0x3]
        %1702 = vst [vmem:[%s211] sm:$0x3] %v1701
      $region36: #{dcgan_discriminator_forward.9} parent=27 // pred_fallthru
        _
      %s1703 = sadd.s32 %s19, %s20
      %s1704 = smul.u32 2, %s1703
      %p1705 = scmp.lt.s32.totalorder %s1704, 3
      %s1706 = scalar_select %p1705, %s1704, 3
      %s1707 = smul.addr %s1706, 4
      %s1708 = scalar_lea.vmem %s2, %s1707
      %p1709 = scmp.lt.s32.totalorder %s19, 1
      %s1710 = scalar_select %p1709, %s19, 1
      %s1711 = smul.addr %s1710, 2
      %s1712 = scalar_lea.vmem %s3, %s1711
      // Predicated region
      $region37: #{dcgan_discriminator_forward.9} parent=27 // pred_check
        %p1713 = pneg %p96
      $region38: #{dcgan_discriminator_forward.9} parent=27 // pred_check_branch
        %1715 = sbr.rel (%p1713) target = $region40
      $region39: #{dcgan_discriminator_forward.9} parent=27 // pred_region
        %s1716 = sadd.s32 %s19, %s20
        %s1717 = smul.u32 2, %s1716
      $region40: #{dcgan_discriminator_forward.9} parent=27 // pred_fallthru
        _
      // Predicated region
      $region41: #{dcgan_discriminator_forward.9} parent=27 // pred_check
        %p1718 = pneg %p122
      $region42: #{dcgan_discriminator_forward.9} parent=27 // pred_check_branch
        %1720 = sbr.rel (%p1718) target = $region44
      $region43: #{dcgan_discriminator_forward.9} parent=27 // pred_region
        _
      $region44: #{dcgan_discriminator_forward.9} parent=27 // pred_fallthru
        _
    $region28: #{dcgan_discriminator_forward.9} parent=5 // pred_fallthru
      _
    %p1721 = scmp.le.s32.totalorder 2, %s10
    // Predicated region
    $region45: #{dcgan_discriminator_forward.9} parent=5 // pred_check
      %p1722 = pneg %p1721
    $region46: #{dcgan_discriminator_forward.9} parent=5 // pred_check_branch
      %1724 = sbr.rel (%p1722) target = $region48
    $region47: #{dcgan_discriminator_forward.9} parent=5 // pred_region
      %s1725 = ssub.s32 %s10, 2
      // Predicated region
      $region49: #{dcgan_discriminator_forward.9} parent=47 // pred_check
        %p1726 = pneg %p102
      $region50: #{dcgan_discriminator_forward.9} parent=47 // pred_check_branch
        %1728 = sbr.rel (%p1726) target = $region52
      $region51: #{dcgan_discriminator_forward.9} parent=47 // pred_region
        %s1729 = sadd.s32 %s21, %s22
        %s1730 = smul.u32 2, %s1729
        %p1731 = scmp.lt.s32.totalorder %s1730, 3
        %s1732 = scalar_select %p1731, %s1730, 3
        %s1733 = smul.addr %s1732, 4
        %s1734 = scalar_lea.vmem %s2, %s1733
      $region52: #{dcgan_discriminator_forward.9} parent=47 // pred_fallthru
        _
      // Predicated region
      $region53: #{dcgan_discriminator_forward.9} parent=47 // pred_check
        %p1735 = pneg %p128
      $region54: #{dcgan_discriminator_forward.9} parent=47 // pred_check_branch
        %1737 = sbr.rel (%p1735) target = $region56
      $region55: #{dcgan_discriminator_forward.9} parent=47 // pred_region
        %p1738 = scmp.lt.s32.totalorder %s21, 1
        %s1739 = scalar_select %p1738, %s21, 1
        %s1740 = smul.addr %s1739, 2
        %s1741 = scalar_lea.vmem %s3, %s1740
      $region56: #{dcgan_discriminator_forward.9} parent=47 // pred_fallthru
        _
    $region48: #{dcgan_discriminator_forward.9} parent=5 // pred_fallthru
      _
  $region6: #{dcgan_discriminator_forward.9} parent=0 // loop_footer
    %s14 = sadd.s32 1, %s10
  $region7: #{dcgan_discriminator_forward.9} parent=0 // loop_footer_branch
    %9 = sbr.rel target = $region3
  $region8: #{dcgan_discriminator_forward.9} parent=0 // loop_exit
    _

// kernel: dcgan_discriminator_forward.11
$region0: #{dcgan_discriminator_forward.11}
  #allocation0 [shape = 'u32[]', space=smem, size = 0x4, offset = 0x4, fixed_abs, tag = 'smem constant byte address 0x4 - core index']
  #allocation1 [shape = 'u32[144,128]{1,0:T(1,128)}', space=vmem, size = 0x12000, scoped, tag = 'internal scratch']
  %s0 = inlined_call_operand.vmem [shape: bf16[8,2048], index: 0, kind: input, shape index: {}]
  %s1 = inlined_call_operand.vmem [shape: bf16[2048,128], index: 1, kind: input, shape index: {}]
  %s2 = inlined_call_operand.vmem [shape: f32[8,128], index: 2, kind: output, shape index: {}]
  %s3 = sld [smem:[#allocation0]]
  $region18: #{dcgan_discriminator_forward.11} parent=0
    _
  %s5 = ssub.s32 1, %s3
  %s6 = scalar_select 0, %s5, %s3
  // Predicated region
  $region2: #{dcgan_discriminator_forward.11} parent=0 // pred_check
    _
  $region3: #{dcgan_discriminator_forward.11} parent=0 // pred_check_branch
    %8 = sbr.rel (0) target = $region5
  $region4: #{dcgan_discriminator_forward.11} parent=0 // pred_region
    _
  $region5: #{dcgan_discriminator_forward.11} parent=0 // pred_fallthru
    _
  // Predicated region
  $region6: #{dcgan_discriminator_forward.11} parent=0 // pred_check
    _
  $region7: #{dcgan_discriminator_forward.11} parent=0 // pred_check_branch
    %10 = sbr.rel (0) target = $region9
  $region8: #{dcgan_discriminator_forward.11} parent=0 // pred_region
    _
  $region9: #{dcgan_discriminator_forward.11} parent=0 // pred_fallthru
    _
  %v12 = vld [vmem:[%s0] sm:$0xff]
  %v13 = vld [vmem:[%s0 + $0x8] sm:$0xff]
  %v14 = vld [vmem:[%s0 + $0x10] sm:$0xff]
  %v15 = vld [vmem:[%s0 + $0x18] sm:$0xff]
  %v16 = vld [vmem:[%s0 + $0x20] sm:$0xff]
  %v17 = vld [vmem:[%s0 + $0x28] sm:$0xff]
  %v18 = vld [vmem:[%s0 + $0x30] sm:$0xff]
  %v19 = vld [vmem:[%s0 + $0x38] sm:$0xff]
  %v20 = vld [vmem:[%s1] sm:$0xf]
  %v21 = vld [vmem:[%s1 + $0x4] sm:$0xf]
  %v22 = vld [vmem:[%s1 + $0x8] sm:$0xf]
  %v23 = vld [vmem:[%s1 + $0xc] sm:$0xf]
  %v24 = vld [vmem:[%s1 + $0x10] sm:$0xf]
  %v25 = vld [vmem:[%s1 + $0x14] sm:$0xf]
  %v26 = vld [vmem:[%s1 + $0x18] sm:$0xf]
  %v27 = vld [vmem:[%s1 + $0x1c] sm:$0xf]
  %v28 = vld [vmem:[%s1 + $0x20] sm:$0xf]
  %v29 = vld [vmem:[%s1 + $0x24] sm:$0xf]
  %v30 = vld [vmem:[%s1 + $0x28] sm:$0xf]
  %v31 = vld [vmem:[%s1 + $0x2c] sm:$0xf]
  %v32 = vld [vmem:[%s1 + $0x30] sm:$0xf]
  %v33 = vld [vmem:[%s1 + $0x34] sm:$0xf]
  %v34 = vld [vmem:[%s1 + $0x38] sm:$0xf]
  %v35 = vld [vmem:[%s1 + $0x3c] sm:$0xf]
  %v36 = vld [vmem:[%s1 + $0x40] sm:$0xf]
  %v37 = vld [vmem:[%s1 + $0x44] sm:$0xf]
  %v38 = vld [vmem:[%s1 + $0x48] sm:$0xf]
  %v39 = vld [vmem:[%s1 + $0x4c] sm:$0xf]
  %v40 = vld [vmem:[%s1 + $0x50] sm:$0xf]
  %v41 = vld [vmem:[%s1 + $0x54] sm:$0xf]
  %v42 = vld [vmem:[%s1 + $0x58] sm:$0xf]
  %v43 = vld [vmem:[%s1 + $0x5c] sm:$0xf]
  %v44 = vld [vmem:[%s1 + $0x60] sm:$0xf]
  %v45 = vld [vmem:[%s1 + $0x64] sm:$0xf]
  %v46 = vld [vmem:[%s1 + $0x68] sm:$0xf]
  %v47 = vld [vmem:[%s1 + $0x6c] sm:$0xf]
  %v48 = vld [vmem:[%s1 + $0x70] sm:$0xf]
  %v49 = vld [vmem:[%s1 + $0x74] sm:$0xf]
  %v50 = vld [vmem:[%s1 + $0x78] sm:$0xf]
  %v51 = vld [vmem:[%s1 + $0x7c] sm:$0xf]
  %v52 = vld [vmem:[%s1 + $0x80] sm:$0xf]
  %v53 = vld [vmem:[%s1 + $0x84] sm:$0xf]
  %v54 = vld [vmem:[%s1 + $0x88] sm:$0xf]
  %v55 = vld [vmem:[%s1 + $0x8c] sm:$0xf]
  %v56 = vld [vmem:[%s1 + $0x90] sm:$0xf]
  %v57 = vld [vmem:[%s1 + $0x94] sm:$0xf]
  %v58 = vld [vmem:[%s1 + $0x98] sm:$0xf]
  %v59 = vld [vmem:[%s1 + $0x9c] sm:$0xf]
  %v60 = vld [vmem:[%s1 + $0xa0] sm:$0xf]
  %v61 = vld [vmem:[%s1 + $0xa4] sm:$0xf]
  %v62 = vld [vmem:[%s1 + $0xa8] sm:$0xf]
  %v63 = vld [vmem:[%s1 + $0xac] sm:$0xf]
  %v64 = vld [vmem:[%s1 + $0xb0] sm:$0xf]
  %v65 = vld [vmem:[%s1 + $0xb4] sm:$0xf]
  %v66 = vld [vmem:[%s1 + $0xb8] sm:$0xf]
  %v67 = vld [vmem:[%s1 + $0xbc] sm:$0xf]
  %v68 = vld [vmem:[%s1 + $0xc0] sm:$0xf]
  %v69 = vld [vmem:[%s1 + $0xc4] sm:$0xf]
  %v70 = vld [vmem:[%s1 + $0xc8] sm:$0xf]
  %v71 = vld [vmem:[%s1 + $0xcc] sm:$0xf]
  %v72 = vld [vmem:[%s1 + $0xd0] sm:$0xf]
  %v73 = vld [vmem:[%s1 + $0xd4] sm:$0xf]
  %v74 = vld [vmem:[%s1 + $0xd8] sm:$0xf]
  %v75 = vld [vmem:[%s1 + $0xdc] sm:$0xf]
  %v76 = vld [vmem:[%s1 + $0xe0] sm:$0xf]
  %v77 = vld [vmem:[%s1 + $0xe4] sm:$0xf]
  %v78 = vld [vmem:[%s1 + $0xe8] sm:$0xf]
  %v79 = vld [vmem:[%s1 + $0xec] sm:$0xf]
  %v80 = vld [vmem:[%s1 + $0xf0] sm:$0xf]
  %v81 = vld [vmem:[%s1 + $0xf4] sm:$0xf]
  %v82 = vld [vmem:[%s1 + $0xf8] sm:$0xf]
  %v83 = vld [vmem:[%s1 + $0xfc] sm:$0xf]
  %v84 = vld [vmem:[%s1 + $0x100] sm:$0xf]
  %v85 = vld [vmem:[%s1 + $0x104] sm:$0xf]
  %v86 = vld [vmem:[%s1 + $0x108] sm:$0xf]
  %v87 = vld [vmem:[%s1 + $0x10c] sm:$0xf]
  %v88 = vld [vmem:[%s1 + $0x110] sm:$0xf]
  %v89 = vld [vmem:[%s1 + $0x114] sm:$0xf]
  %v90 = vld [vmem:[%s1 + $0x118] sm:$0xf]
  %v91 = vld [vmem:[%s1 + $0x11c] sm:$0xf]
  %v92 = vld [vmem:[%s1 + $0x120] sm:$0xf]
  %v93 = vld [vmem:[%s1 + $0x124] sm:$0xf]
  %v94 = vld [vmem:[%s1 + $0x128] sm:$0xf]
  %v95 = vld [vmem:[%s1 + $0x12c] sm:$0xf]
  %v96 = vld [vmem:[%s1 + $0x130] sm:$0xf]
  %v97 = vld [vmem:[%s1 + $0x134] sm:$0xf]
  %v98 = vld [vmem:[%s1 + $0x138] sm:$0xf]
  %v99 = vld [vmem:[%s1 + $0x13c] sm:$0xf]
  %v100 = vld [vmem:[%s1 + $0x140] sm:$0xf]
  %v101 = vld [vmem:[%s1 + $0x144] sm:$0xf]
  %v102 = vld [vmem:[%s1 + $0x148] sm:$0xf]
  %v103 = vld [vmem:[%s1 + $0x14c] sm:$0xf]
  %v104 = vld [vmem:[%s1 + $0x150] sm:$0xf]
  %v105 = vld [vmem:[%s1 + $0x154] sm:$0xf]
  %v106 = vld [vmem:[%s1 + $0x158] sm:$0xf]
  %v107 = vld [vmem:[%s1 + $0x15c] sm:$0xf]
  %v108 = vld [vmem:[%s1 + $0x160] sm:$0xf]
  %v109 = vld [vmem:[%s1 + $0x164] sm:$0xf]
  %v110 = vld [vmem:[%s1 + $0x168] sm:$0xf]
  %v111 = vld [vmem:[%s1 + $0x16c] sm:$0xf]
  %v112 = vld [vmem:[%s1 + $0x170] sm:$0xf]
  %v113 = vld [vmem:[%s1 + $0x174] sm:$0xf]
  %v114 = vld [vmem:[%s1 + $0x178] sm:$0xf]
  %v115 = vld [vmem:[%s1 + $0x17c] sm:$0xf]
  %v116 = vld [vmem:[%s1 + $0x180] sm:$0xf]
  %v117 = vld [vmem:[%s1 + $0x184] sm:$0xf]
  %v118 = vld [vmem:[%s1 + $0x188] sm:$0xf]
  %v119 = vld [vmem:[%s1 + $0x18c] sm:$0xf]
  %v120 = vld [vmem:[%s1 + $0x190] sm:$0xf]
  %v121 = vld [vmem:[%s1 + $0x194] sm:$0xf]
  %v122 = vld [vmem:[%s1 + $0x198] sm:$0xf]
  %v123 = vld [vmem:[%s1 + $0x19c] sm:$0xf]
  %v124 = vld [vmem:[%s1 + $0x1a0] sm:$0xf]
  %v125 = vld [vmem:[%s1 + $0x1a4] sm:$0xf]
  %v126 = vld [vmem:[%s1 + $0x1a8] sm:$0xf]
  %v127 = vld [vmem:[%s1 + $0x1ac] sm:$0xf]
  %v128 = vld [vmem:[%s1 + $0x1b0] sm:$0xf]
  %v129 = vld [vmem:[%s1 + $0x1b4] sm:$0xf]
  %v130 = vld [vmem:[%s1 + $0x1b8] sm:$0xf]
  %v131 = vld [vmem:[%s1 + $0x1bc] sm:$0xf]
  %v132 = vld [vmem:[%s1 + $0x1c0] sm:$0xf]
  %v133 = vld [vmem:[%s1 + $0x1c4] sm:$0xf]
  %v134 = vld [vmem:[%s1 + $0x1c8] sm:$0xf]
  %v135 = vld [vmem:[%s1 + $0x1cc] sm:$0xf]
  %v136 = vld [vmem:[%s1 + $0x1d0] sm:$0xf]
  %v137 = vld [vmem:[%s1 + $0x1d4] sm:$0xf]
  %v138 = vld [vmem:[%s1 + $0x1d8] sm:$0xf]
  %v139 = vld [vmem:[%s1 + $0x1dc] sm:$0xf]
  %v140 = vld [vmem:[%s1 + $0x1e0] sm:$0xf]
  %v141 = vld [vmem:[%s1 + $0x1e4] sm:$0xf]
  %v142 = vld [vmem:[%s1 + $0x1e8] sm:$0xf]
  %v143 = vld [vmem:[%s1 + $0x1ec] sm:$0xf]
  %v144 = vld [vmem:[%s1 + $0x1f0] sm:$0xf]
  %v145 = vld [vmem:[%s1 + $0x1f4] sm:$0xf]
  %v146 = vld [vmem:[%s1 + $0x1f8] sm:$0xf]
  %v147 = vld [vmem:[%s1 + $0x1fc] sm:$0xf]
  %v148 = vld [vmem:[%s1 + $0x200] sm:$0xf]
  %v149 = vld [vmem:[%s1 + $0x204] sm:$0xf]
  %v150 = vld [vmem:[%s1 + $0x208] sm:$0xf]
  %v151 = vld [vmem:[%s1 + $0x20c] sm:$0xf]
  %v152 = vld [vmem:[%s1 + $0x210] sm:$0xf]
  %v153 = vld [vmem:[%s1 + $0x214] sm:$0xf]
  %v154 = vld [vmem:[%s1 + $0x218] sm:$0xf]
  %v155 = vld [vmem:[%s1 + $0x21c] sm:$0xf]
  %v156 = vld [vmem:[%s1 + $0x220] sm:$0xf]
  %v157 = vld [vmem:[%s1 + $0x224] sm:$0xf]
  %v158 = vld [vmem:[%s1 + $0x228] sm:$0xf]
  %v159 = vld [vmem:[%s1 + $0x22c] sm:$0xf]
  %v160 = vld [vmem:[%s1 + $0x230] sm:$0xf]
  %v161 = vld [vmem:[%s1 + $0x234] sm:$0xf]
  %v162 = vld [vmem:[%s1 + $0x238] sm:$0xf]
  %v163 = vld [vmem:[%s1 + $0x23c] sm:$0xf]
  %v164 = vld [vmem:[%s1 + $0x240] sm:$0xf]
  %v165 = vld [vmem:[%s1 + $0x244] sm:$0xf]
  %v166 = vld [vmem:[%s1 + $0x248] sm:$0xf]
  %v167 = vld [vmem:[%s1 + $0x24c] sm:$0xf]
  %v168 = vld [vmem:[%s1 + $0x250] sm:$0xf]
  %v169 = vld [vmem:[%s1 + $0x254] sm:$0xf]
  %v170 = vld [vmem:[%s1 + $0x258] sm:$0xf]
  %v171 = vld [vmem:[%s1 + $0x25c] sm:$0xf]
  %v172 = vld [vmem:[%s1 + $0x260] sm:$0xf]
  %v173 = vld [vmem:[%s1 + $0x264] sm:$0xf]
  %v174 = vld [vmem:[%s1 + $0x268] sm:$0xf]
  %v175 = vld [vmem:[%s1 + $0x26c] sm:$0xf]
  %v176 = vld [vmem:[%s1 + $0x270] sm:$0xf]
  %v177 = vld [vmem:[%s1 + $0x274] sm:$0xf]
  %v178 = vld [vmem:[%s1 + $0x278] sm:$0xf]
  %v179 = vld [vmem:[%s1 + $0x27c] sm:$0xf]
  %v180 = vld [vmem:[%s1 + $0x280] sm:$0xf]
  %v181 = vld [vmem:[%s1 + $0x284] sm:$0xf]
  %v182 = vld [vmem:[%s1 + $0x288] sm:$0xf]
  %v183 = vld [vmem:[%s1 + $0x28c] sm:$0xf]
  %v184 = vld [vmem:[%s1 + $0x290] sm:$0xf]
  %v185 = vld [vmem:[%s1 + $0x294] sm:$0xf]
  %v186 = vld [vmem:[%s1 + $0x298] sm:$0xf]
  %v187 = vld [vmem:[%s1 + $0x29c] sm:$0xf]
  %v188 = vld [vmem:[%s1 + $0x2a0] sm:$0xf]
  %v189 = vld [vmem:[%s1 + $0x2a4] sm:$0xf]
  %v190 = vld [vmem:[%s1 + $0x2a8] sm:$0xf]
  %v191 = vld [vmem:[%s1 + $0x2ac] sm:$0xf]
  %v192 = vld [vmem:[%s1 + $0x2b0] sm:$0xf]
  %v193 = vld [vmem:[%s1 + $0x2b4] sm:$0xf]
  %v194 = vld [vmem:[%s1 + $0x2b8] sm:$0xf]
  %v195 = vld [vmem:[%s1 + $0x2bc] sm:$0xf]
  %v196 = vld [vmem:[%s1 + $0x2c0] sm:$0xf]
  %v197 = vld [vmem:[%s1 + $0x2c4] sm:$0xf]
  %v198 = vld [vmem:[%s1 + $0x2c8] sm:$0xf]
  %v199 = vld [vmem:[%s1 + $0x2cc] sm:$0xf]
  %v200 = vld [vmem:[%s1 + $0x2d0] sm:$0xf]
  %v201 = vld [vmem:[%s1 + $0x2d4] sm:$0xf]
  %v202 = vld [vmem:[%s1 + $0x2d8] sm:$0xf]
  %v203 = vld [vmem:[%s1 + $0x2dc] sm:$0xf]
  %v204 = vld [vmem:[%s1 + $0x2e0] sm:$0xf]
  %v205 = vld [vmem:[%s1 + $0x2e4] sm:$0xf]
  %v206 = vld [vmem:[%s1 + $0x2e8] sm:$0xf]
  %v207 = vld [vmem:[%s1 + $0x2ec] sm:$0xf]
  %v208 = vld [vmem:[%s1 + $0x2f0] sm:$0xf]
  %v209 = vld [vmem:[%s1 + $0x2f4] sm:$0xf]
  %v210 = vld [vmem:[%s1 + $0x2f8] sm:$0xf]
  %v211 = vld [vmem:[%s1 + $0x2fc] sm:$0xf]
  %v212 = vld [vmem:[%s1 + $0x300] sm:$0xf]
  %v213 = vld [vmem:[%s1 + $0x304] sm:$0xf]
  %v214 = vld [vmem:[%s1 + $0x308] sm:$0xf]
  %v215 = vld [vmem:[%s1 + $0x30c] sm:$0xf]
  %v216 = vld [vmem:[%s1 + $0x310] sm:$0xf]
  %v217 = vld [vmem:[%s1 + $0x314] sm:$0xf]
  %v218 = vld [vmem:[%s1 + $0x318] sm:$0xf]
  %v219 = vld [vmem:[%s1 + $0x31c] sm:$0xf]
  %v220 = vld [vmem:[%s1 + $0x320] sm:$0xf]
  %v221 = vld [vmem:[%s1 + $0x324] sm:$0xf]
  %v222 = vld [vmem:[%s1 + $0x328] sm:$0xf]
  %v223 = vld [vmem:[%s1 + $0x32c] sm:$0xf]
  %v224 = vld [vmem:[%s1 + $0x330] sm:$0xf]
  %v225 = vld [vmem:[%s1 + $0x334] sm:$0xf]
  %v226 = vld [vmem:[%s1 + $0x338] sm:$0xf]
  %v227 = vld [vmem:[%s1 + $0x33c] sm:$0xf]
  %v228 = vld [vmem:[%s1 + $0x340] sm:$0xf]
  %v229 = vld [vmem:[%s1 + $0x344] sm:$0xf]
  %v230 = vld [vmem:[%s1 + $0x348] sm:$0xf]
  %v231 = vld [vmem:[%s1 + $0x34c] sm:$0xf]
  %v232 = vld [vmem:[%s1 + $0x350] sm:$0xf]
  %v233 = vld [vmem:[%s1 + $0x354] sm:$0xf]
  %v234 = vld [vmem:[%s1 + $0x358] sm:$0xf]
  %v235 = vld [vmem:[%s1 + $0x35c] sm:$0xf]
  %v236 = vld [vmem:[%s1 + $0x360] sm:$0xf]
  %v237 = vld [vmem:[%s1 + $0x364] sm:$0xf]
  %v238 = vld [vmem:[%s1 + $0x368] sm:$0xf]
  %v239 = vld [vmem:[%s1 + $0x36c] sm:$0xf]
  %v240 = vld [vmem:[%s1 + $0x370] sm:$0xf]
  %v241 = vld [vmem:[%s1 + $0x374] sm:$0xf]
  %v242 = vld [vmem:[%s1 + $0x378] sm:$0xf]
  %v243 = vld [vmem:[%s1 + $0x37c] sm:$0xf]
  %v244 = vld [vmem:[%s1 + $0x380] sm:$0xf]
  %v245 = vld [vmem:[%s1 + $0x384] sm:$0xf]
  %v246 = vld [vmem:[%s1 + $0x388] sm:$0xf]
  %v247 = vld [vmem:[%s1 + $0x38c] sm:$0xf]
  %v248 = vld [vmem:[%s1 + $0x390] sm:$0xf]
  %v249 = vld [vmem:[%s1 + $0x394] sm:$0xf]
  %v250 = vld [vmem:[%s1 + $0x398] sm:$0xf]
  %v251 = vld [vmem:[%s1 + $0x39c] sm:$0xf]
  %v252 = vld [vmem:[%s1 + $0x3a0] sm:$0xf]
  %v253 = vld [vmem:[%s1 + $0x3a4] sm:$0xf]
  %v254 = vld [vmem:[%s1 + $0x3a8] sm:$0xf]
  %v255 = vld [vmem:[%s1 + $0x3ac] sm:$0xf]
  %v256 = vld [vmem:[%s1 + $0x3b0] sm:$0xf]
  %v257 = vld [vmem:[%s1 + $0x3b4] sm:$0xf]
  %v258 = vld [vmem:[%s1 + $0x3b8] sm:$0xf]
  %v259 = vld [vmem:[%s1 + $0x3bc] sm:$0xf]
  %v260 = vld [vmem:[%s1 + $0x3c0] sm:$0xf]
  %v261 = vld [vmem:[%s1 + $0x3c4] sm:$0xf]
  %v262 = vld [vmem:[%s1 + $0x3c8] sm:$0xf]
  %v263 = vld [vmem:[%s1 + $0x3cc] sm:$0xf]
  %v264 = vld [vmem:[%s1 + $0x3d0] sm:$0xf]
  %v265 = vld [vmem:[%s1 + $0x3d4] sm:$0xf]
  %v266 = vld [vmem:[%s1 + $0x3d8] sm:$0xf]
  %v267 = vld [vmem:[%s1 + $0x3dc] sm:$0xf]
  %v268 = vld [vmem:[%s1 + $0x3e0] sm:$0xf]
  %v269 = vld [vmem:[%s1 + $0x3e4] sm:$0xf]
  %v270 = vld [vmem:[%s1 + $0x3e8] sm:$0xf]
  %v271 = vld [vmem:[%s1 + $0x3ec] sm:$0xf]
  %v272 = vld [vmem:[%s1 + $0x3f0] sm:$0xf]
  %v273 = vld [vmem:[%s1 + $0x3f4] sm:$0xf]
  %v274 = vld [vmem:[%s1 + $0x3f8] sm:$0xf]
  %v275 = vld [vmem:[%s1 + $0x3fc] sm:$0xf]
  %v284 = vunpack.c.l.b16 %v12
  %v285 = vunpack.c.h.b16 %v12
  %v286 = vunpack.c.l.b16 %v13
  %v287 = vunpack.c.h.b16 %v13
  %v288 = vunpack.c.l.b16 %v14
  %v289 = vunpack.c.h.b16 %v14
  %v290 = vunpack.c.l.b16 %v15
  %v291 = vunpack.c.h.b16 %v15
  %v292 = vunpack.c.l.b16 %v16
  %v293 = vunpack.c.h.b16 %v16
  %v294 = vunpack.c.l.b16 %v17
  %v295 = vunpack.c.h.b16 %v17
  %v296 = vunpack.c.l.b16 %v18
  %v297 = vunpack.c.h.b16 %v18
  %v298 = vunpack.c.l.b16 %v19
  %v299 = vunpack.c.h.b16 %v19
  %v300 = vpack.c.b16 %v284, %v284
  %v301 = vpack.c.b16 %v285, %v285
  %v302 = vpack.c.b16 %v286, %v286
  %v303 = vpack.c.b16 %v287, %v287
  %v304 = vpack.c.b16 %v288, %v288
  %v305 = vpack.c.b16 %v289, %v289
  %v306 = vpack.c.b16 %v290, %v290
  %v307 = vpack.c.b16 %v291, %v291
  %v308 = vpack.c.b16 %v292, %v292
  %v309 = vpack.c.b16 %v293, %v293
  %v310 = vpack.c.b16 %v294, %v294
  %v311 = vpack.c.b16 %v295, %v295
  %v312 = vpack.c.b16 %v296, %v296
  %v313 = vpack.c.b16 %v297, %v297
  %v314 = vpack.c.b16 %v298, %v298
  %v315 = vpack.c.b16 %v299, %v299
  %v588 = vunpack.c.l.b16 %v20
  %v589 = vunpack.c.l.b16 %v21
  %v590 = vunpack.c.l.b16 %v22
  %v591 = vunpack.c.l.b16 %v23
  %v592 = vunpack.c.l.b16 %v24
  %v593 = vunpack.c.l.b16 %v25
  %v594 = vunpack.c.l.b16 %v26
  %v595 = vunpack.c.l.b16 %v27
  %v596 = vunpack.c.l.b16 %v28
  %v597 = vunpack.c.l.b16 %v29
  %v598 = vunpack.c.l.b16 %v30
  %v599 = vunpack.c.l.b16 %v31
  %v600 = vunpack.c.l.b16 %v32
  %v601 = vunpack.c.l.b16 %v33
  %v602 = vunpack.c.l.b16 %v34
  %v603 = vunpack.c.l.b16 %v35
  %v604 = vunpack.c.l.b16 %v36
  %v605 = vunpack.c.l.b16 %v37
  %v606 = vunpack.c.l.b16 %v38
  %v607 = vunpack.c.l.b16 %v39
  %v608 = vunpack.c.l.b16 %v40
  %v609 = vunpack.c.l.b16 %v41
  %v610 = vunpack.c.l.b16 %v42
  %v611 = vunpack.c.l.b16 %v43
  %v612 = vunpack.c.l.b16 %v44
  %v613 = vunpack.c.l.b16 %v45
  %v614 = vunpack.c.l.b16 %v46
  %v615 = vunpack.c.l.b16 %v47
  %v616 = vunpack.c.l.b16 %v48
  %v617 = vunpack.c.l.b16 %v49
  %v618 = vunpack.c.l.b16 %v50
  %v619 = vunpack.c.l.b16 %v51
  %v620 = vunpack.c.l.b16 %v52
  %v621 = vunpack.c.l.b16 %v53
  %v622 = vunpack.c.l.b16 %v54
  %v623 = vunpack.c.l.b16 %v55
  %v624 = vunpack.c.l.b16 %v56
  %v625 = vunpack.c.l.b16 %v57
  %v626 = vunpack.c.l.b16 %v58
  %v627 = vunpack.c.l.b16 %v59
  %v628 = vunpack.c.l.b16 %v60
  %v629 = vunpack.c.l.b16 %v61
  %v630 = vunpack.c.l.b16 %v62
  %v631 = vunpack.c.l.b16 %v63
  %v632 = vunpack.c.l.b16 %v64
  %v633 = vunpack.c.l.b16 %v65
  %v634 = vunpack.c.l.b16 %v66
  %v635 = vunpack.c.l.b16 %v67
  %v636 = vunpack.c.l.b16 %v68
  %v637 = vunpack.c.l.b16 %v69
  %v638 = vunpack.c.l.b16 %v70
  %v639 = vunpack.c.l.b16 %v71
  %v640 = vunpack.c.l.b16 %v72
  %v641 = vunpack.c.l.b16 %v73
  %v642 = vunpack.c.l.b16 %v74
  %v643 = vunpack.c.l.b16 %v75
  %v644 = vunpack.c.l.b16 %v76
  %v645 = vunpack.c.l.b16 %v77
  %v646 = vunpack.c.l.b16 %v78
  %v647 = vunpack.c.l.b16 %v79
  %v648 = vunpack.c.l.b16 %v80
  %v649 = vunpack.c.l.b16 %v81
  %v650 = vunpack.c.l.b16 %v82
  %v651 = vunpack.c.l.b16 %v83
  %v652 = vunpack.c.l.b16 %v84
  %v653 = vunpack.c.l.b16 %v85
  %v654 = vunpack.c.l.b16 %v86
  %v655 = vunpack.c.l.b16 %v87
  %v656 = vunpack.c.l.b16 %v88
  %v657 = vunpack.c.l.b16 %v89
  %v658 = vunpack.c.l.b16 %v90
  %v659 = vunpack.c.l.b16 %v91
  %v660 = vunpack.c.l.b16 %v92
  %v661 = vunpack.c.l.b16 %v93
  %v662 = vunpack.c.l.b16 %v94
  %v663 = vunpack.c.l.b16 %v95
  %v664 = vunpack.c.l.b16 %v96
  %v665 = vunpack.c.l.b16 %v97
  %v666 = vunpack.c.l.b16 %v98
  %v667 = vunpack.c.l.b16 %v99
  %v668 = vunpack.c.l.b16 %v100
  %v669 = vunpack.c.l.b16 %v101
  %v670 = vunpack.c.l.b16 %v102
  %v671 = vunpack.c.l.b16 %v103
  %v672 = vunpack.c.l.b16 %v104
  %v673 = vunpack.c.l.b16 %v105
  %v674 = vunpack.c.l.b16 %v106
  %v675 = vunpack.c.l.b16 %v107
  %v676 = vunpack.c.l.b16 %v108
  %v677 = vunpack.c.l.b16 %v109
  %v678 = vunpack.c.l.b16 %v110
  %v679 = vunpack.c.l.b16 %v111
  %v680 = vunpack.c.l.b16 %v112
  %v681 = vunpack.c.l.b16 %v113
  %v682 = vunpack.c.l.b16 %v114
  %v683 = vunpack.c.l.b16 %v115
  %v684 = vunpack.c.l.b16 %v116
  %v685 = vunpack.c.l.b16 %v117
  %v686 = vunpack.c.l.b16 %v118
  %v687 = vunpack.c.l.b16 %v119
  %v688 = vunpack.c.l.b16 %v120
  %v689 = vunpack.c.l.b16 %v121
  %v690 = vunpack.c.l.b16 %v122
  %v691 = vunpack.c.l.b16 %v123
  %v692 = vunpack.c.l.b16 %v124
  %v693 = vunpack.c.l.b16 %v125
  %v694 = vunpack.c.l.b16 %v126
  %v695 = vunpack.c.l.b16 %v127
  %v696 = vunpack.c.l.b16 %v128
  %v697 = vunpack.c.l.b16 %v129
  %v698 = vunpack.c.l.b16 %v130
  %v699 = vunpack.c.l.b16 %v131
  %v700 = vunpack.c.l.b16 %v132
  %v701 = vunpack.c.l.b16 %v133
  %v702 = vunpack.c.l.b16 %v134
  %v703 = vunpack.c.l.b16 %v135
  %v704 = vunpack.c.l.b16 %v136
  %v705 = vunpack.c.l.b16 %v137
  %v706 = vunpack.c.l.b16 %v138
  %v707 = vunpack.c.l.b16 %v139
  %v708 = vunpack.c.l.b16 %v140
  %v709 = vunpack.c.l.b16 %v141
  %v710 = vunpack.c.l.b16 %v142
  %v711 = vunpack.c.l.b16 %v143
  %v712 = vunpack.c.l.b16 %v144
  %v713 = vunpack.c.l.b16 %v145
  %v714 = vunpack.c.l.b16 %v146
  %v715 = vunpack.c.l.b16 %v147
  %v716 = vunpack.c.l.b16 %v148
  %v717 = vunpack.c.l.b16 %v149
  %v718 = vunpack.c.l.b16 %v150
  %v719 = vunpack.c.l.b16 %v151
  %v720 = vunpack.c.l.b16 %v152
  %v721 = vunpack.c.l.b16 %v153
  %v722 = vunpack.c.l.b16 %v154
  %v723 = vunpack.c.l.b16 %v155
  %v724 = vunpack.c.l.b16 %v156
  %v725 = vunpack.c.l.b16 %v157
  %v726 = vunpack.c.l.b16 %v158
  %v727 = vunpack.c.l.b16 %v159
  %v728 = vunpack.c.l.b16 %v160
  %v729 = vunpack.c.l.b16 %v161
  %v730 = vunpack.c.l.b16 %v162
  %v731 = vunpack.c.l.b16 %v163
  %v732 = vunpack.c.l.b16 %v164
  %v733 = vunpack.c.l.b16 %v165
  %v734 = vunpack.c.l.b16 %v166
  %v735 = vunpack.c.l.b16 %v167
  %v736 = vunpack.c.l.b16 %v168
  %v737 = vunpack.c.l.b16 %v169
  %v738 = vunpack.c.l.b16 %v170
  %v739 = vunpack.c.l.b16 %v171
  %v740 = vunpack.c.l.b16 %v172
  %v741 = vunpack.c.l.b16 %v173
  %v742 = vunpack.c.l.b16 %v174
  %v743 = vunpack.c.l.b16 %v175
  %v744 = vunpack.c.l.b16 %v176
  %v745 = vunpack.c.l.b16 %v177
  %v746 = vunpack.c.l.b16 %v178
  %v747 = vunpack.c.l.b16 %v179
  %v748 = vunpack.c.l.b16 %v180
  %v749 = vunpack.c.l.b16 %v181
  %v750 = vunpack.c.l.b16 %v182
  %v751 = vunpack.c.l.b16 %v183
  %v752 = vunpack.c.l.b16 %v184
  %v753 = vunpack.c.l.b16 %v185
  %v754 = vunpack.c.l.b16 %v186
  %v755 = vunpack.c.l.b16 %v187
  %v756 = vunpack.c.l.b16 %v188
  %v757 = vunpack.c.l.b16 %v189
  %v758 = vunpack.c.l.b16 %v190
  %v759 = vunpack.c.l.b16 %v191
  %v760 = vunpack.c.l.b16 %v192
  %v761 = vunpack.c.l.b16 %v193
  %v762 = vunpack.c.l.b16 %v194
  %v763 = vunpack.c.l.b16 %v195
  %v764 = vunpack.c.l.b16 %v196
  %v765 = vunpack.c.l.b16 %v197
  %v766 = vunpack.c.l.b16 %v198
  %v767 = vunpack.c.l.b16 %v199
  %v768 = vunpack.c.l.b16 %v200
  %v769 = vunpack.c.l.b16 %v201
  %v770 = vunpack.c.l.b16 %v202
  %v771 = vunpack.c.l.b16 %v203
  %v772 = vunpack.c.l.b16 %v204
  %v773 = vunpack.c.l.b16 %v205
  %v774 = vunpack.c.l.b16 %v206
  %v775 = vunpack.c.l.b16 %v207
  %v776 = vunpack.c.l.b16 %v208
  %v777 = vunpack.c.l.b16 %v209
  %v778 = vunpack.c.l.b16 %v210
  %v779 = vunpack.c.l.b16 %v211
  %v780 = vunpack.c.l.b16 %v212
  %v781 = vunpack.c.l.b16 %v213
  %v782 = vunpack.c.l.b16 %v214
  %v783 = vunpack.c.l.b16 %v215
  %v784 = vunpack.c.l.b16 %v216
  %v785 = vunpack.c.l.b16 %v217
  %v786 = vunpack.c.l.b16 %v218
  %v787 = vunpack.c.l.b16 %v219
  %v788 = vunpack.c.l.b16 %v220
  %v789 = vunpack.c.l.b16 %v221
  %v790 = vunpack.c.l.b16 %v222
  %v791 = vunpack.c.l.b16 %v223
  %v792 = vunpack.c.l.b16 %v224
  %v793 = vunpack.c.l.b16 %v225
  %v794 = vunpack.c.l.b16 %v226
  %v795 = vunpack.c.l.b16 %v227
  %v796 = vunpack.c.l.b16 %v228
  %v797 = vunpack.c.l.b16 %v229
  %v798 = vunpack.c.l.b16 %v230
  %v799 = vunpack.c.l.b16 %v231
  %v800 = vunpack.c.l.b16 %v232
  %v801 = vunpack.c.l.b16 %v233
  %v802 = vunpack.c.l.b16 %v234
  %v803 = vunpack.c.l.b16 %v235
  %v804 = vunpack.c.l.b16 %v236
  %v805 = vunpack.c.l.b16 %v237
  %v806 = vunpack.c.l.b16 %v238
  %v807 = vunpack.c.l.b16 %v239
  %v808 = vunpack.c.l.b16 %v240
  %v809 = vunpack.c.l.b16 %v241
  %v810 = vunpack.c.l.b16 %v242
  %v811 = vunpack.c.l.b16 %v243
  %v812 = vunpack.c.l.b16 %v244
  %v813 = vunpack.c.l.b16 %v245
  %v814 = vunpack.c.l.b16 %v246
  %v815 = vunpack.c.l.b16 %v247
  %v816 = vunpack.c.l.b16 %v248
  %v817 = vunpack.c.l.b16 %v249
  %v818 = vunpack.c.l.b16 %v250
  %v819 = vunpack.c.l.b16 %v251
  %v820 = vunpack.c.l.b16 %v252
  %v821 = vunpack.c.l.b16 %v253
  %v822 = vunpack.c.l.b16 %v254
  %v823 = vunpack.c.l.b16 %v255
  %v824 = vunpack.c.l.b16 %v256
  %v825 = vunpack.c.l.b16 %v257
  %v826 = vunpack.c.l.b16 %v258
  %v827 = vunpack.c.l.b16 %v259
  %v828 = vunpack.c.l.b16 %v260
  %v829 = vunpack.c.l.b16 %v261
  %v830 = vunpack.c.l.b16 %v262
  %v831 = vunpack.c.l.b16 %v263
  %v832 = vunpack.c.l.b16 %v264
  %v833 = vunpack.c.l.b16 %v265
  %v834 = vunpack.c.l.b16 %v266
  %v835 = vunpack.c.l.b16 %v267
  %v836 = vunpack.c.l.b16 %v268
  %v837 = vunpack.c.l.b16 %v269
  %v838 = vunpack.c.l.b16 %v270
  %v839 = vunpack.c.l.b16 %v271
  %v840 = vunpack.c.l.b16 %v272
  %v841 = vunpack.c.l.b16 %v273
  %v842 = vunpack.c.l.b16 %v274
  %v843 = vunpack.c.l.b16 %v275
  %v844 = vpack.c.b16 %v589, %v588
  %v845 = vpack.c.b16 %v591, %v590
  %v846 = vpack.c.b16 %v593, %v592
  %v847 = vpack.c.b16 %v595, %v594
  %v848 = vpack.c.b16 %v597, %v596
  %v849 = vpack.c.b16 %v599, %v598
  %v850 = vpack.c.b16 %v601, %v600
  %v851 = vpack.c.b16 %v603, %v602
  %v852 = vpack.c.b16 %v605, %v604
  %v853 = vpack.c.b16 %v607, %v606
  %v854 = vpack.c.b16 %v609, %v608
  %v855 = vpack.c.b16 %v611, %v610
  %v856 = vpack.c.b16 %v613, %v612
  %v857 = vpack.c.b16 %v615, %v614
  %v858 = vpack.c.b16 %v617, %v616
  %v859 = vpack.c.b16 %v619, %v618
  %v860 = vpack.c.b16 %v621, %v620
  %v861 = vpack.c.b16 %v623, %v622
  %v862 = vpack.c.b16 %v625, %v624
  %v863 = vpack.c.b16 %v627, %v626
  %v864 = vpack.c.b16 %v629, %v628
  %v865 = vpack.c.b16 %v631, %v630
  %v866 = vpack.c.b16 %v633, %v632
  %v867 = vpack.c.b16 %v635, %v634
  %v868 = vpack.c.b16 %v637, %v636
  %v869 = vpack.c.b16 %v639, %v638
  %v870 = vpack.c.b16 %v641, %v640
  %v871 = vpack.c.b16 %v643, %v642
  %v872 = vpack.c.b16 %v645, %v644
  %v873 = vpack.c.b16 %v647, %v646
  %v874 = vpack.c.b16 %v649, %v648
  %v875 = vpack.c.b16 %v651, %v650
  %v876 = vpack.c.b16 %v653, %v652
  %v877 = vpack.c.b16 %v655, %v654
  %v878 = vpack.c.b16 %v657, %v656
  %v879 = vpack.c.b16 %v659, %v658
  %v880 = vpack.c.b16 %v661, %v660
  %v881 = vpack.c.b16 %v663, %v662
  %v882 = vpack.c.b16 %v665, %v664
  %v883 = vpack.c.b16 %v667, %v666
  %v884 = vpack.c.b16 %v669, %v668
  %v885 = vpack.c.b16 %v671, %v670
  %v886 = vpack.c.b16 %v673, %v672
  %v887 = vpack.c.b16 %v675, %v674
  %v888 = vpack.c.b16 %v677, %v676
  %v889 = vpack.c.b16 %v679, %v678
  %v890 = vpack.c.b16 %v681, %v680
  %v891 = vpack.c.b16 %v683, %v682
  %v892 = vpack.c.b16 %v685, %v684
  %v893 = vpack.c.b16 %v687, %v686
  %v894 = vpack.c.b16 %v689, %v688
  %v895 = vpack.c.b16 %v691, %v690
  %v896 = vpack.c.b16 %v693, %v692
  %v897 = vpack.c.b16 %v695, %v694
  %v898 = vpack.c.b16 %v697, %v696
  %v899 = vpack.c.b16 %v699, %v698
  %v900 = vpack.c.b16 %v701, %v700
  %v901 = vpack.c.b16 %v703, %v702
  %v902 = vpack.c.b16 %v705, %v704
  %v903 = vpack.c.b16 %v707, %v706
  %v904 = vpack.c.b16 %v709, %v708
  %v905 = vpack.c.b16 %v711, %v710
  %v906 = vpack.c.b16 %v713, %v712
  %v907 = vpack.c.b16 %v715, %v714
  %v908 = vpack.c.b16 %v717, %v716
  %v909 = vpack.c.b16 %v719, %v718
  %v910 = vpack.c.b16 %v721, %v720
  %v911 = vpack.c.b16 %v723, %v722
  %v912 = vpack.c.b16 %v725, %v724
  %v913 = vpack.c.b16 %v727, %v726
  %v914 = vpack.c.b16 %v729, %v728
  %v915 = vpack.c.b16 %v731, %v730
  %v916 = vpack.c.b16 %v733, %v732
  %v917 = vpack.c.b16 %v735, %v734
  %v918 = vpack.c.b16 %v737, %v736
  %v919 = vpack.c.b16 %v739, %v738
  %v920 = vpack.c.b16 %v741, %v740
  %v921 = vpack.c.b16 %v743, %v742
  %v922 = vpack.c.b16 %v745, %v744
  %v923 = vpack.c.b16 %v747, %v746
  %v924 = vpack.c.b16 %v749, %v748
  %v925 = vpack.c.b16 %v751, %v750
  %v926 = vpack.c.b16 %v753, %v752
  %v927 = vpack.c.b16 %v755, %v754
  %v928 = vpack.c.b16 %v757, %v756
  %v929 = vpack.c.b16 %v759, %v758
  %v930 = vpack.c.b16 %v761, %v760
  %v931 = vpack.c.b16 %v763, %v762
  %v932 = vpack.c.b16 %v765, %v764
  %v933 = vpack.c.b16 %v767, %v766
  %v934 = vpack.c.b16 %v769, %v768
  %v935 = vpack.c.b16 %v771, %v770
  %v936 = vpack.c.b16 %v773, %v772
  %v937 = vpack.c.b16 %v775, %v774
  %v938 = vpack.c.b16 %v777, %v776
  %v939 = vpack.c.b16 %v779, %v778
  %v940 = vpack.c.b16 %v781, %v780
  %v941 = vpack.c.b16 %v783, %v782
  %v942 = vpack.c.b16 %v785, %v784
  %v943 = vpack.c.b16 %v787, %v786
  %v944 = vpack.c.b16 %v789, %v788
  %v945 = vpack.c.b16 %v791, %v790
  %v946 = vpack.c.b16 %v793, %v792
  %v947 = vpack.c.b16 %v795, %v794
  %v948 = vpack.c.b16 %v797, %v796
  %v949 = vpack.c.b16 %v799, %v798
  %v950 = vpack.c.b16 %v801, %v800
  %v951 = vpack.c.b16 %v803, %v802
  %v952 = vpack.c.b16 %v805, %v804
  %v953 = vpack.c.b16 %v807, %v806
  %v954 = vpack.c.b16 %v809, %v808
  %v955 = vpack.c.b16 %v811, %v810
  %v956 = vpack.c.b16 %v813, %v812
  %v957 = vpack.c.b16 %v815, %v814
  %v958 = vpack.c.b16 %v817, %v816
  %v959 = vpack.c.b16 %v819, %v818
  %v960 = vpack.c.b16 %v821, %v820
  %v961 = vpack.c.b16 %v823, %v822
  %v962 = vpack.c.b16 %v825, %v824
  %v963 = vpack.c.b16 %v827, %v826
  %v964 = vpack.c.b16 %v829, %v828
  %v965 = vpack.c.b16 %v831, %v830
  %v966 = vpack.c.b16 %v833, %v832
  %v967 = vpack.c.b16 %v835, %v834
  %v968 = vpack.c.b16 %v837, %v836
  %v969 = vpack.c.b16 %v839, %v838
  %v970 = vpack.c.b16 %v841, %v840
  %v971 = vpack.c.b16 %v843, %v842
  %1100 = vmatprep.subr.bf16.mxu0 0
  %1101 = vmatpush1.bf16.msra.mxu0 %v844
  %1102 = vmatprep.subr.bf16.mxu0 0
  %1103 = vmatpush1.bf16.msra.mxu0 %v845
  %1104 = vmatprep.subr.bf16.mxu0 0
  %1105 = vmatpush1.bf16.msra.mxu0 %v846
  %1106 = vmatprep.subr.bf16.mxu0 0
  %1107 = vmatpush1.bf16.msra.mxu0 %v847
  %1108 = vmatprep.subr.bf16.mxu0 0
  %1109 = vmatpush1.bf16.msra.mxu0 %v848
  %1110 = vmatprep.subr.bf16.mxu0 0
  %1111 = vmatpush1.bf16.msra.mxu0 %v849
  %1112 = vmatprep.subr.bf16.mxu0 0
  %1113 = vmatpush1.bf16.msra.mxu0 %v850
  %1114 = vmatprep.subr.bf16.mxu0 0
  %1115 = vmatpush1.bf16.msra.mxu0 %v851
  %1116 = vmatprep.subr.bf16.mxu0 0
  %1117 = vmatpush1.bf16.msra.mxu0 %v852
  %1118 = vmatprep.subr.bf16.mxu0 0
  %1119 = vmatpush1.bf16.msra.mxu0 %v853
  %1120 = vmatprep.subr.bf16.mxu0 0
  %1121 = vmatpush1.bf16.msra.mxu0 %v854
  %1122 = vmatprep.subr.bf16.mxu0 0
  %1123 = vmatpush1.bf16.msra.mxu0 %v855
  %1124 = vmatprep.subr.bf16.mxu0 0
  %1125 = vmatpush1.bf16.msra.mxu0 %v856
  %1126 = vmatprep.subr.bf16.mxu0 0
  %1127 = vmatpush1.bf16.msra.mxu0 %v857
  %1128 = vmatprep.subr.bf16.mxu0 0
  %1129 = vmatpush1.bf16.msra.mxu0 %v858
  %1130 = vmatprep.subr.bf16.mxu0 0
  %1131 = vmatpush1.bf16.msra.mxu0 %v859
  %1132 = vmatprep.mubr.bf16.mxu0 %v301
  %1133 = vmatmul.mubr.bf16.gmra.mrb[0].mxu0 %v300
  %v1134 = vpop.f32.mrb[0].mxu0
  %v1135 = vadd.f32 0.0, %v1134
  %v1136 = vpop.f32.mrb[0].mxu0
  %v1137 = vpop.f32.mrb[0].mxu0
  %v1138 = vpop.f32.mrb[0].mxu0
  %1139 = vdwg.mxu0
  %1140 = vmatprep.subr.bf16.mxu0 0
  %1141 = vmatpush1.bf16.msra.mxu0 %v860
  %1142 = vmatprep.subr.bf16.mxu0 0
  %1143 = vmatpush1.bf16.msra.mxu0 %v861
  %1144 = vmatprep.subr.bf16.mxu0 0
  %1145 = vmatpush1.bf16.msra.mxu0 %v862
  %1146 = vmatprep.subr.bf16.mxu0 0
  %1147 = vmatpush1.bf16.msra.mxu0 %v863
  %1148 = vmatprep.subr.bf16.mxu0 0
  %1149 = vmatpush1.bf16.msra.mxu0 %v864
  %1150 = vmatprep.subr.bf16.mxu0 0
  %1151 = vmatpush1.bf16.msra.mxu0 %v865
  %1152 = vmatprep.subr.bf16.mxu0 0
  %1153 = vmatpush1.bf16.msra.mxu0 %v866
  %1154 = vmatprep.subr.bf16.mxu0 0
  %1155 = vmatpush1.bf16.msra.mxu0 %v867
  %1156 = vmatprep.subr.bf16.mxu0 0
  %1157 = vmatpush1.bf16.msra.mxu0 %v868
  %1158 = vmatprep.subr.bf16.mxu0 0
  %1159 = vmatpush1.bf16.msra.mxu0 %v869
  %1160 = vmatprep.subr.bf16.mxu0 0
  %1161 = vmatpush1.bf16.msra.mxu0 %v870
  %1162 = vmatprep.subr.bf16.mxu0 0
  %1163 = vmatpush1.bf16.msra.mxu0 %v871
  %1164 = vmatprep.subr.bf16.mxu0 0
  %1165 = vmatpush1.bf16.msra.mxu0 %v872
  %1166 = vmatprep.subr.bf16.mxu0 0
  %1167 = vmatpush1.bf16.msra.mxu0 %v873
  %1168 = vmatprep.subr.bf16.mxu0 0
  %1169 = vmatpush1.bf16.msra.mxu0 %v874
  %1170 = vmatprep.subr.bf16.mxu0 0
  %1171 = vmatpush1.bf16.msra.mxu0 %v875
  %1172 = vmatprep.mubr.bf16.mxu0 %v303
  %1173 = vmatmul.mubr.bf16.gmra.mrb[0].mxu0 %v302
  %v1174 = vpop.f32.mrb[0].mxu0
  %v1175 = vadd.f32 %v1135, %v1174
  %v1176 = vpop.f32.mrb[0].mxu0
  %v1177 = vpop.f32.mrb[0].mxu0
  %v1178 = vpop.f32.mrb[0].mxu0
  %1179 = vdwg.mxu0
  %1180 = vmatprep.subr.bf16.mxu0 0
  %1181 = vmatpush1.bf16.msra.mxu0 %v876
  %1182 = vmatprep.subr.bf16.mxu0 0
  %1183 = vmatpush1.bf16.msra.mxu0 %v877
  %1184 = vmatprep.subr.bf16.mxu0 0
  %1185 = vmatpush1.bf16.msra.mxu0 %v878
  %1186 = vmatprep.subr.bf16.mxu0 0
  %1187 = vmatpush1.bf16.msra.mxu0 %v879
  %1188 = vmatprep.subr.bf16.mxu0 0
  %1189 = vmatpush1.bf16.msra.mxu0 %v880
  %1190 = vmatprep.subr.bf16.mxu0 0
  %1191 = vmatpush1.bf16.msra.mxu0 %v881
  %1192 = vmatprep.subr.bf16.mxu0 0
  %1193 = vmatpush1.bf16.msra.mxu0 %v882
  %1194 = vmatprep.subr.bf16.mxu0 0
  %1195 = vmatpush1.bf16.msra.mxu0 %v883
  %1196 = vmatprep.subr.bf16.mxu0 0
  %1197 = vmatpush1.bf16.msra.mxu0 %v884
  %1198 = vmatprep.subr.bf16.mxu0 0
  %1199 = vmatpush1.bf16.msra.mxu0 %v885
  %1200 = vmatprep.subr.bf16.mxu0 0
  %1201 = vmatpush1.bf16.msra.mxu0 %v886
  %1202 = vmatprep.subr.bf16.mxu0 0
  %1203 = vmatpush1.bf16.msra.mxu0 %v887
  %1204 = vmatprep.subr.bf16.mxu0 0
  %1205 = vmatpush1.bf16.msra.mxu0 %v888
  %1206 = vmatprep.subr.bf16.mxu0 0
  %1207 = vmatpush1.bf16.msra.mxu0 %v889
  %1208 = vmatprep.subr.bf16.mxu0 0
  %1209 = vmatpush1.bf16.msra.mxu0 %v890
  %1210 = vmatprep.subr.bf16.mxu0 0
  %1211 = vmatpush1.bf16.msra.mxu0 %v891
  %1212 = vmatprep.mubr.bf16.mxu0 %v305
  %1213 = vmatmul.mubr.bf16.gmra.mrb[0].mxu0 %v304
  %v1214 = vpop.f32.mrb[0].mxu0
  %v1215 = vadd.f32 %v1175, %v1214
  %v1216 = vpop.f32.mrb[0].mxu0
  %v1217 = vpop.f32.mrb[0].mxu0
  %v1218 = vpop.f32.mrb[0].mxu0
  %1219 = vdwg.mxu0
  %1220 = vmatprep.subr.bf16.mxu0 0
  %1221 = vmatpush1.bf16.msra.mxu0 %v892
  %1222 = vmatprep.subr.bf16.mxu0 0
  %1223 = vmatpush1.bf16.msra.mxu0 %v893
  %1224 = vmatprep.subr.bf16.mxu0 0
  %1225 = vmatpush1.bf16.msra.mxu0 %v894
  %1226 = vmatprep.subr.bf16.mxu0 0
  %1227 = vmatpush1.bf16.msra.mxu0 %v895
  %1228 = vmatprep.subr.bf16.mxu0 0
  %1229 = vmatpush1.bf16.msra.mxu0 %v896
  %1230 = vmatprep.subr.bf16.mxu0 0
  %1231 = vmatpush1.bf16.msra.mxu0 %v897
  %1232 = vmatprep.subr.bf16.mxu0 0
  %1233 = vmatpush1.bf16.msra.mxu0 %v898
  %1234 = vmatprep.subr.bf16.mxu0 0
  %1235 = vmatpush1.bf16.msra.mxu0 %v899
  %1236 = vmatprep.subr.bf16.mxu0 0
  %1237 = vmatpush1.bf16.msra.mxu0 %v900
  %1238 = vmatprep.subr.bf16.mxu0 0
  %1239 = vmatpush1.bf16.msra.mxu0 %v901
  %1240 = vmatprep.subr.bf16.mxu0 0
  %1241 = vmatpush1.bf16.msra.mxu0 %v902
  %1242 = vmatprep.subr.bf16.mxu0 0
  %1243 = vmatpush1.bf16.msra.mxu0 %v903
  %1244 = vmatprep.subr.bf16.mxu0 0
  %1245 = vmatpush1.bf16.msra.mxu0 %v904
  %1246 = vmatprep.subr.bf16.mxu0 0
  %1247 = vmatpush1.bf16.msra.mxu0 %v905
  %1248 = vmatprep.subr.bf16.mxu0 0
  %1249 = vmatpush1.bf16.msra.mxu0 %v906
  %1250 = vmatprep.subr.bf16.mxu0 0
  %1251 = vmatpush1.bf16.msra.mxu0 %v907
  %1252 = vmatprep.mubr.bf16.mxu0 %v307
  %1253 = vmatmul.mubr.bf16.gmra.mrb[0].mxu0 %v306
  %v1254 = vpop.f32.mrb[0].mxu0
  %v1255 = vadd.f32 %v1215, %v1254
  %v1256 = vpop.f32.mrb[0].mxu0
  %v1257 = vpop.f32.mrb[0].mxu0
  %v1258 = vpop.f32.mrb[0].mxu0
  %1259 = vdwg.mxu0
  %1260 = vmatprep.subr.bf16.mxu0 0
  %1261 = vmatpush1.bf16.msra.mxu0 %v908
  %1262 = vmatprep.subr.bf16.mxu0 0
  %1263 = vmatpush1.bf16.msra.mxu0 %v909
  %1264 = vmatprep.subr.bf16.mxu0 0
  %1265 = vmatpush1.bf16.msra.mxu0 %v910
  %1266 = vmatprep.subr.bf16.mxu0 0
  %1267 = vmatpush1.bf16.msra.mxu0 %v911
  %1268 = vmatprep.subr.bf16.mxu0 0
  %1269 = vmatpush1.bf16.msra.mxu0 %v912
  %1270 = vmatprep.subr.bf16.mxu0 0
  %1271 = vmatpush1.bf16.msra.mxu0 %v913
  %1272 = vmatprep.subr.bf16.mxu0 0
  %1273 = vmatpush1.bf16.msra.mxu0 %v914
  %1274 = vmatprep.subr.bf16.mxu0 0
  %1275 = vmatpush1.bf16.msra.mxu0 %v915
  %1276 = vmatprep.subr.bf16.mxu0 0
  %1277 = vmatpush1.bf16.msra.mxu0 %v916
  %1278 = vmatprep.subr.bf16.mxu0 0
  %1279 = vmatpush1.bf16.msra.mxu0 %v917
  %1280 = vmatprep.subr.bf16.mxu0 0
  %1281 = vmatpush1.bf16.msra.mxu0 %v918
  %1282 = vmatprep.subr.bf16.mxu0 0
  %1283 = vmatpush1.bf16.msra.mxu0 %v919
  %1284 = vmatprep.subr.bf16.mxu0 0
  %1285 = vmatpush1.bf16.msra.mxu0 %v920
  %1286 = vmatprep.subr.bf16.mxu0 0
  %1287 = vmatpush1.bf16.msra.mxu0 %v921
  %1288 = vmatprep.subr.bf16.mxu0 0
  %1289 = vmatpush1.bf16.msra.mxu0 %v922
  %1290 = vmatprep.subr.bf16.mxu0 0
  %1291 = vmatpush1.bf16.msra.mxu0 %v923
  %1292 = vmatprep.mubr.bf16.mxu0 %v309
  %1293 = vmatmul.mubr.bf16.gmra.mrb[0].mxu0 %v308
  %v1294 = vpop.f32.mrb[0].mxu0
  %v1295 = vadd.f32 %v1255, %v1294
  %v1296 = vpop.f32.mrb[0].mxu0
  %v1297 = vpop.f32.mrb[0].mxu0
  %v1298 = vpop.f32.mrb[0].mxu0
  %1299 = vdwg.mxu0
  %1300 = vmatprep.subr.bf16.mxu0 0
  %1301 = vmatpush1.bf16.msra.mxu0 %v924
  %1302 = vmatprep.subr.bf16.mxu0 0
  %1303 = vmatpush1.bf16.msra.mxu0 %v925
  %1304 = vmatprep.subr.bf16.mxu0 0
  %1305 = vmatpush1.bf16.msra.mxu0 %v926
  %1306 = vmatprep.subr.bf16.mxu0 0
  %1307 = vmatpush1.bf16.msra.mxu0 %v927
  %1308 = vmatprep.subr.bf16.mxu0 0
  %1309 = vmatpush1.bf16.msra.mxu0 %v928
  %1310 = vmatprep.subr.bf16.mxu0 0
  %1311 = vmatpush1.bf16.msra.mxu0 %v929
  %1312 = vmatprep.subr.bf16.mxu0 0
  %1313 = vmatpush1.bf16.msra.mxu0 %v930
  %1314 = vmatprep.subr.bf16.mxu0 0
  %1315 = vmatpush1.bf16.msra.mxu0 %v931
  %1316 = vmatprep.subr.bf16.mxu0 0
  %1317 = vmatpush1.bf16.msra.mxu0 %v932
  %1318 = vmatprep.subr.bf16.mxu0 0
  %1319 = vmatpush1.bf16.msra.mxu0 %v933
  %1320 = vmatprep.subr.bf16.mxu0 0
  %1321 = vmatpush1.bf16.msra.mxu0 %v934
  %1322 = vmatprep.subr.bf16.mxu0 0
  %1323 = vmatpush1.bf16.msra.mxu0 %v935
  %1324 = vmatprep.subr.bf16.mxu0 0
  %1325 = vmatpush1.bf16.msra.mxu0 %v936
  %1326 = vmatprep.subr.bf16.mxu0 0
  %1327 = vmatpush1.bf16.msra.mxu0 %v937
  %1328 = vmatprep.subr.bf16.mxu0 0
  %1329 = vmatpush1.bf16.msra.mxu0 %v938
  %1330 = vmatprep.subr.bf16.mxu0 0
  %1331 = vmatpush1.bf16.msra.mxu0 %v939
  %1332 = vmatprep.mubr.bf16.mxu0 %v311
  %1333 = vmatmul.mubr.bf16.gmra.mrb[0].mxu0 %v310
  %v1334 = vpop.f32.mrb[0].mxu0
  %v1335 = vadd.f32 %v1295, %v1334
  %v1336 = vpop.f32.mrb[0].mxu0
  %v1337 = vpop.f32.mrb[0].mxu0
  %v1338 = vpop.f32.mrb[0].mxu0
  %1339 = vdwg.mxu0
  %1340 = vmatprep.subr.bf16.mxu0 0
  %1341 = vmatpush1.bf16.msra.mxu0 %v940
  %1342 = vmatprep.subr.bf16.mxu0 0
  %1343 = vmatpush1.bf16.msra.mxu0 %v941
  %1344 = vmatprep.subr.bf16.mxu0 0
  %1345 = vmatpush1.bf16.msra.mxu0 %v942
  %1346 = vmatprep.subr.bf16.mxu0 0
  %1347 = vmatpush1.bf16.msra.mxu0 %v943
  %1348 = vmatprep.subr.bf16.mxu0 0
  %1349 = vmatpush1.bf16.msra.mxu0 %v944
  %1350 = vmatprep.subr.bf16.mxu0 0
  %1351 = vmatpush1.bf16.msra.mxu0 %v945
  %1352 = vmatprep.subr.bf16.mxu0 0
  %1353 = vmatpush1.bf16.msra.mxu0 %v946
  %1354 = vmatprep.subr.bf16.mxu0 0
  %1355 = vmatpush1.bf16.msra.mxu0 %v947
  %1356 = vmatprep.subr.bf16.mxu0 0
  %1357 = vmatpush1.bf16.msra.mxu0 %v948
  %1358 = vmatprep.subr.bf16.mxu0 0
  %1359 = vmatpush1.bf16.msra.mxu0 %v949
  %1360 = vmatprep.subr.bf16.mxu0 0
  %1361 = vmatpush1.bf16.msra.mxu0 %v950
  %1362 = vmatprep.subr.bf16.mxu0 0
  %1363 = vmatpush1.bf16.msra.mxu0 %v951
  %1364 = vmatprep.subr.bf16.mxu0 0
  %1365 = vmatpush1.bf16.msra.mxu0 %v952
  %1366 = vmatprep.subr.bf16.mxu0 0
  %1367 = vmatpush1.bf16.msra.mxu0 %v953
  %1368 = vmatprep.subr.bf16.mxu0 0
  %1369 = vmatpush1.bf16.msra.mxu0 %v954
  %1370 = vmatprep.subr.bf16.mxu0 0
  %1371 = vmatpush1.bf16.msra.mxu0 %v955
  %1372 = vmatprep.mubr.bf16.mxu0 %v313
  %1373 = vmatmul.mubr.bf16.gmra.mrb[0].mxu0 %v312
  %v1374 = vpop.f32.mrb[0].mxu0
  %v1375 = vadd.f32 %v1335, %v1374
  %v1376 = vpop.f32.mrb[0].mxu0
  %v1377 = vpop.f32.mrb[0].mxu0
  %v1378 = vpop.f32.mrb[0].mxu0
  %1379 = vdwg.mxu0
  %1380 = vmatprep.subr.bf16.mxu0 0
  %1381 = vmatpush1.bf16.msra.mxu0 %v956
  %1382 = vmatprep.subr.bf16.mxu0 0
  %1383 = vmatpush1.bf16.msra.mxu0 %v957
  %1384 = vmatprep.subr.bf16.mxu0 0
  %1385 = vmatpush1.bf16.msra.mxu0 %v958
  %1386 = vmatprep.subr.bf16.mxu0 0
  %1387 = vmatpush1.bf16.msra.mxu0 %v959
  %1388 = vmatprep.subr.bf16.mxu0 0
  %1389 = vmatpush1.bf16.msra.mxu0 %v960
  %1390 = vmatprep.subr.bf16.mxu0 0
  %1391 = vmatpush1.bf16.msra.mxu0 %v961
  %1392 = vmatprep.subr.bf16.mxu0 0
  %1393 = vmatpush1.bf16.msra.mxu0 %v962
  %1394 = vmatprep.subr.bf16.mxu0 0
  %1395 = vmatpush1.bf16.msra.mxu0 %v963
  %1396 = vmatprep.subr.bf16.mxu0 0
  %1397 = vmatpush1.bf16.msra.mxu0 %v964
  %1398 = vmatprep.subr.bf16.mxu0 0
  %1399 = vmatpush1.bf16.msra.mxu0 %v965
  %1400 = vmatprep.subr.bf16.mxu0 0
  %1401 = vmatpush1.bf16.msra.mxu0 %v966
  %1402 = vmatprep.subr.bf16.mxu0 0
  %1403 = vmatpush1.bf16.msra.mxu0 %v967
  %1404 = vmatprep.subr.bf16.mxu0 0
  %1405 = vmatpush1.bf16.msra.mxu0 %v968
  %1406 = vmatprep.subr.bf16.mxu0 0
  %1407 = vmatpush1.bf16.msra.mxu0 %v969
  %1408 = vmatprep.subr.bf16.mxu0 0
  %1409 = vmatpush1.bf16.msra.mxu0 %v970
  %1410 = vmatprep.subr.bf16.mxu0 0
  %1411 = vmatpush1.bf16.msra.mxu0 %v971
  %1412 = vmatprep.mubr.bf16.mxu0 %v315
  %1413 = vmatmul.mubr.bf16.gmra.mrb[0].mxu0 %v314
  %v1414 = vpop.f32.mrb[0].mxu0
  %v1415 = vadd.f32 %v1375, %v1414
  %v1416 = vpop.f32.mrb[0].mxu0
  %v1417 = vpop.f32.mrb[0].mxu0
  %v1418 = vpop.f32.mrb[0].mxu0
  %1419 = vdwg.mxu0
  %1420 = vst [vmem:[%s2] sm:$0xff] %v1415
  // Predicated region
  $region10: #{dcgan_discriminator_forward.11} parent=0 // pred_check
    _
  $region11: #{dcgan_discriminator_forward.11} parent=0 // pred_check_branch
    %1422 = sbr.rel (0) target = $region13
  $region12: #{dcgan_discriminator_forward.11} parent=0 // pred_region
    _
  $region13: #{dcgan_discriminator_forward.11} parent=0 // pred_fallthru
    _
  // Predicated region
  $region14: #{dcgan_discriminator_forward.11} parent=0 // pred_check
    _
  $region15: #{dcgan_discriminator_forward.11} parent=0 // pred_check_branch
    %1424 = sbr.rel (0) target = $region17
  $region16: #{dcgan_discriminator_forward.11} parent=0 // pred_region
    _
  $region17: #{dcgan_discriminator_forward.11} parent=0 // pred_fallthru
    _

</llo_original>
